<compile_context>
chip_gen: v7x
topology: tpu7x:2x2x1
jax: 0.10.0
libtpu: 0.0.40
codegen_flags: <defaults>
</compile_context>

<pallas_src>
import jax
import jax.numpy as jnp
from jax.experimental import pallas as pl
from jax.experimental.pallas import tpu as pltpu


def _zero_map(nd):
    return lambda i: (0,) * nd


# ----------------------------------------------------------------------------
# Fused forward: 2-layer bidirectional LSTM + decoder, one pallas_call
# ----------------------------------------------------------------------------
def rl_summ_forward(params, x_btd):
    """x_btd: (B, T, 2*hidden) batch-first  ->  affinities (B, T)."""
    B, T, Din = x_btd.shape
    H = params["whh0"].shape[0] // 2
    G = 8 * H                                   # gate width, both directions
    Ddec = params["dw1"].shape[-1]
    Bp = ((B + 7) // 8) * 8                     # pad batch to a sublane multiple
    n_rows = T * Bp

    # Layout plumbing in XLA (outside the kernel): time-major, batch padded,
    # rows flattened so every in-kernel access is an aligned (Bp, .) slab.
    x_tbd = jnp.transpose(x_btd, (1, 0, 2))
    if Bp != B:
        x_tbd = jnp.pad(x_tbd, ((0, 0), (0, Bp - B), (0, 0)))
    x_flat = x_tbd.reshape(n_rows, Din)

    unroll = T if T <= 32 else max(u for u in (8, 4, 2, 1) if T % u == 0)

    def kernel(x_ref, wih0_ref, whh0_ref, b0_ref,
               wih1_ref, whh1_ref, b1_ref,
               dw1_ref, db1_ref, dw2_ref, db2_ref,
               out_ref, gx_ref, hf_ref, hr_ref):
        # Mask of gate columns owned by the forward direction (hoisted, no mod op).
        col = jax.lax.broadcasted_iota(jnp.int32, (Bp, G), 1)
        fwd_col = col < H
        for q in range(1, 4):
            lo = q * 2 * H
            fwd_col = fwd_col | ((col >= lo) & (col < lo + H))

        def run_layer(whh):
            """Fused fwd/rev recurrence over gx_ref; writes hf_ref / hr_ref."""
            def step(i, carry):
                h, c = carry                                    # (Bp, 2H): [fwd | rev]
                off_f = pl.multiple_of(i * Bp, 8)               # forward time  = i
                off_r = pl.multiple_of((T - 1 - i) * Bp, 8)     # backward time = T-1-i
                g = jnp.where(fwd_col,
                              gx_ref[pl.ds(off_f, Bp)],
                              gx_ref[pl.ds(off_r, Bp)])
                g = g + jnp.dot(h, whh, preferred_element_type=jnp.float32)
                sg = jax.nn.sigmoid(g)                          # full-slab EUP
                g_g = jnp.tanh(g[:, 4 * H:6 * H])
                c_new = sg[:, 2 * H:4 * H] * c + sg[:, 0:2 * H] * g_g
                h_new = sg[:, 6 * H:8 * H] * jnp.tanh(c_new)
                hf_ref[pl.ds(off_f, Bp)] = h_new[:, :H]
                hr_ref[pl.ds(off_r, Bp)] = h_new[:, H:]
                return h_new, c_new

            z = jnp.zeros((Bp, 2 * H), jnp.float32)
            jax.lax.fori_loop(0, T, step, (z, z), unroll=unroll)

        # ---- layer 0: hoisted bulk input projection (M = T*Bp), bias added once
        gx_ref[...] = (jnp.dot(x_ref[...], wih0_ref[...],
                               preferred_element_type=jnp.float32) + b0_ref[...])
        run_layer(whh0_ref[...])

        # ---- layer 1: consumes layer-0 fwd/rev pieces (natural time order)
        gx_ref[...] = (jnp.dot(hf_ref[...], wih1_ref[0], preferred_element_type=jnp.float32)
                       + jnp.dot(hr_ref[...], wih1_ref[1], preferred_element_type=jnp.float32)
                       + b1_ref[...])
        run_layer(whh1_ref[...])

        # ---- fused decoder: Linear -> ReLU -> (Ddec->1 via VPU mul + lane reduce) -> Sigmoid
        hid = (jnp.dot(hf_ref[...], dw1_ref[0], preferred_element_type=jnp.float32)
               + jnp.dot(hr_ref[...], dw1_ref[1], preferred_element_type=jnp.float32)
               + db1_ref[...])
        hid = jnp.maximum(hid, 0.0)
        y = jnp.sum(hid * dw2_ref[...], axis=-1, keepdims=True) + db2_ref[...]
        out_ref[...] = jax.nn.sigmoid(y)

    args = (x_flat,
            params["wih0"], params["whh0"], params["b0"],
            params["wih1"], params["whh1"], params["b1"],
            params["dw1"], params["db1"], params["dw2"], params["db2"])

    # Explicit VMEM budget (feedback item): resident x + gx + h pieces + out + weights.
    lane = lambda n: ((n + 127) // 128) * 128
    resident = 4 * n_rows * (lane(Din) + lane(G) + 2 * lane(H) + lane(1))
    resident += 2 << 20                                     # weights + headroom
    vmem_limit = int(min(max(2 * resident + (4 << 20), 32 << 20), 96 << 20))

    out_flat = pl.pallas_call(
        kernel,
        out_shape=jax.ShapeDtypeStruct((n_rows, 1), jnp.float32),
        grid=(1,),
        in_specs=[pl.BlockSpec(a.shape, _zero_map(a.ndim)) for a in args],
        out_specs=pl.BlockSpec((n_rows, 1), lambda i: (0, 0)),
        scratch_shapes=[
            pltpu.VMEM((n_rows, G), jnp.float32),            # gx (reused per layer)
            pltpu.VMEM((n_rows, H), jnp.float32),            # fwd hidden piece
            pltpu.VMEM((n_rows, H), jnp.float32),            # rev hidden piece
        ],
        compiler_params=pltpu.CompilerParams(
            dimension_semantics=("arbitrary",),
            vmem_limit_bytes=vmem_limit,
        ),
    )(*args)

    return out_flat.reshape(T, Bp)[:, :B].T                 # (B, T) affinities


# ----------------------------------------------------------------------------
# Parameters: raw PyTorch-shaped init + one-time repack into kernel layout
# ----------------------------------------------------------------------------
def init_raw_params(key, hidden_dim, decoder_dim):
    H = hidden_dim
    keys = iter(jax.random.split(key, 32))

    def u(shape, bound):
        return jax.random.uniform(next(keys), shape, jnp.float32, -bound, bound)

    kl = 1.0 / jnp.sqrt(jnp.float32(H))
    lstm = []
    for _ in range(2):
        din = 2 * H                 # layer 0: input_size=2H; layer 1: 2H (bidirectional)
        lstm.append(dict(
            w_ih=u((4 * H, din), kl),   w_hh=u((4 * H, H), kl),
            b_ih=u((4 * H,), kl),       b_hh=u((4 * H,), kl),
            w_ih_r=u((4 * H, din), kl), w_hh_r=u((4 * H, H), kl),
            b_ih_r=u((4 * H,), kl),     b_hh_r=u((4 * H,), kl),
        ))

    kd = 1.0 / jnp.sqrt(jnp.float32(2 * H))
    w1 = u((decoder_dim, 2 * H), kd)
    b1 = u((decoder_dim,), kd)
    kd2 = 1.0 / jnp.sqrt(jnp.float32(decoder_dim))
    w2 = u((1, decoder_dim), kd2)
    b2 = u((1,), kd2)
    return dict(lstm=lstm, dec=dict(w1=w1, b1=b1, w2=w2, b2=b2))


def prepare_params(raw, hidden_dim):
    """One-time repack into the fused-kernel layouts.

    Gate columns are interleaved [i_f i_r | f_f f_r | g_f g_r | o_f o_r] (each H wide)
    so that 2H-wide gate slices align with the [fwd | rev] (h, c) state layout.
    """
    H = hidden_dim

    def interleave_cols(wf, wr):
        # wf, wr: (4H, K) PyTorch [i;f;g;o] layout -> (K, 8H) interleaved columns
        K = wf.shape[1]
        wf_kgh = wf.T.reshape(K, 4, H)
        wr_kgh = wr.T.reshape(K, 4, H)
        return jnp.stack([wf_kgh, wr_kgh], axis=2).reshape(K, 8 * H)

    def interleave_bias(bf, br):
        return jnp.stack([bf.reshape(4, H), br.reshape(4, H)], axis=1).reshape(1, 8 * H)

    def block_whh(wf, wr):
        # (4H, H) each -> (2H, 8H); fwd hidden rows feed only fwd columns, rev only rev.
        z = jnp.zeros((H, 4, H), jnp.float32)
        top = jnp.stack([wf.T.reshape(H, 4, H), z], axis=2).reshape(H, 8 * H)
        bot = jnp.stack([z, wr.T.reshape(H, 4, H)], axis=2).reshape(H, 8 * H)
        return jnp.concatenate([top, bot], axis=0)

    l0, l1 = raw["lstm"]
    d = raw["dec"]
    return dict(
        wih0=interleave_cols(l0["w_ih"], l0["w_ih_r"]),                             # (2H, 8H)
        whh0=block_whh(l0["w_hh"], l0["w_hh_r"]),                                   # (2H, 8H)
        b0=interleave_bias(l0["b_ih"] + l0["b_hh"], l0["b_ih_r"] + l0["b_hh_r"]),   # (1, 8H)
        wih1=interleave_cols(l1["w_ih"], l1["w_ih_r"]).reshape(2, H, 8 * H),        # (2, H, 8H)
        whh1=block_whh(l1["w_hh"], l1["w_hh_r"]),                                   # (2H, 8H)
        b1=interleave_bias(l1["b_ih"] + l1["b_hh"], l1["b_ih_r"] + l1["b_hh_r"]),   # (1, 8H)
        dw1=d["w1"].T.reshape(2, H, -1),                                            # (2, H, Ddec)
        db1=d["b1"].reshape(1, -1),                                                 # (1, Ddec)
        dw2=d["w2"].reshape(1, -1),                                                 # (1, Ddec)
        db2=d["b2"].reshape(1, 1),                                                  # (1, 1)
    )


# ----------------------------------------------------------------------------
# Pure-JAX reference (for correctness check), consumes raw PyTorch-shaped params
# ----------------------------------------------------------------------------
def _ref_lstm_dir(x_tbd, w_ih, w_hh, b_ih, b_hh, reverse):
    T, B, _ = x_tbd.shape
    H = w_hh.shape[1]
    h = jnp.zeros((B, H), jnp.float32)
    c = jnp.zeros((B, H), jnp.float32)
    outs = [None] * T
    order = range(T - 1, -1, -1) if reverse else range(T)
    for t in order:
        g = x_tbd[t] @ w_ih.T + h @ w_hh.T + b_ih + b_hh
        i = jax.nn.sigmoid(g[:, :H])
        f = jax.nn.sigmoid(g[:, H:2 * H])
        gg = jnp.tanh(g[:, 2 * H:3 * H])
        o = jax.nn.sigmoid(g[:, 3 * H:])
        c = f * c + i * gg
        h = o * jnp.tanh(c)
        outs[t] = h
    return jnp.stack(outs, axis=0)


def ref_forward(raw, x_btd):
    h = jnp.transpose(x_btd, (1, 0, 2))
    for p in raw["lstm"]:
        fwd = _ref_lstm_dir(h, p["w_ih"], p["w_hh"], p["b_ih"], p["b_hh"], False)
        rev = _ref_lstm_dir(h, p["w_ih_r"], p["w_hh_r"], p["b_ih_r"], p["b_hh_r"], True)
        h = jnp.concatenate([fwd, rev], axis=-1)
    sent = jnp.transpose(h, (1, 0, 2))
    d = raw["dec"]
    hid = jnp.maximum(sent @ d["w1"].T + d["b1"], 0.0)
    return jax.nn.sigmoid(hid @ d["w2"].T + d["b2"]).squeeze(-1)


# ----------------------------------------------------------------------------
if __name__ == "__main__":
    hidden_dim = 32      # LSTM hidden size
    decoder_dim = 32
    B, T = 2, 8

    key = jax.random.PRNGKey(0)
    pkey, xkey = jax.random.split(key)
    raw = init_raw_params(pkey, hidden_dim, decoder_dim)
    params = prepare_params(raw, hidden_dim)
    x = jax.random.normal(xkey, (B, T, 2 * hidden_dim), jnp.float32)

    out = rl_summ_forward(params, x)
    out = jax.block_until_ready(out)

    ref = ref_forward(raw, x)
    assert out.shape == (B, T)
    assert jnp.allclose(out, ref, rtol=1e-5, atol=5e-5), "mismatch vs reference"

    print("KERNEL_OK")
</pallas_src>

<mosaic_0001>
module attributes {stable_mosaic.version = 11 : i64} {
  func.func @kernel(%arg0: i32, %arg1: memref<64x64xf32, #tpu.memory_space<vmem>>, %arg2: memref<64x256xf32, #tpu.memory_space<vmem>>, %arg3: memref<64x256xf32, #tpu.memory_space<vmem>>, %arg4: memref<1x256xf32, #tpu.memory_space<vmem>>, %arg5: memref<2x32x256xf32, #tpu.memory_space<vmem>>, %arg6: memref<64x256xf32, #tpu.memory_space<vmem>>, %arg7: memref<1x256xf32, #tpu.memory_space<vmem>>, %arg8: memref<2x32x32xf32, #tpu.memory_space<vmem>>, %arg9: memref<1x32xf32, #tpu.memory_space<vmem>>, %arg10: memref<1x32xf32, #tpu.memory_space<vmem>>, %arg11: memref<1x1xf32, #tpu.memory_space<vmem>>, %arg12: memref<64x1xf32, #tpu.memory_space<vmem>>, %arg13: memref<64x256xf32, #tpu.memory_space<vmem>>, %arg14: memref<64x32xf32, #tpu.memory_space<vmem>>, %arg15: memref<64x32xf32, #tpu.memory_space<vmem>>) attributes {dimension_semantics = [#tpu.dimension_semantics<arbitrary>], iteration_bounds = array<i64: 1>, scalar_prefetch = 0 : i64, scratch_operands = 3 : i64, tpu.core_type = #tpu.core_type<tc>, window_params = [{pipeline_mode = #tpu.pipeline_mode<synchronous>, transform_indices = @transform_0, window_bounds = array<i64: 64, 64>}, {pipeline_mode = #tpu.pipeline_mode<synchronous>, transform_indices = @transform_1, window_bounds = array<i64: 64, 256>}, {pipeline_mode = #tpu.pipeline_mode<synchronous>, transform_indices = @transform_2, window_bounds = array<i64: 64, 256>}, {pipeline_mode = #tpu.pipeline_mode<synchronous>, transform_indices = @transform_3, window_bounds = array<i64: 1, 256>}, {pipeline_mode = #tpu.pipeline_mode<synchronous>, transform_indices = @transform_4, window_bounds = array<i64: 2, 32, 256>}, {pipeline_mode = #tpu.pipeline_mode<synchronous>, transform_indices = @transform_5, window_bounds = array<i64: 64, 256>}, {pipeline_mode = #tpu.pipeline_mode<synchronous>, transform_indices = @transform_6, window_bounds = array<i64: 1, 256>}, {pipeline_mode = #tpu.pipeline_mode<synchronous>, transform_indices = @transform_7, window_bounds = array<i64: 2, 32, 32>}, {pipeline_mode = #tpu.pipeline_mode<synchronous>, transform_indices = @transform_8, window_bounds = array<i64: 1, 32>}, {pipeline_mode = #tpu.pipeline_mode<synchronous>, transform_indices = @transform_9, window_bounds = array<i64: 1, 32>}, {pipeline_mode = #tpu.pipeline_mode<synchronous>, transform_indices = @transform_10, window_bounds = array<i64: 1, 1>}, {pipeline_mode = #tpu.pipeline_mode<synchronous>, transform_indices = @transform_11, window_bounds = array<i64: 64, 1>}]} {
    %0 = tpu.iota {dimensions = array<i32: 1>} : vector<8x256xi32>
    %c32_i32 = arith.constant 32 : i32
    %1 = vector.broadcast %c32_i32 : i32 to vector<8x256xi32>
    %2 = arith.cmpi slt, %0, %1 : vector<8x256xi32>
    %c64_i32 = arith.constant 64 : i32
    %3 = vector.broadcast %c64_i32 : i32 to vector<8x256xi32>
    %4 = arith.cmpi sge, %0, %3 : vector<8x256xi32>
    %c96_i32 = arith.constant 96 : i32
    %5 = vector.broadcast %c96_i32 : i32 to vector<8x256xi32>
    %6 = arith.cmpi slt, %0, %5 : vector<8x256xi32>
    %7 = arith.andi %4, %6 : vector<8x256xi1>
    %8 = arith.ori %2, %7 : vector<8x256xi1>
    %c128_i32 = arith.constant 128 : i32
    %9 = vector.broadcast %c128_i32 : i32 to vector<8x256xi32>
    %10 = arith.cmpi sge, %0, %9 : vector<8x256xi32>
    %c160_i32 = arith.constant 160 : i32
    %11 = vector.broadcast %c160_i32 : i32 to vector<8x256xi32>
    %12 = arith.cmpi slt, %0, %11 : vector<8x256xi32>
    %13 = arith.andi %10, %12 : vector<8x256xi1>
    %14 = arith.ori %8, %13 : vector<8x256xi1>
    %c192_i32 = arith.constant 192 : i32
    %15 = vector.broadcast %c192_i32 : i32 to vector<8x256xi32>
    %16 = arith.cmpi sge, %0, %15 : vector<8x256xi32>
    %c224_i32 = arith.constant 224 : i32
    %17 = vector.broadcast %c224_i32 : i32 to vector<8x256xi32>
    %18 = arith.cmpi slt, %0, %17 : vector<8x256xi32>
    %19 = arith.andi %16, %18 : vector<8x256xi1>
    %20 = arith.ori %14, %19 : vector<8x256xi1>
    %c0 = arith.constant 0 : index
    %c0_0 = arith.constant 0 : index
    %21 = vector.load %arg1[%c0, %c0_0] : memref<64x64xf32, #tpu.memory_space<vmem>>, vector<64x64xf32>
    %c0_1 = arith.constant 0 : index
    %c0_2 = arith.constant 0 : index
    %22 = vector.load %arg2[%c0_1, %c0_2] : memref<64x256xf32, #tpu.memory_space<vmem>>, vector<64x256xf32>
    %cst = arith.constant dense<0.000000e+00> : vector<64x256xf32>
    %23 = tpu.matmul %21, %22, %cst {dimension_numbers = #tpu.dot_dimension_numbers<[1], [0], [0], [1], [0, 0, 1, 1], [], []>} : vector<64x64xf32>, vector<64x256xf32>, vector<64x256xf32> -> vector<64x256xf32>
    %c0_3 = arith.constant 0 : index
    %c0_4 = arith.constant 0 : index
    %24 = vector.load %arg4[%c0_3, %c0_4] : memref<1x256xf32, #tpu.memory_space<vmem>>, vector<1x256xf32>
    %25 = vector.broadcast %24 : vector<1x256xf32> to vector<64x256xf32>
    %26 = arith.addf %23, %25 : vector<64x256xf32>
    %c0_5 = arith.constant 0 : index
    %c0_6 = arith.constant 0 : index
    %27 = vector.load %arg13[%c0_5, %c0_6] : memref<64x256xf32, #tpu.memory_space<vmem>>, vector<64x256xf32>
    tpu.vector_store %arg13[%c0_5, %c0_6], %26 {strides = array<i32>} : memref<64x256xf32, #tpu.memory_space<vmem>>, vector<64x256xf32>,
    %c0_7 = arith.constant 0 : index
    %c0_8 = arith.constant 0 : index
    %28 = vector.load %arg3[%c0_7, %c0_8] : memref<64x256xf32, #tpu.memory_space<vmem>>, vector<64x256xf32>
    %cst_9 = arith.constant 0.000000e+00 : f32
    %29 = vector.broadcast %cst_9 : f32 to vector<8x64xf32>
    %c0_i32 = arith.constant 0 : i32
    %c8_i32 = arith.constant 8 : i32
    %30 = arith.muli %c0_i32, %c8_i32 : i32
    %31 = tpu.assume_multiple %30, 8 : i32
    %c7_i32 = arith.constant 7 : i32
    %32 = arith.subi %c7_i32, %c0_i32 : i32
    %c8_i32_10 = arith.constant 8 : i32
    %33 = arith.muli %32, %c8_i32_10 : i32
    %34 = tpu.assume_multiple %33, 8 : i32
    %35 = arith.index_cast %31 : i32 to index
    %c0_11 = arith.constant 0 : index
    %36 = vector.load %arg13[%35, %c0_11] : memref<64x256xf32, #tpu.memory_space<vmem>>, vector<8x256xf32>
    %37 = arith.index_cast %34 : i32 to index
    %c0_12 = arith.constant 0 : index
    %38 = vector.load %arg13[%37, %c0_12] : memref<64x256xf32, #tpu.memory_space<vmem>>, vector<8x256xf32>
    %39 = arith.select %20, %36, %38 : vector<8x256xi1>, vector<8x256xf32>
    %cst_13 = arith.constant dense<0.000000e+00> : vector<8x256xf32>
    %40 = tpu.matmul %29, %28, %cst_13 {dimension_numbers = #tpu.dot_dimension_numbers<[1], [0], [0], [1], [0, 0, 1, 1], [], []>} : vector<8x64xf32>, vector<64x256xf32>, vector<8x256xf32> -> vector<8x256xf32>
    %41 = arith.addf %39, %40 : vector<8x256xf32>
    %42 = arith.negf %41 : vector<8x256xf32>
    %43 = math.exp %42 : vector<8x256xf32>
    %cst_14 = arith.constant 1.000000e+00 : f32
    %44 = vector.broadcast %cst_14 : f32 to vector<8x256xf32>
    %45 = arith.addf %44, %43 : vector<8x256xf32>
    %46 = arith.divf %44, %45 : vector<8x256xf32>
    %47 = vector.extract_strided_slice %41 {offsets = [0, 128], sizes = [8, 64], strides = [1, 1]} : vector<8x256xf32> to vector<8x64xf32>
    %48 = math.tanh %47 : vector<8x64xf32>
    %49 = vector.extract_strided_slice %46 {offsets = [0, 64], sizes = [8, 64], strides = [1, 1]} : vector<8x256xf32> to vector<8x64xf32>
    %50 = arith.mulf %49, %29 : vector<8x64xf32>
    %51 = vector.extract_strided_slice %46 {offsets = [0, 0], sizes = [8, 64], strides = [1, 1]} : vector<8x256xf32> to vector<8x64xf32>
    %52 = arith.mulf %51, %48 : vector<8x64xf32>
    %53 = arith.addf %50, %52 : vector<8x64xf32>
    %54 = vector.extract_strided_slice %46 {offsets = [0, 192], sizes = [8, 64], strides = [1, 1]} : vector<8x256xf32> to vector<8x64xf32>
    %55 = math.tanh %53 : vector<8x64xf32>
    %56 = arith.mulf %54, %55 : vector<8x64xf32>
    %57 = vector.extract_strided_slice %56 {offsets = [0, 0], sizes = [8, 32], strides = [1, 1]} : vector<8x64xf32> to vector<8x32xf32>
    %58 = arith.index_cast %31 : i32 to index
    %c0_15 = arith.constant 0 : index
    %59 = vector.load %arg14[%58, %c0_15] : memref<64x32xf32, #tpu.memory_space<vmem>>, vector<8x32xf32>
    tpu.vector_store %arg14[%58, %c0_15], %57 {strides = array<i32>} : memref<64x32xf32, #tpu.memory_space<vmem>>, vector<8x32xf32>,
    %60 = vector.extract_strided_slice %56 {offsets = [0, 32], sizes = [8, 32], strides = [1, 1]} : vector<8x64xf32> to vector<8x32xf32>
    %61 = arith.index_cast %34 : i32 to index
    %c0_16 = arith.constant 0 : index
    %62 = vector.load %arg15[%61, %c0_16] : memref<64x32xf32, #tpu.memory_space<vmem>>, vector<8x32xf32>
    tpu.vector_store %arg15[%61, %c0_16], %60 {strides = array<i32>} : memref<64x32xf32, #tpu.memory_space<vmem>>, vector<8x32xf32>,
    %c1_i32 = arith.constant 1 : i32
    %c8_i32_17 = arith.constant 8 : i32
    %63 = arith.muli %c1_i32, %c8_i32_17 : i32
    %64 = tpu.assume_multiple %63, 8 : i32
    %c7_i32_18 = arith.constant 7 : i32
    %65 = arith.subi %c7_i32_18, %c1_i32 : i32
    %c8_i32_19 = arith.constant 8 : i32
    %66 = arith.muli %65, %c8_i32_19 : i32
    %67 = tpu.assume_multiple %66, 8 : i32
    %68 = arith.index_cast %64 : i32 to index
    %c0_20 = arith.constant 0 : index
    %69 = vector.load %arg13[%68, %c0_20] : memref<64x256xf32, #tpu.memory_space<vmem>>, vector<8x256xf32>
    %70 = arith.index_cast %67 : i32 to index
    %c0_21 = arith.constant 0 : index
    %71 = vector.load %arg13[%70, %c0_21] : memref<64x256xf32, #tpu.memory_space<vmem>>, vector<8x256xf32>
    %72 = arith.select %20, %69, %71 : vector<8x256xi1>, vector<8x256xf32>
    %cst_22 = arith.constant dense<0.000000e+00> : vector<8x256xf32>
    %73 = tpu.matmul %56, %28, %cst_22 {dimension_numbers = #tpu.dot_dimension_numbers<[1], [0], [0], [1], [0, 0, 1, 1], [], []>} : vector<8x64xf32>, vector<64x256xf32>, vector<8x256xf32> -> vector<8x256xf32>
    %74 = arith.addf %72, %73 : vector<8x256xf32>
    %75 = arith.negf %74 : vector<8x256xf32>
    %76 = math.exp %75 : vector<8x256xf32>
    %cst_23 = arith.constant 1.000000e+00 : f32
    %77 = vector.broadcast %cst_23 : f32 to vector<8x256xf32>
    %78 = arith.addf %77, %76 : vector<8x256xf32>
    %79 = arith.divf %77, %78 : vector<8x256xf32>
    %80 = vector.extract_strided_slice %74 {offsets = [0, 128], sizes = [8, 64], strides = [1, 1]} : vector<8x256xf32> to vector<8x64xf32>
    %81 = math.tanh %80 : vector<8x64xf32>
    %82 = vector.extract_strided_slice %79 {offsets = [0, 64], sizes = [8, 64], strides = [1, 1]} : vector<8x256xf32> to vector<8x64xf32>
    %83 = arith.mulf %82, %53 : vector<8x64xf32>
    %84 = vector.extract_strided_slice %79 {offsets = [0, 0], sizes = [8, 64], strides = [1, 1]} : vector<8x256xf32> to vector<8x64xf32>
    %85 = arith.mulf %84, %81 : vector<8x64xf32>
    %86 = arith.addf %83, %85 : vector<8x64xf32>
    %87 = vector.extract_strided_slice %79 {offsets = [0, 192], sizes = [8, 64], strides = [1, 1]} : vector<8x256xf32> to vector<8x64xf32>
    %88 = math.tanh %86 : vector<8x64xf32>
    %89 = arith.mulf %87, %88 : vector<8x64xf32>
    %90 = vector.extract_strided_slice %89 {offsets = [0, 0], sizes = [8, 32], strides = [1, 1]} : vector<8x64xf32> to vector<8x32xf32>
    %91 = arith.index_cast %64 : i32 to index
    %c0_24 = arith.constant 0 : index
    %92 = vector.load %arg14[%91, %c0_24] : memref<64x32xf32, #tpu.memory_space<vmem>>, vector<8x32xf32>
    tpu.vector_store %arg14[%91, %c0_24], %90 {strides = array<i32>} : memref<64x32xf32, #tpu.memory_space<vmem>>, vector<8x32xf32>,
    %93 = vector.extract_strided_slice %89 {offsets = [0, 32], sizes = [8, 32], strides = [1, 1]} : vector<8x64xf32> to vector<8x32xf32>
    %94 = arith.index_cast %67 : i32 to index
    %c0_25 = arith.constant 0 : index
    %95 = vector.load %arg15[%94, %c0_25] : memref<64x32xf32, #tpu.memory_space<vmem>>, vector<8x32xf32>
    tpu.vector_store %arg15[%94, %c0_25], %93 {strides = array<i32>} : memref<64x32xf32, #tpu.memory_space<vmem>>, vector<8x32xf32>,
    %c2_i32 = arith.constant 2 : i32
    %c8_i32_26 = arith.constant 8 : i32
    %96 = arith.muli %c2_i32, %c8_i32_26 : i32
    %97 = tpu.assume_multiple %96, 8 : i32
    %c7_i32_27 = arith.constant 7 : i32
    %98 = arith.subi %c7_i32_27, %c2_i32 : i32
    %c8_i32_28 = arith.constant 8 : i32
    %99 = arith.muli %98, %c8_i32_28 : i32
    %100 = tpu.assume_multiple %99, 8 : i32
    %101 = arith.index_cast %97 : i32 to index
    %c0_29 = arith.constant 0 : index
    %102 = vector.load %arg13[%101, %c0_29] : memref<64x256xf32, #tpu.memory_space<vmem>>, vector<8x256xf32>
    %103 = arith.index_cast %100 : i32 to index
    %c0_30 = arith.constant 0 : index
    %104 = vector.load %arg13[%103, %c0_30] : memref<64x256xf32, #tpu.memory_space<vmem>>, vector<8x256xf32>
    %105 = arith.select %20, %102, %104 : vector<8x256xi1>, vector<8x256xf32>
    %cst_31 = arith.constant dense<0.000000e+00> : vector<8x256xf32>
    %106 = tpu.matmul %89, %28, %cst_31 {dimension_numbers = #tpu.dot_dimension_numbers<[1], [0], [0], [1], [0, 0, 1, 1], [], []>} : vector<8x64xf32>, vector<64x256xf32>, vector<8x256xf32> -> vector<8x256xf32>
    %107 = arith.addf %105, %106 : vector<8x256xf32>
    %108 = arith.negf %107 : vector<8x256xf32>
    %109 = math.exp %108 : vector<8x256xf32>
    %cst_32 = arith.constant 1.000000e+00 : f32
    %110 = vector.broadcast %cst_32 : f32 to vector<8x256xf32>
    %111 = arith.addf %110, %109 : vector<8x256xf32>
    %112 = arith.divf %110, %111 : vector<8x256xf32>
    %113 = vector.extract_strided_slice %107 {offsets = [0, 128], sizes = [8, 64], strides = [1, 1]} : vector<8x256xf32> to vector<8x64xf32>
    %114 = math.tanh %113 : vector<8x64xf32>
    %115 = vector.extract_strided_slice %112 {offsets = [0, 64], sizes = [8, 64], strides = [1, 1]} : vector<8x256xf32> to vector<8x64xf32>
    %116 = arith.mulf %115, %86 : vector<8x64xf32>
    %117 = vector.extract_strided_slice %112 {offsets = [0, 0], sizes = [8, 64], strides = [1, 1]} : vector<8x256xf32> to vector<8x64xf32>
    %118 = arith.mulf %117, %114 : vector<8x64xf32>
    %119 = arith.addf %116, %118 : vector<8x64xf32>
    %120 = vector.extract_strided_slice %112 {offsets = [0, 192], sizes = [8, 64], strides = [1, 1]} : vector<8x256xf32> to vector<8x64xf32>
    %121 = math.tanh %119 : vector<8x64xf32>
    %122 = arith.mulf %120, %121 : vector<8x64xf32>
    %123 = vector.extract_strided_slice %122 {offsets = [0, 0], sizes = [8, 32], strides = [1, 1]} : vector<8x64xf32> to vector<8x32xf32>
    %124 = arith.index_cast %97 : i32 to index
    %c0_33 = arith.constant 0 : index
    %125 = vector.load %arg14[%124, %c0_33] : memref<64x32xf32, #tpu.memory_space<vmem>>, vector<8x32xf32>
    tpu.vector_store %arg14[%124, %c0_33], %123 {strides = array<i32>} : memref<64x32xf32, #tpu.memory_space<vmem>>, vector<8x32xf32>,
    %126 = vector.extract_strided_slice %122 {offsets = [0, 32], sizes = [8, 32], strides = [1, 1]} : vector<8x64xf32> to vector<8x32xf32>
    %127 = arith.index_cast %100 : i32 to index
    %c0_34 = arith.constant 0 : index
    %128 = vector.load %arg15[%127, %c0_34] : memref<64x32xf32, #tpu.memory_space<vmem>>, vector<8x32xf32>
    tpu.vector_store %arg15[%127, %c0_34], %126 {strides = array<i32>} : memref<64x32xf32, #tpu.memory_space<vmem>>, vector<8x32xf32>,
    %c3_i32 = arith.constant 3 : i32
    %c8_i32_35 = arith.constant 8 : i32
    %129 = arith.muli %c3_i32, %c8_i32_35 : i32
    %130 = tpu.assume_multiple %129, 8 : i32
    %c7_i32_36 = arith.constant 7 : i32
    %131 = arith.subi %c7_i32_36, %c3_i32 : i32
    %c8_i32_37 = arith.constant 8 : i32
    %132 = arith.muli %131, %c8_i32_37 : i32
    %133 = tpu.assume_multiple %132, 8 : i32
    %134 = arith.index_cast %130 : i32 to index
    %c0_38 = arith.constant 0 : index
    %135 = vector.load %arg13[%134, %c0_38] : memref<64x256xf32, #tpu.memory_space<vmem>>, vector<8x256xf32>
    %136 = arith.index_cast %133 : i32 to index
    %c0_39 = arith.constant 0 : index
    %137 = vector.load %arg13[%136, %c0_39] : memref<64x256xf32, #tpu.memory_space<vmem>>, vector<8x256xf32>
    %138 = arith.select %20, %135, %137 : vector<8x256xi1>, vector<8x256xf32>
    %cst_40 = arith.constant dense<0.000000e+00> : vector<8x256xf32>
    %139 = tpu.matmul %122, %28, %cst_40 {dimension_numbers = #tpu.dot_dimension_numbers<[1], [0], [0], [1], [0, 0, 1, 1], [], []>} : vector<8x64xf32>, vector<64x256xf32>, vector<8x256xf32> -> vector<8x256xf32>
    %140 = arith.addf %138, %139 : vector<8x256xf32>
    %141 = arith.negf %140 : vector<8x256xf32>
    %142 = math.exp %141 : vector<8x256xf32>
    %cst_41 = arith.constant 1.000000e+00 : f32
    %143 = vector.broadcast %cst_41 : f32 to vector<8x256xf32>
    %144 = arith.addf %143, %142 : vector<8x256xf32>
    %145 = arith.divf %143, %144 : vector<8x256xf32>
    %146 = vector.extract_strided_slice %140 {offsets = [0, 128], sizes = [8, 64], strides = [1, 1]} : vector<8x256xf32> to vector<8x64xf32>
    %147 = math.tanh %146 : vector<8x64xf32>
    %148 = vector.extract_strided_slice %145 {offsets = [0, 64], sizes = [8, 64], strides = [1, 1]} : vector<8x256xf32> to vector<8x64xf32>
    %149 = arith.mulf %148, %119 : vector<8x64xf32>
    %150 = vector.extract_strided_slice %145 {offsets = [0, 0], sizes = [8, 64], strides = [1, 1]} : vector<8x256xf32> to vector<8x64xf32>
    %151 = arith.mulf %150, %147 : vector<8x64xf32>
    %152 = arith.addf %149, %151 : vector<8x64xf32>
    %153 = vector.extract_strided_slice %145 {offsets = [0, 192], sizes = [8, 64], strides = [1, 1]} : vector<8x256xf32> to vector<8x64xf32>
    %154 = math.tanh %152 : vector<8x64xf32>
    %155 = arith.mulf %153, %154 : vector<8x64xf32>
    %156 = vector.extract_strided_slice %155 {offsets = [0, 0], sizes = [8, 32], strides = [1, 1]} : vector<8x64xf32> to vector<8x32xf32>
    %157 = arith.index_cast %130 : i32 to index
    %c0_42 = arith.constant 0 : index
    %158 = vector.load %arg14[%157, %c0_42] : memref<64x32xf32, #tpu.memory_space<vmem>>, vector<8x32xf32>
    tpu.vector_store %arg14[%157, %c0_42], %156 {strides = array<i32>} : memref<64x32xf32, #tpu.memory_space<vmem>>, vector<8x32xf32>,
    %159 = vector.extract_strided_slice %155 {offsets = [0, 32], sizes = [8, 32], strides = [1, 1]} : vector<8x64xf32> to vector<8x32xf32>
    %160 = arith.index_cast %133 : i32 to index
    %c0_43 = arith.constant 0 : index
    %161 = vector.load %arg15[%160, %c0_43] : memref<64x32xf32, #tpu.memory_space<vmem>>, vector<8x32xf32>
    tpu.vector_store %arg15[%160, %c0_43], %159 {strides = array<i32>} : memref<64x32xf32, #tpu.memory_space<vmem>>, vector<8x32xf32>,
    %c4_i32 = arith.constant 4 : i32
    %c8_i32_44 = arith.constant 8 : i32
    %162 = arith.muli %c4_i32, %c8_i32_44 : i32
    %163 = tpu.assume_multiple %162, 8 : i32
    %c7_i32_45 = arith.constant 7 : i32
    %164 = arith.subi %c7_i32_45, %c4_i32 : i32
    %c8_i32_46 = arith.constant 8 : i32
    %165 = arith.muli %164, %c8_i32_46 : i32
    %166 = tpu.assume_multiple %165, 8 : i32
    %167 = arith.index_cast %163 : i32 to index
    %c0_47 = arith.constant 0 : index
    %168 = vector.load %arg13[%167, %c0_47] : memref<64x256xf32, #tpu.memory_space<vmem>>, vector<8x256xf32>
    %169 = arith.index_cast %166 : i32 to index
    %c0_48 = arith.constant 0 : index
    %170 = vector.load %arg13[%169, %c0_48] : memref<64x256xf32, #tpu.memory_space<vmem>>, vector<8x256xf32>
    %171 = arith.select %20, %168, %170 : vector<8x256xi1>, vector<8x256xf32>
    %cst_49 = arith.constant dense<0.000000e+00> : vector<8x256xf32>
    %172 = tpu.matmul %155, %28, %cst_49 {dimension_numbers = #tpu.dot_dimension_numbers<[1], [0], [0], [1], [0, 0, 1, 1], [], []>} : vector<8x64xf32>, vector<64x256xf32>, vector<8x256xf32> -> vector<8x256xf32>
    %173 = arith.addf %171, %172 : vector<8x256xf32>
    %174 = arith.negf %173 : vector<8x256xf32>
    %175 = math.exp %174 : vector<8x256xf32>
    %cst_50 = arith.constant 1.000000e+00 : f32
    %176 = vector.broadcast %cst_50 : f32 to vector<8x256xf32>
    %177 = arith.addf %176, %175 : vector<8x256xf32>
    %178 = arith.divf %176, %177 : vector<8x256xf32>
    %179 = vector.extract_strided_slice %173 {offsets = [0, 128], sizes = [8, 64], strides = [1, 1]} : vector<8x256xf32> to vector<8x64xf32>
    %180 = math.tanh %179 : vector<8x64xf32>
    %181 = vector.extract_strided_slice %178 {offsets = [0, 64], sizes = [8, 64], strides = [1, 1]} : vector<8x256xf32> to vector<8x64xf32>
    %182 = arith.mulf %181, %152 : vector<8x64xf32>
    %183 = vector.extract_strided_slice %178 {offsets = [0, 0], sizes = [8, 64], strides = [1, 1]} : vector<8x256xf32> to vector<8x64xf32>
    %184 = arith.mulf %183, %180 : vector<8x64xf32>
    %185 = arith.addf %182, %184 : vector<8x64xf32>
    %186 = vector.extract_strided_slice %178 {offsets = [0, 192], sizes = [8, 64], strides = [1, 1]} : vector<8x256xf32> to vector<8x64xf32>
    %187 = math.tanh %185 : vector<8x64xf32>
    %188 = arith.mulf %186, %187 : vector<8x64xf32>
    %189 = vector.extract_strided_slice %188 {offsets = [0, 0], sizes = [8, 32], strides = [1, 1]} : vector<8x64xf32> to vector<8x32xf32>
    %190 = arith.index_cast %163 : i32 to index
    %c0_51 = arith.constant 0 : index
    %191 = vector.load %arg14[%190, %c0_51] : memref<64x32xf32, #tpu.memory_space<vmem>>, vector<8x32xf32>
    tpu.vector_store %arg14[%190, %c0_51], %189 {strides = array<i32>} : memref<64x32xf32, #tpu.memory_space<vmem>>, vector<8x32xf32>,
    %192 = vector.extract_strided_slice %188 {offsets = [0, 32], sizes = [8, 32], strides = [1, 1]} : vector<8x64xf32> to vector<8x32xf32>
    %193 = arith.index_cast %166 : i32 to index
    %c0_52 = arith.constant 0 : index
    %194 = vector.load %arg15[%193, %c0_52] : memref<64x32xf32, #tpu.memory_space<vmem>>, vector<8x32xf32>
    tpu.vector_store %arg15[%193, %c0_52], %192 {strides = array<i32>} : memref<64x32xf32, #tpu.memory_space<vmem>>, vector<8x32xf32>,
    %c5_i32 = arith.constant 5 : i32
    %c8_i32_53 = arith.constant 8 : i32
    %195 = arith.muli %c5_i32, %c8_i32_53 : i32
    %196 = tpu.assume_multiple %195, 8 : i32
    %c7_i32_54 = arith.constant 7 : i32
    %197 = arith.subi %c7_i32_54, %c5_i32 : i32
    %c8_i32_55 = arith.constant 8 : i32
    %198 = arith.muli %197, %c8_i32_55 : i32
    %199 = tpu.assume_multiple %198, 8 : i32
    %200 = arith.index_cast %196 : i32 to index
    %c0_56 = arith.constant 0 : index
    %201 = vector.load %arg13[%200, %c0_56] : memref<64x256xf32, #tpu.memory_space<vmem>>, vector<8x256xf32>
    %202 = arith.index_cast %199 : i32 to index
    %c0_57 = arith.constant 0 : index
    %203 = vector.load %arg13[%202, %c0_57] : memref<64x256xf32, #tpu.memory_space<vmem>>, vector<8x256xf32>
    %204 = arith.select %20, %201, %203 : vector<8x256xi1>, vector<8x256xf32>
    %cst_58 = arith.constant dense<0.000000e+00> : vector<8x256xf32>
    %205 = tpu.matmul %188, %28, %cst_58 {dimension_numbers = #tpu.dot_dimension_numbers<[1], [0], [0], [1], [0, 0, 1, 1], [], []>} : vector<8x64xf32>, vector<64x256xf32>, vector<8x256xf32> -> vector<8x256xf32>
    %206 = arith.addf %204, %205 : vector<8x256xf32>
    %207 = arith.negf %206 : vector<8x256xf32>
    %208 = math.exp %207 : vector<8x256xf32>
    %cst_59 = arith.constant 1.000000e+00 : f32
    %209 = vector.broadcast %cst_59 : f32 to vector<8x256xf32>
    %210 = arith.addf %209, %208 : vector<8x256xf32>
    %211 = arith.divf %209, %210 : vector<8x256xf32>
    %212 = vector.extract_strided_slice %206 {offsets = [0, 128], sizes = [8, 64], strides = [1, 1]} : vector<8x256xf32> to vector<8x64xf32>
    %213 = math.tanh %212 : vector<8x64xf32>
    %214 = vector.extract_strided_slice %211 {offsets = [0, 64], sizes = [8, 64], strides = [1, 1]} : vector<8x256xf32> to vector<8x64xf32>
    %215 = arith.mulf %214, %185 : vector<8x64xf32>
    %216 = vector.extract_strided_slice %211 {offsets = [0, 0], sizes = [8, 64], strides = [1, 1]} : vector<8x256xf32> to vector<8x64xf32>
    %217 = arith.mulf %216, %213 : vector<8x64xf32>
    %218 = arith.addf %215, %217 : vector<8x64xf32>
    %219 = vector.extract_strided_slice %211 {offsets = [0, 192], sizes = [8, 64], strides = [1, 1]} : vector<8x256xf32> to vector<8x64xf32>
    %220 = math.tanh %218 : vector<8x64xf32>
    %221 = arith.mulf %219, %220 : vector<8x64xf32>
    %222 = vector.extract_strided_slice %221 {offsets = [0, 0], sizes = [8, 32], strides = [1, 1]} : vector<8x64xf32> to vector<8x32xf32>
    %223 = arith.index_cast %196 : i32 to index
    %c0_60 = arith.constant 0 : index
    %224 = vector.load %arg14[%223, %c0_60] : memref<64x32xf32, #tpu.memory_space<vmem>>, vector<8x32xf32>
    tpu.vector_store %arg14[%223, %c0_60], %222 {strides = array<i32>} : memref<64x32xf32, #tpu.memory_space<vmem>>, vector<8x32xf32>,
    %225 = vector.extract_strided_slice %221 {offsets = [0, 32], sizes = [8, 32], strides = [1, 1]} : vector<8x64xf32> to vector<8x32xf32>
    %226 = arith.index_cast %199 : i32 to index
    %c0_61 = arith.constant 0 : index
    %227 = vector.load %arg15[%226, %c0_61] : memref<64x32xf32, #tpu.memory_space<vmem>>, vector<8x32xf32>
    tpu.vector_store %arg15[%226, %c0_61], %225 {strides = array<i32>} : memref<64x32xf32, #tpu.memory_space<vmem>>, vector<8x32xf32>,
    %c6_i32 = arith.constant 6 : i32
    %c8_i32_62 = arith.constant 8 : i32
    %228 = arith.muli %c6_i32, %c8_i32_62 : i32
    %229 = tpu.assume_multiple %228, 8 : i32
    %c7_i32_63 = arith.constant 7 : i32
    %230 = arith.subi %c7_i32_63, %c6_i32 : i32
    %c8_i32_64 = arith.constant 8 : i32
    %231 = arith.muli %230, %c8_i32_64 : i32
    %232 = tpu.assume_multiple %231, 8 : i32
    %233 = arith.index_cast %229 : i32 to index
    %c0_65 = arith.constant 0 : index
    %234 = vector.load %arg13[%233, %c0_65] : memref<64x256xf32, #tpu.memory_space<vmem>>, vector<8x256xf32>
    %235 = arith.index_cast %232 : i32 to index
    %c0_66 = arith.constant 0 : index
    %236 = vector.load %arg13[%235, %c0_66] : memref<64x256xf32, #tpu.memory_space<vmem>>, vector<8x256xf32>
    %237 = arith.select %20, %234, %236 : vector<8x256xi1>, vector<8x256xf32>
    %cst_67 = arith.constant dense<0.000000e+00> : vector<8x256xf32>
    %238 = tpu.matmul %221, %28, %cst_67 {dimension_numbers = #tpu.dot_dimension_numbers<[1], [0], [0], [1], [0, 0, 1, 1], [], []>} : vector<8x64xf32>, vector<64x256xf32>, vector<8x256xf32> -> vector<8x256xf32>
    %239 = arith.addf %237, %238 : vector<8x256xf32>
    %240 = arith.negf %239 : vector<8x256xf32>
    %241 = math.exp %240 : vector<8x256xf32>
    %cst_68 = arith.constant 1.000000e+00 : f32
    %242 = vector.broadcast %cst_68 : f32 to vector<8x256xf32>
    %243 = arith.addf %242, %241 : vector<8x256xf32>
    %244 = arith.divf %242, %243 : vector<8x256xf32>
    %245 = vector.extract_strided_slice %239 {offsets = [0, 128], sizes = [8, 64], strides = [1, 1]} : vector<8x256xf32> to vector<8x64xf32>
    %246 = math.tanh %245 : vector<8x64xf32>
    %247 = vector.extract_strided_slice %244 {offsets = [0, 64], sizes = [8, 64], strides = [1, 1]} : vector<8x256xf32> to vector<8x64xf32>
    %248 = arith.mulf %247, %218 : vector<8x64xf32>
    %249 = vector.extract_strided_slice %244 {offsets = [0, 0], sizes = [8, 64], strides = [1, 1]} : vector<8x256xf32> to vector<8x64xf32>
    %250 = arith.mulf %249, %246 : vector<8x64xf32>
    %251 = arith.addf %248, %250 : vector<8x64xf32>
    %252 = vector.extract_strided_slice %244 {offsets = [0, 192], sizes = [8, 64], strides = [1, 1]} : vector<8x256xf32> to vector<8x64xf32>
    %253 = math.tanh %251 : vector<8x64xf32>
    %254 = arith.mulf %252, %253 : vector<8x64xf32>
    %255 = vector.extract_strided_slice %254 {offsets = [0, 0], sizes = [8, 32], strides = [1, 1]} : vector<8x64xf32> to vector<8x32xf32>
    %256 = arith.index_cast %229 : i32 to index
    %c0_69 = arith.constant 0 : index
    %257 = vector.load %arg14[%256, %c0_69] : memref<64x32xf32, #tpu.memory_space<vmem>>, vector<8x32xf32>
    tpu.vector_store %arg14[%256, %c0_69], %255 {strides = array<i32>} : memref<64x32xf32, #tpu.memory_space<vmem>>, vector<8x32xf32>,
    %258 = vector.extract_strided_slice %254 {offsets = [0, 32], sizes = [8, 32], strides = [1, 1]} : vector<8x64xf32> to vector<8x32xf32>
    %259 = arith.index_cast %232 : i32 to index
    %c0_70 = arith.constant 0 : index
    %260 = vector.load %arg15[%259, %c0_70] : memref<64x32xf32, #tpu.memory_space<vmem>>, vector<8x32xf32>
    tpu.vector_store %arg15[%259, %c0_70], %258 {strides = array<i32>} : memref<64x32xf32, #tpu.memory_space<vmem>>, vector<8x32xf32>,
    %c7_i32_71 = arith.constant 7 : i32
    %c8_i32_72 = arith.constant 8 : i32
    %261 = arith.muli %c7_i32_71, %c8_i32_72 : i32
    %262 = tpu.assume_multiple %261, 8 : i32
    %c7_i32_73 = arith.constant 7 : i32
    %263 = arith.subi %c7_i32_73, %c7_i32_71 : i32
    %c8_i32_74 = arith.constant 8 : i32
    %264 = arith.muli %263, %c8_i32_74 : i32
    %265 = tpu.assume_multiple %264, 8 : i32
    %266 = arith.index_cast %262 : i32 to index
    %c0_75 = arith.constant 0 : index
    %267 = vector.load %arg13[%266, %c0_75] : memref<64x256xf32, #tpu.memory_space<vmem>>, vector<8x256xf32>
    %268 = arith.index_cast %265 : i32 to index
    %c0_76 = arith.constant 0 : index
    %269 = vector.load %arg13[%268, %c0_76] : memref<64x256xf32, #tpu.memory_space<vmem>>, vector<8x256xf32>
    %270 = arith.select %20, %267, %269 : vector<8x256xi1>, vector<8x256xf32>
    %cst_77 = arith.constant dense<0.000000e+00> : vector<8x256xf32>
    %271 = tpu.matmul %254, %28, %cst_77 {dimension_numbers = #tpu.dot_dimension_numbers<[1], [0], [0], [1], [0, 0, 1, 1], [], []>} : vector<8x64xf32>, vector<64x256xf32>, vector<8x256xf32> -> vector<8x256xf32>
    %272 = arith.addf %270, %271 : vector<8x256xf32>
    %273 = arith.negf %272 : vector<8x256xf32>
    %274 = math.exp %273 : vector<8x256xf32>
    %cst_78 = arith.constant 1.000000e+00 : f32
    %275 = vector.broadcast %cst_78 : f32 to vector<8x256xf32>
    %276 = arith.addf %275, %274 : vector<8x256xf32>
    %277 = arith.divf %275, %276 : vector<8x256xf32>
    %278 = vector.extract_strided_slice %272 {offsets = [0, 128], sizes = [8, 64], strides = [1, 1]} : vector<8x256xf32> to vector<8x64xf32>
    %279 = math.tanh %278 : vector<8x64xf32>
    %280 = vector.extract_strided_slice %277 {offsets = [0, 64], sizes = [8, 64], strides = [1, 1]} : vector<8x256xf32> to vector<8x64xf32>
    %281 = arith.mulf %280, %251 : vector<8x64xf32>
    %282 = vector.extract_strided_slice %277 {offsets = [0, 0], sizes = [8, 64], strides = [1, 1]} : vector<8x256xf32> to vector<8x64xf32>
    %283 = arith.mulf %282, %279 : vector<8x64xf32>
    %284 = arith.addf %281, %283 : vector<8x64xf32>
    %285 = vector.extract_strided_slice %277 {offsets = [0, 192], sizes = [8, 64], strides = [1, 1]} : vector<8x256xf32> to vector<8x64xf32>
    %286 = math.tanh %284 : vector<8x64xf32>
    %287 = arith.mulf %285, %286 : vector<8x64xf32>
    %288 = vector.extract_strided_slice %287 {offsets = [0, 0], sizes = [8, 32], strides = [1, 1]} : vector<8x64xf32> to vector<8x32xf32>
    %289 = arith.index_cast %262 : i32 to index
    %c0_79 = arith.constant 0 : index
    %290 = vector.load %arg14[%289, %c0_79] : memref<64x32xf32, #tpu.memory_space<vmem>>, vector<8x32xf32>
    tpu.vector_store %arg14[%289, %c0_79], %288 {strides = array<i32>} : memref<64x32xf32, #tpu.memory_space<vmem>>, vector<8x32xf32>,
    %291 = vector.extract_strided_slice %287 {offsets = [0, 32], sizes = [8, 32], strides = [1, 1]} : vector<8x64xf32> to vector<8x32xf32>
    %292 = arith.index_cast %265 : i32 to index
    %c0_80 = arith.constant 0 : index
    %293 = vector.load %arg15[%292, %c0_80] : memref<64x32xf32, #tpu.memory_space<vmem>>, vector<8x32xf32>
    tpu.vector_store %arg15[%292, %c0_80], %291 {strides = array<i32>} : memref<64x32xf32, #tpu.memory_space<vmem>>, vector<8x32xf32>,
    %c8_i32_81 = arith.constant 8 : i32
    %c0_82 = arith.constant 0 : index
    %c0_83 = arith.constant 0 : index
    %294 = vector.load %arg14[%c0_82, %c0_83] : memref<64x32xf32, #tpu.memory_space<vmem>>, vector<64x32xf32>
    %c0_84 = arith.constant 0 : index
    %c0_85 = arith.constant 0 : index
    %c0_86 = arith.constant 0 : index
    %295 = vector.load %arg5[%c0_84, %c0_85, %c0_86] : memref<2x32x256xf32, #tpu.memory_space<vmem>>, vector<1x32x256xf32>
    %296 = vector.shape_cast %295 : vector<1x32x256xf32> to vector<32x256xf32>
    %cst_87 = arith.constant dense<0.000000e+00> : vector<64x256xf32>
    %297 = tpu.matmul %294, %296, %cst_87 {dimension_numbers = #tpu.dot_dimension_numbers<[1], [0], [0], [1], [0, 0, 1, 1], [], []>} : vector<64x32xf32>, vector<32x256xf32>, vector<64x256xf32> -> vector<64x256xf32>
    %c0_88 = arith.constant 0 : index
    %c0_89 = arith.constant 0 : index
    %298 = vector.load %arg15[%c0_88, %c0_89] : memref<64x32xf32, #tpu.memory_space<vmem>>, vector<64x32xf32>
    %c1 = arith.constant 1 : index
    %c0_90 = arith.constant 0 : index
    %c0_91 = arith.constant 0 : index
    %299 = vector.load %arg5[%c1, %c0_90, %c0_91] : memref<2x32x256xf32, #tpu.memory_space<vmem>>, vector<1x32x256xf32>
    %300 = vector.shape_cast %299 : vector<1x32x256xf32> to vector<32x256xf32>
    %cst_92 = arith.constant dense<0.000000e+00> : vector<64x256xf32>
    %301 = tpu.matmul %298, %300, %cst_92 {dimension_numbers = #tpu.dot_dimension_numbers<[1], [0], [0], [1], [0, 0, 1, 1], [], []>} : vector<64x32xf32>, vector<32x256xf32>, vector<64x256xf32> -> vector<64x256xf32>
    %302 = arith.addf %297, %301 : vector<64x256xf32>
    %c0_93 = arith.constant 0 : index
    %c0_94 = arith.constant 0 : index
    %303 = vector.load %arg7[%c0_93, %c0_94] : memref<1x256xf32, #tpu.memory_space<vmem>>, vector<1x256xf32>
    %304 = vector.broadcast %303 : vector<1x256xf32> to vector<64x256xf32>
    %305 = arith.addf %302, %304 : vector<64x256xf32>
    %c0_95 = arith.constant 0 : index
    %c0_96 = arith.constant 0 : index
    %306 = vector.load %arg13[%c0_95, %c0_96] : memref<64x256xf32, #tpu.memory_space<vmem>>, vector<64x256xf32>
    tpu.vector_store %arg13[%c0_95, %c0_96], %305 {strides = array<i32>} : memref<64x256xf32, #tpu.memory_space<vmem>>, vector<64x256xf32>,
    %c0_97 = arith.constant 0 : index
    %c0_98 = arith.constant 0 : index
    %307 = vector.load %arg6[%c0_97, %c0_98] : memref<64x256xf32, #tpu.memory_space<vmem>>, vector<64x256xf32>
    %cst_99 = arith.constant 0.000000e+00 : f32
    %308 = vector.broadcast %cst_99 : f32 to vector<8x64xf32>
    %c0_i32_100 = arith.constant 0 : i32
    %c8_i32_101 = arith.constant 8 : i32
    %309 = arith.muli %c0_i32_100, %c8_i32_101 : i32
    %310 = tpu.assume_multiple %309, 8 : i32
    %c7_i32_102 = arith.constant 7 : i32
    %311 = arith.subi %c7_i32_102, %c0_i32_100 : i32
    %c8_i32_103 = arith.constant 8 : i32
    %312 = arith.muli %311, %c8_i32_103 : i32
    %313 = tpu.assume_multiple %312, 8 : i32
    %314 = arith.index_cast %310 : i32 to index
    %c0_104 = arith.constant 0 : index
    %315 = vector.load %arg13[%314, %c0_104] : memref<64x256xf32, #tpu.memory_space<vmem>>, vector<8x256xf32>
    %316 = arith.index_cast %313 : i32 to index
    %c0_105 = arith.constant 0 : index
    %317 = vector.load %arg13[%316, %c0_105] : memref<64x256xf32, #tpu.memory_space<vmem>>, vector<8x256xf32>
    %318 = arith.select %20, %315, %317 : vector<8x256xi1>, vector<8x256xf32>
    %cst_106 = arith.constant dense<0.000000e+00> : vector<8x256xf32>
    %319 = tpu.matmul %308, %307, %cst_106 {dimension_numbers = #tpu.dot_dimension_numbers<[1], [0], [0], [1], [0, 0, 1, 1], [], []>} : vector<8x64xf32>, vector<64x256xf32>, vector<8x256xf32> -> vector<8x256xf32>
    %320 = arith.addf %318, %319 : vector<8x256xf32>
    %321 = arith.negf %320 : vector<8x256xf32>
    %322 = math.exp %321 : vector<8x256xf32>
    %cst_107 = arith.constant 1.000000e+00 : f32
    %323 = vector.broadcast %cst_107 : f32 to vector<8x256xf32>
    %324 = arith.addf %323, %322 : vector<8x256xf32>
    %325 = arith.divf %323, %324 : vector<8x256xf32>
    %326 = vector.extract_strided_slice %320 {offsets = [0, 128], sizes = [8, 64], strides = [1, 1]} : vector<8x256xf32> to vector<8x64xf32>
    %327 = math.tanh %326 : vector<8x64xf32>
    %328 = vector.extract_strided_slice %325 {offsets = [0, 64], sizes = [8, 64], strides = [1, 1]} : vector<8x256xf32> to vector<8x64xf32>
    %329 = arith.mulf %328, %308 : vector<8x64xf32>
    %330 = vector.extract_strided_slice %325 {offsets = [0, 0], sizes = [8, 64], strides = [1, 1]} : vector<8x256xf32> to vector<8x64xf32>
    %331 = arith.mulf %330, %327 : vector<8x64xf32>
    %332 = arith.addf %329, %331 : vector<8x64xf32>
    %333 = vector.extract_strided_slice %325 {offsets = [0, 192], sizes = [8, 64], strides = [1, 1]} : vector<8x256xf32> to vector<8x64xf32>
    %334 = math.tanh %332 : vector<8x64xf32>
    %335 = arith.mulf %333, %334 : vector<8x64xf32>
    %336 = vector.extract_strided_slice %335 {offsets = [0, 0], sizes = [8, 32], strides = [1, 1]} : vector<8x64xf32> to vector<8x32xf32>
    %337 = arith.index_cast %310 : i32 to index
    %c0_108 = arith.constant 0 : index
    %338 = vector.load %arg14[%337, %c0_108] : memref<64x32xf32, #tpu.memory_space<vmem>>, vector<8x32xf32>
    tpu.vector_store %arg14[%337, %c0_108], %336 {strides = array<i32>} : memref<64x32xf32, #tpu.memory_space<vmem>>, vector<8x32xf32>,
    %339 = vector.extract_strided_slice %335 {offsets = [0, 32], sizes = [8, 32], strides = [1, 1]} : vector<8x64xf32> to vector<8x32xf32>
    %340 = arith.index_cast %313 : i32 to index
    %c0_109 = arith.constant 0 : index
    %341 = vector.load %arg15[%340, %c0_109] : memref<64x32xf32, #tpu.memory_space<vmem>>, vector<8x32xf32>
    tpu.vector_store %arg15[%340, %c0_109], %339 {strides = array<i32>} : memref<64x32xf32, #tpu.memory_space<vmem>>, vector<8x32xf32>,
    %c1_i32_110 = arith.constant 1 : i32
    %c8_i32_111 = arith.constant 8 : i32
    %342 = arith.muli %c1_i32_110, %c8_i32_111 : i32
    %343 = tpu.assume_multiple %342, 8 : i32
    %c7_i32_112 = arith.constant 7 : i32
    %344 = arith.subi %c7_i32_112, %c1_i32_110 : i32
    %c8_i32_113 = arith.constant 8 : i32
    %345 = arith.muli %344, %c8_i32_113 : i32
    %346 = tpu.assume_multiple %345, 8 : i32
    %347 = arith.index_cast %343 : i32 to index
    %c0_114 = arith.constant 0 : index
    %348 = vector.load %arg13[%347, %c0_114] : memref<64x256xf32, #tpu.memory_space<vmem>>, vector<8x256xf32>
    %349 = arith.index_cast %346 : i32 to index
    %c0_115 = arith.constant 0 : index
    %350 = vector.load %arg13[%349, %c0_115] : memref<64x256xf32, #tpu.memory_space<vmem>>, vector<8x256xf32>
    %351 = arith.select %20, %348, %350 : vector<8x256xi1>, vector<8x256xf32>
    %cst_116 = arith.constant dense<0.000000e+00> : vector<8x256xf32>
    %352 = tpu.matmul %335, %307, %cst_116 {dimension_numbers = #tpu.dot_dimension_numbers<[1], [0], [0], [1], [0, 0, 1, 1], [], []>} : vector<8x64xf32>, vector<64x256xf32>, vector<8x256xf32> -> vector<8x256xf32>
    %353 = arith.addf %351, %352 : vector<8x256xf32>
    %354 = arith.negf %353 : vector<8x256xf32>
    %355 = math.exp %354 : vector<8x256xf32>
    %cst_117 = arith.constant 1.000000e+00 : f32
    %356 = vector.broadcast %cst_117 : f32 to vector<8x256xf32>
    %357 = arith.addf %356, %355 : vector<8x256xf32>
    %358 = arith.divf %356, %357 : vector<8x256xf32>
    %359 = vector.extract_strided_slice %353 {offsets = [0, 128], sizes = [8, 64], strides = [1, 1]} : vector<8x256xf32> to vector<8x64xf32>
    %360 = math.tanh %359 : vector<8x64xf32>
    %361 = vector.extract_strided_slice %358 {offsets = [0, 64], sizes = [8, 64], strides = [1, 1]} : vector<8x256xf32> to vector<8x64xf32>
    %362 = arith.mulf %361, %332 : vector<8x64xf32>
    %363 = vector.extract_strided_slice %358 {offsets = [0, 0], sizes = [8, 64], strides = [1, 1]} : vector<8x256xf32> to vector<8x64xf32>
    %364 = arith.mulf %363, %360 : vector<8x64xf32>
    %365 = arith.addf %362, %364 : vector<8x64xf32>
    %366 = vector.extract_strided_slice %358 {offsets = [0, 192], sizes = [8, 64], strides = [1, 1]} : vector<8x256xf32> to vector<8x64xf32>
    %367 = math.tanh %365 : vector<8x64xf32>
    %368 = arith.mulf %366, %367 : vector<8x64xf32>
    %369 = vector.extract_strided_slice %368 {offsets = [0, 0], sizes = [8, 32], strides = [1, 1]} : vector<8x64xf32> to vector<8x32xf32>
    %370 = arith.index_cast %343 : i32 to index
    %c0_118 = arith.constant 0 : index
    %371 = vector.load %arg14[%370, %c0_118] : memref<64x32xf32, #tpu.memory_space<vmem>>, vector<8x32xf32>
    tpu.vector_store %arg14[%370, %c0_118], %369 {strides = array<i32>} : memref<64x32xf32, #tpu.memory_space<vmem>>, vector<8x32xf32>,
    %372 = vector.extract_strided_slice %368 {offsets = [0, 32], sizes = [8, 32], strides = [1, 1]} : vector<8x64xf32> to vector<8x32xf32>
    %373 = arith.index_cast %346 : i32 to index
    %c0_119 = arith.constant 0 : index
    %374 = vector.load %arg15[%373, %c0_119] : memref<64x32xf32, #tpu.memory_space<vmem>>, vector<8x32xf32>
    tpu.vector_store %arg15[%373, %c0_119], %372 {strides = array<i32>} : memref<64x32xf32, #tpu.memory_space<vmem>>, vector<8x32xf32>,
    %c2_i32_120 = arith.constant 2 : i32
    %c8_i32_121 = arith.constant 8 : i32
    %375 = arith.muli %c2_i32_120, %c8_i32_121 : i32
    %376 = tpu.assume_multiple %375, 8 : i32
    %c7_i32_122 = arith.constant 7 : i32
    %377 = arith.subi %c7_i32_122, %c2_i32_120 : i32
    %c8_i32_123 = arith.constant 8 : i32
    %378 = arith.muli %377, %c8_i32_123 : i32
    %379 = tpu.assume_multiple %378, 8 : i32
    %380 = arith.index_cast %376 : i32 to index
    %c0_124 = arith.constant 0 : index
    %381 = vector.load %arg13[%380, %c0_124] : memref<64x256xf32, #tpu.memory_space<vmem>>, vector<8x256xf32>
    %382 = arith.index_cast %379 : i32 to index
    %c0_125 = arith.constant 0 : index
    %383 = vector.load %arg13[%382, %c0_125] : memref<64x256xf32, #tpu.memory_space<vmem>>, vector<8x256xf32>
    %384 = arith.select %20, %381, %383 : vector<8x256xi1>, vector<8x256xf32>
    %cst_126 = arith.constant dense<0.000000e+00> : vector<8x256xf32>
    %385 = tpu.matmul %368, %307, %cst_126 {dimension_numbers = #tpu.dot_dimension_numbers<[1], [0], [0], [1], [0, 0, 1, 1], [], []>} : vector<8x64xf32>, vector<64x256xf32>, vector<8x256xf32> -> vector<8x256xf32>
    %386 = arith.addf %384, %385 : vector<8x256xf32>
    %387 = arith.negf %386 : vector<8x256xf32>
    %388 = math.exp %387 : vector<8x256xf32>
    %cst_127 = arith.constant 1.000000e+00 : f32
    %389 = vector.broadcast %cst_127 : f32 to vector<8x256xf32>
    %390 = arith.addf %389, %388 : vector<8x256xf32>
    %391 = arith.divf %389, %390 : vector<8x256xf32>
    %392 = vector.extract_strided_slice %386 {offsets = [0, 128], sizes = [8, 64], strides = [1, 1]} : vector<8x256xf32> to vector<8x64xf32>
    %393 = math.tanh %392 : vector<8x64xf32>
    %394 = vector.extract_strided_slice %391 {offsets = [0, 64], sizes = [8, 64], strides = [1, 1]} : vector<8x256xf32> to vector<8x64xf32>
    %395 = arith.mulf %394, %365 : vector<8x64xf32>
    %396 = vector.extract_strided_slice %391 {offsets = [0, 0], sizes = [8, 64], strides = [1, 1]} : vector<8x256xf32> to vector<8x64xf32>
    %397 = arith.mulf %396, %393 : vector<8x64xf32>
    %398 = arith.addf %395, %397 : vector<8x64xf32>
    %399 = vector.extract_strided_slice %391 {offsets = [0, 192], sizes = [8, 64], strides = [1, 1]} : vector<8x256xf32> to vector<8x64xf32>
    %400 = math.tanh %398 : vector<8x64xf32>
    %401 = arith.mulf %399, %400 : vector<8x64xf32>
    %402 = vector.extract_strided_slice %401 {offsets = [0, 0], sizes = [8, 32], strides = [1, 1]} : vector<8x64xf32> to vector<8x32xf32>
    %403 = arith.index_cast %376 : i32 to index
    %c0_128 = arith.constant 0 : index
    %404 = vector.load %arg14[%403, %c0_128] : memref<64x32xf32, #tpu.memory_space<vmem>>, vector<8x32xf32>
    tpu.vector_store %arg14[%403, %c0_128], %402 {strides = array<i32>} : memref<64x32xf32, #tpu.memory_space<vmem>>, vector<8x32xf32>,
    %405 = vector.extract_strided_slice %401 {offsets = [0, 32], sizes = [8, 32], strides = [1, 1]} : vector<8x64xf32> to vector<8x32xf32>
    %406 = arith.index_cast %379 : i32 to index
    %c0_129 = arith.constant 0 : index
    %407 = vector.load %arg15[%406, %c0_129] : memref<64x32xf32, #tpu.memory_space<vmem>>, vector<8x32xf32>
    tpu.vector_store %arg15[%406, %c0_129], %405 {strides = array<i32>} : memref<64x32xf32, #tpu.memory_space<vmem>>, vector<8x32xf32>,
    %c3_i32_130 = arith.constant 3 : i32
    %c8_i32_131 = arith.constant 8 : i32
    %408 = arith.muli %c3_i32_130, %c8_i32_131 : i32
    %409 = tpu.assume_multiple %408, 8 : i32
    %c7_i32_132 = arith.constant 7 : i32
    %410 = arith.subi %c7_i32_132, %c3_i32_130 : i32
    %c8_i32_133 = arith.constant 8 : i32
    %411 = arith.muli %410, %c8_i32_133 : i32
    %412 = tpu.assume_multiple %411, 8 : i32
    %413 = arith.index_cast %409 : i32 to index
    %c0_134 = arith.constant 0 : index
    %414 = vector.load %arg13[%413, %c0_134] : memref<64x256xf32, #tpu.memory_space<vmem>>, vector<8x256xf32>
    %415 = arith.index_cast %412 : i32 to index
    %c0_135 = arith.constant 0 : index
    %416 = vector.load %arg13[%415, %c0_135] : memref<64x256xf32, #tpu.memory_space<vmem>>, vector<8x256xf32>
    %417 = arith.select %20, %414, %416 : vector<8x256xi1>, vector<8x256xf32>
    %cst_136 = arith.constant dense<0.000000e+00> : vector<8x256xf32>
    %418 = tpu.matmul %401, %307, %cst_136 {dimension_numbers = #tpu.dot_dimension_numbers<[1], [0], [0], [1], [0, 0, 1, 1], [], []>} : vector<8x64xf32>, vector<64x256xf32>, vector<8x256xf32> -> vector<8x256xf32>
    %419 = arith.addf %417, %418 : vector<8x256xf32>
    %420 = arith.negf %419 : vector<8x256xf32>
    %421 = math.exp %420 : vector<8x256xf32>
    %cst_137 = arith.constant 1.000000e+00 : f32
    %422 = vector.broadcast %cst_137 : f32 to vector<8x256xf32>
    %423 = arith.addf %422, %421 : vector<8x256xf32>
    %424 = arith.divf %422, %423 : vector<8x256xf32>
    %425 = vector.extract_strided_slice %419 {offsets = [0, 128], sizes = [8, 64], strides = [1, 1]} : vector<8x256xf32> to vector<8x64xf32>
    %426 = math.tanh %425 : vector<8x64xf32>
    %427 = vector.extract_strided_slice %424 {offsets = [0, 64], sizes = [8, 64], strides = [1, 1]} : vector<8x256xf32> to vector<8x64xf32>
    %428 = arith.mulf %427, %398 : vector<8x64xf32>
    %429 = vector.extract_strided_slice %424 {offsets = [0, 0], sizes = [8, 64], strides = [1, 1]} : vector<8x256xf32> to vector<8x64xf32>
    %430 = arith.mulf %429, %426 : vector<8x64xf32>
    %431 = arith.addf %428, %430 : vector<8x64xf32>
    %432 = vector.extract_strided_slice %424 {offsets = [0, 192], sizes = [8, 64], strides = [1, 1]} : vector<8x256xf32> to vector<8x64xf32>
    %433 = math.tanh %431 : vector<8x64xf32>
    %434 = arith.mulf %432, %433 : vector<8x64xf32>
    %435 = vector.extract_strided_slice %434 {offsets = [0, 0], sizes = [8, 32], strides = [1, 1]} : vector<8x64xf32> to vector<8x32xf32>
    %436 = arith.index_cast %409 : i32 to index
    %c0_138 = arith.constant 0 : index
    %437 = vector.load %arg14[%436, %c0_138] : memref<64x32xf32, #tpu.memory_space<vmem>>, vector<8x32xf32>
    tpu.vector_store %arg14[%436, %c0_138], %435 {strides = array<i32>} : memref<64x32xf32, #tpu.memory_space<vmem>>, vector<8x32xf32>,
    %438 = vector.extract_strided_slice %434 {offsets = [0, 32], sizes = [8, 32], strides = [1, 1]} : vector<8x64xf32> to vector<8x32xf32>
    %439 = arith.index_cast %412 : i32 to index
    %c0_139 = arith.constant 0 : index
    %440 = vector.load %arg15[%439, %c0_139] : memref<64x32xf32, #tpu.memory_space<vmem>>, vector<8x32xf32>
    tpu.vector_store %arg15[%439, %c0_139], %438 {strides = array<i32>} : memref<64x32xf32, #tpu.memory_space<vmem>>, vector<8x32xf32>,
    %c4_i32_140 = arith.constant 4 : i32
    %c8_i32_141 = arith.constant 8 : i32
    %441 = arith.muli %c4_i32_140, %c8_i32_141 : i32
    %442 = tpu.assume_multiple %441, 8 : i32
    %c7_i32_142 = arith.constant 7 : i32
    %443 = arith.subi %c7_i32_142, %c4_i32_140 : i32
    %c8_i32_143 = arith.constant 8 : i32
    %444 = arith.muli %443, %c8_i32_143 : i32
    %445 = tpu.assume_multiple %444, 8 : i32
    %446 = arith.index_cast %442 : i32 to index
    %c0_144 = arith.constant 0 : index
    %447 = vector.load %arg13[%446, %c0_144] : memref<64x256xf32, #tpu.memory_space<vmem>>, vector<8x256xf32>
    %448 = arith.index_cast %445 : i32 to index
    %c0_145 = arith.constant 0 : index
    %449 = vector.load %arg13[%448, %c0_145] : memref<64x256xf32, #tpu.memory_space<vmem>>, vector<8x256xf32>
    %450 = arith.select %20, %447, %449 : vector<8x256xi1>, vector<8x256xf32>
    %cst_146 = arith.constant dense<0.000000e+00> : vector<8x256xf32>
    %451 = tpu.matmul %434, %307, %cst_146 {dimension_numbers = #tpu.dot_dimension_numbers<[1], [0], [0], [1], [0, 0, 1, 1], [], []>} : vector<8x64xf32>, vector<64x256xf32>, vector<8x256xf32> -> vector<8x256xf32>
    %452 = arith.addf %450, %451 : vector<8x256xf32>
    %453 = arith.negf %452 : vector<8x256xf32>
    %454 = math.exp %453 : vector<8x256xf32>
    %cst_147 = arith.constant 1.000000e+00 : f32
    %455 = vector.broadcast %cst_147 : f32 to vector<8x256xf32>
    %456 = arith.addf %455, %454 : vector<8x256xf32>
    %457 = arith.divf %455, %456 : vector<8x256xf32>
    %458 = vector.extract_strided_slice %452 {offsets = [0, 128], sizes = [8, 64], strides = [1, 1]} : vector<8x256xf32> to vector<8x64xf32>
    %459 = math.tanh %458 : vector<8x64xf32>
    %460 = vector.extract_strided_slice %457 {offsets = [0, 64], sizes = [8, 64], strides = [1, 1]} : vector<8x256xf32> to vector<8x64xf32>
    %461 = arith.mulf %460, %431 : vector<8x64xf32>
    %462 = vector.extract_strided_slice %457 {offsets = [0, 0], sizes = [8, 64], strides = [1, 1]} : vector<8x256xf32> to vector<8x64xf32>
    %463 = arith.mulf %462, %459 : vector<8x64xf32>
    %464 = arith.addf %461, %463 : vector<8x64xf32>
    %465 = vector.extract_strided_slice %457 {offsets = [0, 192], sizes = [8, 64], strides = [1, 1]} : vector<8x256xf32> to vector<8x64xf32>
    %466 = math.tanh %464 : vector<8x64xf32>
    %467 = arith.mulf %465, %466 : vector<8x64xf32>
    %468 = vector.extract_strided_slice %467 {offsets = [0, 0], sizes = [8, 32], strides = [1, 1]} : vector<8x64xf32> to vector<8x32xf32>
    %469 = arith.index_cast %442 : i32 to index
    %c0_148 = arith.constant 0 : index
    %470 = vector.load %arg14[%469, %c0_148] : memref<64x32xf32, #tpu.memory_space<vmem>>, vector<8x32xf32>
    tpu.vector_store %arg14[%469, %c0_148], %468 {strides = array<i32>} : memref<64x32xf32, #tpu.memory_space<vmem>>, vector<8x32xf32>,
    %471 = vector.extract_strided_slice %467 {offsets = [0, 32], sizes = [8, 32], strides = [1, 1]} : vector<8x64xf32> to vector<8x32xf32>
    %472 = arith.index_cast %445 : i32 to index
    %c0_149 = arith.constant 0 : index
    %473 = vector.load %arg15[%472, %c0_149] : memref<64x32xf32, #tpu.memory_space<vmem>>, vector<8x32xf32>
    tpu.vector_store %arg15[%472, %c0_149], %471 {strides = array<i32>} : memref<64x32xf32, #tpu.memory_space<vmem>>, vector<8x32xf32>,
    %c5_i32_150 = arith.constant 5 : i32
    %c8_i32_151 = arith.constant 8 : i32
    %474 = arith.muli %c5_i32_150, %c8_i32_151 : i32
    %475 = tpu.assume_multiple %474, 8 : i32
    %c7_i32_152 = arith.constant 7 : i32
    %476 = arith.subi %c7_i32_152, %c5_i32_150 : i32
    %c8_i32_153 = arith.constant 8 : i32
    %477 = arith.muli %476, %c8_i32_153 : i32
    %478 = tpu.assume_multiple %477, 8 : i32
    %479 = arith.index_cast %475 : i32 to index
    %c0_154 = arith.constant 0 : index
    %480 = vector.load %arg13[%479, %c0_154] : memref<64x256xf32, #tpu.memory_space<vmem>>, vector<8x256xf32>
    %481 = arith.index_cast %478 : i32 to index
    %c0_155 = arith.constant 0 : index
    %482 = vector.load %arg13[%481, %c0_155] : memref<64x256xf32, #tpu.memory_space<vmem>>, vector<8x256xf32>
    %483 = arith.select %20, %480, %482 : vector<8x256xi1>, vector<8x256xf32>
    %cst_156 = arith.constant dense<0.000000e+00> : vector<8x256xf32>
    %484 = tpu.matmul %467, %307, %cst_156 {dimension_numbers = #tpu.dot_dimension_numbers<[1], [0], [0], [1], [0, 0, 1, 1], [], []>} : vector<8x64xf32>, vector<64x256xf32>, vector<8x256xf32> -> vector<8x256xf32>
    %485 = arith.addf %483, %484 : vector<8x256xf32>
    %486 = arith.negf %485 : vector<8x256xf32>
    %487 = math.exp %486 : vector<8x256xf32>
    %cst_157 = arith.constant 1.000000e+00 : f32
    %488 = vector.broadcast %cst_157 : f32 to vector<8x256xf32>
    %489 = arith.addf %488, %487 : vector<8x256xf32>
    %490 = arith.divf %488, %489 : vector<8x256xf32>
    %491 = vector.extract_strided_slice %485 {offsets = [0, 128], sizes = [8, 64], strides = [1, 1]} : vector<8x256xf32> to vector<8x64xf32>
    %492 = math.tanh %491 : vector<8x64xf32>
    %493 = vector.extract_strided_slice %490 {offsets = [0, 64], sizes = [8, 64], strides = [1, 1]} : vector<8x256xf32> to vector<8x64xf32>
    %494 = arith.mulf %493, %464 : vector<8x64xf32>
    %495 = vector.extract_strided_slice %490 {offsets = [0, 0], sizes = [8, 64], strides = [1, 1]} : vector<8x256xf32> to vector<8x64xf32>
    %496 = arith.mulf %495, %492 : vector<8x64xf32>
    %497 = arith.addf %494, %496 : vector<8x64xf32>
    %498 = vector.extract_strided_slice %490 {offsets = [0, 192], sizes = [8, 64], strides = [1, 1]} : vector<8x256xf32> to vector<8x64xf32>
    %499 = math.tanh %497 : vector<8x64xf32>
    %500 = arith.mulf %498, %499 : vector<8x64xf32>
    %501 = vector.extract_strided_slice %500 {offsets = [0, 0], sizes = [8, 32], strides = [1, 1]} : vector<8x64xf32> to vector<8x32xf32>
    %502 = arith.index_cast %475 : i32 to index
    %c0_158 = arith.constant 0 : index
    %503 = vector.load %arg14[%502, %c0_158] : memref<64x32xf32, #tpu.memory_space<vmem>>, vector<8x32xf32>
    tpu.vector_store %arg14[%502, %c0_158], %501 {strides = array<i32>} : memref<64x32xf32, #tpu.memory_space<vmem>>, vector<8x32xf32>,
    %504 = vector.extract_strided_slice %500 {offsets = [0, 32], sizes = [8, 32], strides = [1, 1]} : vector<8x64xf32> to vector<8x32xf32>
    %505 = arith.index_cast %478 : i32 to index
    %c0_159 = arith.constant 0 : index
    %506 = vector.load %arg15[%505, %c0_159] : memref<64x32xf32, #tpu.memory_space<vmem>>, vector<8x32xf32>
    tpu.vector_store %arg15[%505, %c0_159], %504 {strides = array<i32>} : memref<64x32xf32, #tpu.memory_space<vmem>>, vector<8x32xf32>,
    %c6_i32_160 = arith.constant 6 : i32
    %c8_i32_161 = arith.constant 8 : i32
    %507 = arith.muli %c6_i32_160, %c8_i32_161 : i32
    %508 = tpu.assume_multiple %507, 8 : i32
    %c7_i32_162 = arith.constant 7 : i32
    %509 = arith.subi %c7_i32_162, %c6_i32_160 : i32
    %c8_i32_163 = arith.constant 8 : i32
    %510 = arith.muli %509, %c8_i32_163 : i32
    %511 = tpu.assume_multiple %510, 8 : i32
    %512 = arith.index_cast %508 : i32 to index
    %c0_164 = arith.constant 0 : index
    %513 = vector.load %arg13[%512, %c0_164] : memref<64x256xf32, #tpu.memory_space<vmem>>, vector<8x256xf32>
    %514 = arith.index_cast %511 : i32 to index
    %c0_165 = arith.constant 0 : index
    %515 = vector.load %arg13[%514, %c0_165] : memref<64x256xf32, #tpu.memory_space<vmem>>, vector<8x256xf32>
    %516 = arith.select %20, %513, %515 : vector<8x256xi1>, vector<8x256xf32>
    %cst_166 = arith.constant dense<0.000000e+00> : vector<8x256xf32>
    %517 = tpu.matmul %500, %307, %cst_166 {dimension_numbers = #tpu.dot_dimension_numbers<[1], [0], [0], [1], [0, 0, 1, 1], [], []>} : vector<8x64xf32>, vector<64x256xf32>, vector<8x256xf32> -> vector<8x256xf32>
    %518 = arith.addf %516, %517 : vector<8x256xf32>
    %519 = arith.negf %518 : vector<8x256xf32>
    %520 = math.exp %519 : vector<8x256xf32>
    %cst_167 = arith.constant 1.000000e+00 : f32
    %521 = vector.broadcast %cst_167 : f32 to vector<8x256xf32>
    %522 = arith.addf %521, %520 : vector<8x256xf32>
    %523 = arith.divf %521, %522 : vector<8x256xf32>
    %524 = vector.extract_strided_slice %518 {offsets = [0, 128], sizes = [8, 64], strides = [1, 1]} : vector<8x256xf32> to vector<8x64xf32>
    %525 = math.tanh %524 : vector<8x64xf32>
    %526 = vector.extract_strided_slice %523 {offsets = [0, 64], sizes = [8, 64], strides = [1, 1]} : vector<8x256xf32> to vector<8x64xf32>
    %527 = arith.mulf %526, %497 : vector<8x64xf32>
    %528 = vector.extract_strided_slice %523 {offsets = [0, 0], sizes = [8, 64], strides = [1, 1]} : vector<8x256xf32> to vector<8x64xf32>
    %529 = arith.mulf %528, %525 : vector<8x64xf32>
    %530 = arith.addf %527, %529 : vector<8x64xf32>
    %531 = vector.extract_strided_slice %523 {offsets = [0, 192], sizes = [8, 64], strides = [1, 1]} : vector<8x256xf32> to vector<8x64xf32>
    %532 = math.tanh %530 : vector<8x64xf32>
    %533 = arith.mulf %531, %532 : vector<8x64xf32>
    %534 = vector.extract_strided_slice %533 {offsets = [0, 0], sizes = [8, 32], strides = [1, 1]} : vector<8x64xf32> to vector<8x32xf32>
    %535 = arith.index_cast %508 : i32 to index
    %c0_168 = arith.constant 0 : index
    %536 = vector.load %arg14[%535, %c0_168] : memref<64x32xf32, #tpu.memory_space<vmem>>, vector<8x32xf32>
    tpu.vector_store %arg14[%535, %c0_168], %534 {strides = array<i32>} : memref<64x32xf32, #tpu.memory_space<vmem>>, vector<8x32xf32>,
    %537 = vector.extract_strided_slice %533 {offsets = [0, 32], sizes = [8, 32], strides = [1, 1]} : vector<8x64xf32> to vector<8x32xf32>
    %538 = arith.index_cast %511 : i32 to index
    %c0_169 = arith.constant 0 : index
    %539 = vector.load %arg15[%538, %c0_169] : memref<64x32xf32, #tpu.memory_space<vmem>>, vector<8x32xf32>
    tpu.vector_store %arg15[%538, %c0_169], %537 {strides = array<i32>} : memref<64x32xf32, #tpu.memory_space<vmem>>, vector<8x32xf32>,
    %c7_i32_170 = arith.constant 7 : i32
    %c8_i32_171 = arith.constant 8 : i32
    %540 = arith.muli %c7_i32_170, %c8_i32_171 : i32
    %541 = tpu.assume_multiple %540, 8 : i32
    %c7_i32_172 = arith.constant 7 : i32
    %542 = arith.subi %c7_i32_172, %c7_i32_170 : i32
    %c8_i32_173 = arith.constant 8 : i32
    %543 = arith.muli %542, %c8_i32_173 : i32
    %544 = tpu.assume_multiple %543, 8 : i32
    %545 = arith.index_cast %541 : i32 to index
    %c0_174 = arith.constant 0 : index
    %546 = vector.load %arg13[%545, %c0_174] : memref<64x256xf32, #tpu.memory_space<vmem>>, vector<8x256xf32>
    %547 = arith.index_cast %544 : i32 to index
    %c0_175 = arith.constant 0 : index
    %548 = vector.load %arg13[%547, %c0_175] : memref<64x256xf32, #tpu.memory_space<vmem>>, vector<8x256xf32>
    %549 = arith.select %20, %546, %548 : vector<8x256xi1>, vector<8x256xf32>
    %cst_176 = arith.constant dense<0.000000e+00> : vector<8x256xf32>
    %550 = tpu.matmul %533, %307, %cst_176 {dimension_numbers = #tpu.dot_dimension_numbers<[1], [0], [0], [1], [0, 0, 1, 1], [], []>} : vector<8x64xf32>, vector<64x256xf32>, vector<8x256xf32> -> vector<8x256xf32>
    %551 = arith.addf %549, %550 : vector<8x256xf32>
    %552 = arith.negf %551 : vector<8x256xf32>
    %553 = math.exp %552 : vector<8x256xf32>
    %cst_177 = arith.constant 1.000000e+00 : f32
    %554 = vector.broadcast %cst_177 : f32 to vector<8x256xf32>
    %555 = arith.addf %554, %553 : vector<8x256xf32>
    %556 = arith.divf %554, %555 : vector<8x256xf32>
    %557 = vector.extract_strided_slice %551 {offsets = [0, 128], sizes = [8, 64], strides = [1, 1]} : vector<8x256xf32> to vector<8x64xf32>
    %558 = math.tanh %557 : vector<8x64xf32>
    %559 = vector.extract_strided_slice %556 {offsets = [0, 64], sizes = [8, 64], strides = [1, 1]} : vector<8x256xf32> to vector<8x64xf32>
    %560 = arith.mulf %559, %530 : vector<8x64xf32>
    %561 = vector.extract_strided_slice %556 {offsets = [0, 0], sizes = [8, 64], strides = [1, 1]} : vector<8x256xf32> to vector<8x64xf32>
    %562 = arith.mulf %561, %558 : vector<8x64xf32>
    %563 = arith.addf %560, %562 : vector<8x64xf32>
    %564 = vector.extract_strided_slice %556 {offsets = [0, 192], sizes = [8, 64], strides = [1, 1]} : vector<8x256xf32> to vector<8x64xf32>
    %565 = math.tanh %563 : vector<8x64xf32>
    %566 = arith.mulf %564, %565 : vector<8x64xf32>
    %567 = vector.extract_strided_slice %566 {offsets = [0, 0], sizes = [8, 32], strides = [1, 1]} : vector<8x64xf32> to vector<8x32xf32>
    %568 = arith.index_cast %541 : i32 to index
    %c0_178 = arith.constant 0 : index
    %569 = vector.load %arg14[%568, %c0_178] : memref<64x32xf32, #tpu.memory_space<vmem>>, vector<8x32xf32>
    tpu.vector_store %arg14[%568, %c0_178], %567 {strides = array<i32>} : memref<64x32xf32, #tpu.memory_space<vmem>>, vector<8x32xf32>,
    %570 = vector.extract_strided_slice %566 {offsets = [0, 32], sizes = [8, 32], strides = [1, 1]} : vector<8x64xf32> to vector<8x32xf32>
    %571 = arith.index_cast %544 : i32 to index
    %c0_179 = arith.constant 0 : index
    %572 = vector.load %arg15[%571, %c0_179] : memref<64x32xf32, #tpu.memory_space<vmem>>, vector<8x32xf32>
    tpu.vector_store %arg15[%571, %c0_179], %570 {strides = array<i32>} : memref<64x32xf32, #tpu.memory_space<vmem>>, vector<8x32xf32>,
    %c8_i32_180 = arith.constant 8 : i32
    %c0_181 = arith.constant 0 : index
    %c0_182 = arith.constant 0 : index
    %573 = vector.load %arg14[%c0_181, %c0_182] : memref<64x32xf32, #tpu.memory_space<vmem>>, vector<64x32xf32>
    %c0_183 = arith.constant 0 : index
    %c0_184 = arith.constant 0 : index
    %c0_185 = arith.constant 0 : index
    %574 = vector.load %arg8[%c0_183, %c0_184, %c0_185] : memref<2x32x32xf32, #tpu.memory_space<vmem>>, vector<1x32x32xf32>
    %575 = vector.shape_cast %574 : vector<1x32x32xf32> to vector<32x32xf32>
    %cst_186 = arith.constant dense<0.000000e+00> : vector<64x32xf32>
    %576 = tpu.matmul %573, %575, %cst_186 {dimension_numbers = #tpu.dot_dimension_numbers<[1], [0], [0], [1], [0, 0, 1, 1], [], []>} : vector<64x32xf32>, vector<32x32xf32>, vector<64x32xf32> -> vector<64x32xf32>
    %c0_187 = arith.constant 0 : index
    %c0_188 = arith.constant 0 : index
    %577 = vector.load %arg15[%c0_187, %c0_188] : memref<64x32xf32, #tpu.memory_space<vmem>>, vector<64x32xf32>
    %c1_189 = arith.constant 1 : index
    %c0_190 = arith.constant 0 : index
    %c0_191 = arith.constant 0 : index
    %578 = vector.load %arg8[%c1_189, %c0_190, %c0_191] : memref<2x32x32xf32, #tpu.memory_space<vmem>>, vector<1x32x32xf32>
    %579 = vector.shape_cast %578 : vector<1x32x32xf32> to vector<32x32xf32>
    %cst_192 = arith.constant dense<0.000000e+00> : vector<64x32xf32>
    %580 = tpu.matmul %577, %579, %cst_192 {dimension_numbers = #tpu.dot_dimension_numbers<[1], [0], [0], [1], [0, 0, 1, 1], [], []>} : vector<64x32xf32>, vector<32x32xf32>, vector<64x32xf32> -> vector<64x32xf32>
    %581 = arith.addf %576, %580 : vector<64x32xf32>
    %c0_193 = arith.constant 0 : index
    %c0_194 = arith.constant 0 : index
    %582 = vector.load %arg9[%c0_193, %c0_194] : memref<1x32xf32, #tpu.memory_space<vmem>>, vector<1x32xf32>
    %583 = vector.broadcast %582 : vector<1x32xf32> to vector<64x32xf32>
    %584 = arith.addf %581, %583 : vector<64x32xf32>
    %cst_195 = arith.constant 0.000000e+00 : f32
    %585 = vector.broadcast %cst_195 : f32 to vector<64x32xf32>
    %586 = arith.maximumf %584, %585 : vector<64x32xf32>
    %c0_196 = arith.constant 0 : index
    %c0_197 = arith.constant 0 : index
    %587 = vector.load %arg10[%c0_196, %c0_197] : memref<1x32xf32, #tpu.memory_space<vmem>>, vector<1x32xf32>
    %588 = vector.broadcast %587 : vector<1x32xf32> to vector<64x32xf32>
    %589 = arith.mulf %586, %588 : vector<64x32xf32>
    %cst_198 = arith.constant dense<0.000000e+00> : vector<64xf32>
    %590 = vector.multi_reduction <add>, %589, %cst_198 [1] : vector<64x32xf32> to vector<64xf32>
    %591 = vector.shape_cast %590 : vector<64xf32> to vector<64x1xf32>
    %c0_199 = arith.constant 0 : index
    %c0_200 = arith.constant 0 : index
    %592 = vector.load %arg11[%c0_199, %c0_200] : memref<1x1xf32, #tpu.memory_space<vmem>>, vector<1x1xf32>
    %593 = vector.broadcast %592 : vector<1x1xf32> to vector<64x1xf32>
    %594 = arith.addf %591, %593 : vector<64x1xf32>
    %595 = arith.negf %594 : vector<64x1xf32>
    %596 = math.exp %595 : vector<64x1xf32>
    %cst_201 = arith.constant 1.000000e+00 : f32
    %597 = vector.broadcast %cst_201 : f32 to vector<64x1xf32>
    %598 = arith.addf %597, %596 : vector<64x1xf32>
    %599 = arith.divf %597, %598 : vector<64x1xf32>
    %c0_202 = arith.constant 0 : index
    %c0_203 = arith.constant 0 : index
    %600 = vector.load %arg12[%c0_202, %c0_203] : memref<64x1xf32, #tpu.memory_space<vmem>>, vector<64x1xf32>
    tpu.vector_store %arg12[%c0_202, %c0_203], %599 {strides = array<i32>} : memref<64x1xf32, #tpu.memory_space<vmem>>, vector<64x1xf32>,
    return
  }
  func.func @transform_0(%arg0: i32) -> (i32, i32) {
    %c0_i32 = arith.constant 0 : i32
    %c0_i32_0 = arith.constant 0 : i32
    %c0_i32_1 = arith.constant 0 : i32
    return %c0_i32, %c0_i32_0 : i32, i32
  }
  func.func @transform_1(%arg0: i32) -> (i32, i32) {
    %c0_i32 = arith.constant 0 : i32
    %c0_i32_0 = arith.constant 0 : i32
    %c0_i32_1 = arith.constant 0 : i32
    return %c0_i32, %c0_i32_0 : i32, i32
  }
  func.func @transform_2(%arg0: i32) -> (i32, i32) {
    %c0_i32 = arith.constant 0 : i32
    %c0_i32_0 = arith.constant 0 : i32
    %c0_i32_1 = arith.constant 0 : i32
    return %c0_i32, %c0_i32_0 : i32, i32
  }
  func.func @transform_3(%arg0: i32) -> (i32, i32) {
    %c0_i32 = arith.constant 0 : i32
    %c0_i32_0 = arith.constant 0 : i32
    %c0_i32_1 = arith.constant 0 : i32
    return %c0_i32, %c0_i32_0 : i32, i32
  }
  func.func @transform_4(%arg0: i32) -> (i32, i32, i32) {
    %c0_i32 = arith.constant 0 : i32
    %c0_i32_0 = arith.constant 0 : i32
    %c0_i32_1 = arith.constant 0 : i32
    %c0_i32_2 = arith.constant 0 : i32
    return %c0_i32, %c0_i32_0, %c0_i32_1 : i32, i32, i32
  }
  func.func @transform_5(%arg0: i32) -> (i32, i32) {
    %c0_i32 = arith.constant 0 : i32
    %c0_i32_0 = arith.constant 0 : i32
    %c0_i32_1 = arith.constant 0 : i32
    return %c0_i32, %c0_i32_0 : i32, i32
  }
  func.func @transform_6(%arg0: i32) -> (i32, i32) {
    %c0_i32 = arith.constant 0 : i32
    %c0_i32_0 = arith.constant 0 : i32
    %c0_i32_1 = arith.constant 0 : i32
    return %c0_i32, %c0_i32_0 : i32, i32
  }
  func.func @transform_7(%arg0: i32) -> (i32, i32, i32) {
    %c0_i32 = arith.constant 0 : i32
    %c0_i32_0 = arith.constant 0 : i32
    %c0_i32_1 = arith.constant 0 : i32
    %c0_i32_2 = arith.constant 0 : i32
    return %c0_i32, %c0_i32_0, %c0_i32_1 : i32, i32, i32
  }
  func.func @transform_8(%arg0: i32) -> (i32, i32) {
    %c0_i32 = arith.constant 0 : i32
    %c0_i32_0 = arith.constant 0 : i32
    %c0_i32_1 = arith.constant 0 : i32
    return %c0_i32, %c0_i32_0 : i32, i32
  }
  func.func @transform_9(%arg0: i32) -> (i32, i32) {
    %c0_i32 = arith.constant 0 : i32
    %c0_i32_0 = arith.constant 0 : i32
    %c0_i32_1 = arith.constant 0 : i32
    return %c0_i32, %c0_i32_0 : i32, i32
  }
  func.func @transform_10(%arg0: i32) -> (i32, i32) {
    %c0_i32 = arith.constant 0 : i32
    %c0_i32_0 = arith.constant 0 : i32
    %c0_i32_1 = arith.constant 0 : i32
    return %c0_i32, %c0_i32_0 : i32, i32
  }
  func.func @transform_11(%arg0: i32) -> (i32, i32) {
    %c0_i32 = arith.constant 0 : i32
    %c0_i32_0 = arith.constant 0 : i32
    %c0_i32_1 = arith.constant 0 : i32
    return %c0_i32, %c0_i32_0 : i32, i32
  }
}

</mosaic_0001>

<llo_original>
// kernel: tpu_custom_call.1
$region0: #{tpu_custom_call.1}
  #allocation0 [shape = 'u32[]', space=smem, size = 0x4, offset = 0x4, fixed_abs, tag = 'smem constant byte address 0x4 - core index']
  #allocation1 [shape = 'u32[144,128]{1,0:T(1,128)}', space=vmem, size = 0x12000, scoped, tag = 'internal scratch']
  #allocation2 [shape = 'f32[64,256]{1,0:T(8,128)}', space=vmem, size = 0x10000, scoped, tag = 'scratch operand']
  #allocation3 [shape = 'f32[64,32]{1,0:T(8,128)}', space=vmem, size = 0x8000, scoped, tag = 'scratch operand']
  #allocation4 [shape = 'f32[64,32]{1,0:T(8,128)}', space=vmem, size = 0x8000, scoped, tag = 'scratch operand']
  #allocation5 [shape = 'f32[1,1]{1,0:T(1,128)S(1)}', space=vmem, size = 0x200, scoped, tag = 'scoped memory for tpu_custom_call.1']
  %s0 = inlined_call_operand.hbm [shape: f32[64,64], index: 0, kind: input, shape index: {}]
  %s1 = inlined_call_operand.hbm [shape: f32[64,256], index: 1, kind: input, shape index: {}]
  %s2 = inlined_call_operand.hbm [shape: f32[64,256], index: 2, kind: input, shape index: {}]
  %s3 = inlined_call_operand.vmem [shape: f32[1,256], index: 3, kind: input, shape index: {}]
  %s4 = inlined_call_operand.hbm [shape: f32[2,32,256], index: 4, kind: input, shape index: {}]
  %s5 = inlined_call_operand.hbm [shape: f32[64,256], index: 5, kind: input, shape index: {}]
  %s6 = inlined_call_operand.vmem [shape: f32[1,256], index: 6, kind: input, shape index: {}]
  %s7 = inlined_call_operand.hbm [shape: f32[2,32,32], index: 7, kind: input, shape index: {}]
  %s8 = inlined_call_operand.vmem [shape: f32[1,32], index: 8, kind: input, shape index: {}]
  %s9 = inlined_call_operand.vmem [shape: f32[1,32], index: 9, kind: input, shape index: {}]
  %s10 = inlined_call_operand.<no memory space> [shape: f32[1,1], index: 10, kind: input, shape index: {}]
  %s11 = inlined_call_operand.vmem [shape: f32[64,1], index: 11, kind: output, shape index: {}]
  %s12 = sld [smem:[#allocation0]]
  $region78: #{tpu_custom_call.1} parent=0
    _
  %s14 = ssub.s32 1, %s12
  %s15 = scalar_select 0, %s14, %s12
  %v16 = vstv %s10
  %17 = vst [vmem:[#allocation5] sm:$0x1] %v16
  $region1: #{tpu_custom_call.1} parent=0
    #allocation6 [shape = 'u8[32768]{0}', space=vmem, size = 0x8000, scoped, tag = 'input window, operand 0, single buffered']
    #allocation7 [shape = 's32[1]{0}', space=sflag, size = 0x4, scoped, tag = 'scoped memory for tpu_custom_call.1']
    #allocation8 [shape = 'u8[65536]{0}', space=vmem, size = 0x10000, scoped, tag = 'input window, operand 1, single buffered']
    #allocation9 [shape = 's32[1]{0}', space=sflag, size = 0x4, scoped, tag = 'scoped memory for tpu_custom_call.1']
    #allocation10 [shape = 'u8[65536]{0}', space=vmem, size = 0x10000, scoped, tag = 'input window, operand 2, single buffered']
    #allocation11 [shape = 'u8[65536]{0}', space=vmem, size = 0x10000, scoped, tag = 'input window, operand 4, single buffered']
    #allocation12 [shape = 's32[1]{0}', space=sflag, size = 0x4, scoped, tag = 'scoped memory for tpu_custom_call.1']
    #allocation13 [shape = 'u8[65536]{0}', space=vmem, size = 0x10000, scoped, tag = 'input window, operand 5, single buffered']
    #allocation14 [shape = 'u8[32768]{0}', space=vmem, size = 0x8000, scoped, tag = 'input window, operand 7, single buffered']
    #allocation15 [shape = 's32[1]{0}', space=sflag, size = 0x4, scoped, tag = 'scoped memory for tpu_custom_call.1']
    %18 = vsyncpa [#allocation7], 0
    %19 = vsyncpa [#allocation9], 0
    %20 = vsyncpa [#allocation12], 0
    %21 = vsyncpa [#allocation15], 0
    // Predicated region
    $region2: #{tpu_custom_call.1} parent=1 // pred_check
      _
    $region3: #{tpu_custom_call.1} parent=1 // pred_check_branch
      %23 = sbr.rel (0) target = $region5
    $region4: #{tpu_custom_call.1} parent=1 // pred_region
      %s25 = ssub.s32 1024, 1024
      %26 = vsyncadd [#allocation7], %s25
      %s27 = sshll.u32 [#allocation6], 4
      %s28 = int_to_ptr.vmem [resolvable:$true] %s27
      %33 = dma.hbm_to_vmem [thread:$0]  %s0, 1024, %s28, [#allocation7], 128, 128, 8
    $region5: #{tpu_custom_call.1} parent=1 // pred_fallthru
      _
    // Predicated region
    $region6: #{tpu_custom_call.1} parent=1 // pred_check
      _
    $region7: #{tpu_custom_call.1} parent=1 // pred_check_branch
      %35 = sbr.rel (0) target = $region9
    $region8: #{tpu_custom_call.1} parent=1 // pred_region
      %s37 = ssub.s32 2048, 2048
      %38 = vsyncadd [#allocation9], %s37
      %s39 = sshll.u32 [#allocation8], 4
      %s40 = int_to_ptr.vmem [resolvable:$true] %s39
      %45 = dma.hbm_to_vmem [thread:$0]  %s1, 2048, %s40, [#allocation9], 256, 256, 16
    $region9: #{tpu_custom_call.1} parent=1 // pred_fallthru
      _
    // Predicated region
    $region10: #{tpu_custom_call.1} parent=1 // pred_check
      _
    $region11: #{tpu_custom_call.1} parent=1 // pred_check_branch
      %47 = sbr.rel (0) target = $region13
    $region12: #{tpu_custom_call.1} parent=1 // pred_region
      %s49 = ssub.s32 2048, 2048
      %50 = vsyncadd [#allocation9], %s49
      %s51 = sshll.u32 [#allocation10], 4
      %s52 = int_to_ptr.vmem [resolvable:$true] %s51
      %57 = dma.hbm_to_vmem [thread:$0]  %s2, 2048, %s52, [#allocation9], 256, 256, 16
    $region13: #{tpu_custom_call.1} parent=1 // pred_fallthru
      _
    // Predicated region
    $region14: #{tpu_custom_call.1} parent=1 // pred_check
      _
    $region15: #{tpu_custom_call.1} parent=1 // pred_check_branch
      %59 = sbr.rel (0) target = $region17
    $region16: #{tpu_custom_call.1} parent=1 // pred_region
      _
    $region17: #{tpu_custom_call.1} parent=1 // pred_fallthru
      _
    // Predicated region
    $region18: #{tpu_custom_call.1} parent=1 // pred_check
      _
    $region19: #{tpu_custom_call.1} parent=1 // pred_check_branch
      %61 = sbr.rel (0) target = $region21
    $region20: #{tpu_custom_call.1} parent=1 // pred_region
      %s63 = ssub.s32 2048, 2048
      %64 = vsyncadd [#allocation12], %s63
      %s65 = sshll.u32 [#allocation11], 4
      %s66 = int_to_ptr.vmem [resolvable:$true] %s65
      %71 = dma.hbm_to_vmem [thread:$0]  %s4, 2048, %s66, [#allocation12], 256, 256, 16
    $region21: #{tpu_custom_call.1} parent=1 // pred_fallthru
      _
    // Predicated region
    $region22: #{tpu_custom_call.1} parent=1 // pred_check
      _
    $region23: #{tpu_custom_call.1} parent=1 // pred_check_branch
      %73 = sbr.rel (0) target = $region25
    $region24: #{tpu_custom_call.1} parent=1 // pred_region
      %s75 = ssub.s32 2048, 2048
      %76 = vsyncadd [#allocation12], %s75
      %s77 = sshll.u32 [#allocation13], 4
      %s78 = int_to_ptr.vmem [resolvable:$true] %s77
      %83 = dma.hbm_to_vmem [thread:$0]  %s5, 2048, %s78, [#allocation12], 256, 256, 16
    $region25: #{tpu_custom_call.1} parent=1 // pred_fallthru
      _
    // Predicated region
    $region26: #{tpu_custom_call.1} parent=1 // pred_check
      _
    $region27: #{tpu_custom_call.1} parent=1 // pred_check_branch
      %85 = sbr.rel (0) target = $region29
    $region28: #{tpu_custom_call.1} parent=1 // pred_region
      _
    $region29: #{tpu_custom_call.1} parent=1 // pred_fallthru
      _
    // Predicated region
    $region30: #{tpu_custom_call.1} parent=1 // pred_check
      _
    $region31: #{tpu_custom_call.1} parent=1 // pred_check_branch
      %87 = sbr.rel (0) target = $region33
    $region32: #{tpu_custom_call.1} parent=1 // pred_region
      %s89 = ssub.s32 1024, 1024
      %90 = vsyncadd [#allocation15], %s89
      %s91 = sshll.u32 [#allocation14], 4
      %s92 = int_to_ptr.vmem [resolvable:$true] %s91
      %97 = dma.hbm_to_vmem [thread:$0]  %s7, 1024, %s92, [#allocation15], 128, 128, 8
    $region33: #{tpu_custom_call.1} parent=1 // pred_fallthru
      _
    // Predicated region
    $region34: #{tpu_custom_call.1} parent=1 // pred_check
      _
    $region35: #{tpu_custom_call.1} parent=1 // pred_check_branch
      %99 = sbr.rel (0) target = $region37
    $region36: #{tpu_custom_call.1} parent=1 // pred_region
      _
    $region37: #{tpu_custom_call.1} parent=1 // pred_fallthru
      _
    // Predicated region
    $region38: #{tpu_custom_call.1} parent=1 // pred_check
      _
    $region39: #{tpu_custom_call.1} parent=1 // pred_check_branch
      %101 = sbr.rel (0) target = $region41
    $region40: #{tpu_custom_call.1} parent=1 // pred_region
      _
    $region41: #{tpu_custom_call.1} parent=1 // pred_fallthru
      _
    // Predicated region
    $region42: #{tpu_custom_call.1} parent=1 // pred_check
      _
    $region43: #{tpu_custom_call.1} parent=1 // pred_check_branch
      %103 = sbr.rel (0) target = $region45
    $region44: #{tpu_custom_call.1} parent=1 // pred_region
      _
    $region45: #{tpu_custom_call.1} parent=1 // pred_fallthru
      _
    // Predicated region
    $region46: #{tpu_custom_call.1} parent=1 // pred_check
      _
    $region47: #{tpu_custom_call.1} parent=1 // pred_check_branch
      %105 = sbr.rel (0) target = $region49
    $region48: #{tpu_custom_call.1} parent=1 // pred_region
      %106 = dma.done [#allocation7], 1024
    $region49: #{tpu_custom_call.1} parent=1 // pred_fallthru
      _
    // Predicated region
    $region50: #{tpu_custom_call.1} parent=1 // pred_check
      _
    $region51: #{tpu_custom_call.1} parent=1 // pred_check_branch
      %108 = sbr.rel (0) target = $region53
    $region52: #{tpu_custom_call.1} parent=1 // pred_region
      %109 = dma.done [#allocation9], 2048
    $region53: #{tpu_custom_call.1} parent=1 // pred_fallthru
      _
    // Predicated region
    $region54: #{tpu_custom_call.1} parent=1 // pred_check
      _
    $region55: #{tpu_custom_call.1} parent=1 // pred_check_branch
      %111 = sbr.rel (0) target = $region57
    $region56: #{tpu_custom_call.1} parent=1 // pred_region
      %112 = dma.done [#allocation9], 2048
    $region57: #{tpu_custom_call.1} parent=1 // pred_fallthru
      _
    // Predicated region
    $region58: #{tpu_custom_call.1} parent=1 // pred_check
      _
    $region59: #{tpu_custom_call.1} parent=1 // pred_check_branch
      %114 = sbr.rel (0) target = $region61
    $region60: #{tpu_custom_call.1} parent=1 // pred_region
      %115 = dma.done [#allocation12], 2048
    $region61: #{tpu_custom_call.1} parent=1 // pred_fallthru
      _
    // Predicated region
    $region62: #{tpu_custom_call.1} parent=1 // pred_check
      _
    $region63: #{tpu_custom_call.1} parent=1 // pred_check_branch
      %117 = sbr.rel (0) target = $region65
    $region64: #{tpu_custom_call.1} parent=1 // pred_region
      %118 = dma.done [#allocation12], 2048
    $region65: #{tpu_custom_call.1} parent=1 // pred_fallthru
      _
    // Predicated region
    $region66: #{tpu_custom_call.1} parent=1 // pred_check
      _
    $region67: #{tpu_custom_call.1} parent=1 // pred_check_branch
      %120 = sbr.rel (0) target = $region69
    $region68: #{tpu_custom_call.1} parent=1 // pred_region
      %121 = dma.done [#allocation15], 1024
    $region69: #{tpu_custom_call.1} parent=1 // pred_fallthru
      _
    %v122 = vlaneseq
    %v123 = vand.u32 %v122, 127
    %v124 = vadd.s32 %v123, 128
    %vm125 = vcmp.lt.s32.totalorder %v123, 32
    %vm126 = vcmp.lt.s32.totalorder %v124, 32
    %vm127 = vcmp.ge.s32.totalorder %v123, 64
    %vm128 = vcmp.ge.s32.totalorder %v124, 64
    %vm129 = vcmp.lt.s32.totalorder %v123, 96
    %vm130 = vcmp.lt.s32.totalorder %v124, 96
    %vm131 = vmand %vm127, %vm129
    %vm132 = vmand %vm128, %vm130
    %vm133 = vmor %vm125, %vm131
    %vm134 = vmor %vm126, %vm132
    %vm135 = vcmp.ge.s32.totalorder %v123, 128
    %vm136 = vcmp.ge.s32.totalorder %v124, 128
    %vm137 = vcmp.lt.s32.totalorder %v123, 160
    %vm138 = vcmp.lt.s32.totalorder %v124, 160
    %vm139 = vmand %vm135, %vm137
    %vm140 = vmand %vm136, %vm138
    %vm141 = vmor %vm133, %vm139
    %vm142 = vmor %vm134, %vm140
    %vm143 = vcmp.ge.s32.totalorder %v123, 192
    %vm144 = vcmp.ge.s32.totalorder %v124, 192
    %vm145 = vcmp.lt.s32.totalorder %v123, 224
    %vm146 = vcmp.lt.s32.totalorder %v124, 224
    %vm147 = vmand %vm143, %vm145
    %vm148 = vmand %vm144, %vm146
    %vm149 = vmor %vm141, %vm147
    %vm150 = vmor %vm142, %vm148
    %v151 = vld [vmem:[#allocation6] sm:$0xff]
    %v152 = vld [vmem:[#allocation6 + $0x8] sm:$0xff]
    %v153 = vld [vmem:[#allocation6 + $0x10] sm:$0xff]
    %v154 = vld [vmem:[#allocation6 + $0x18] sm:$0xff]
    %v155 = vld [vmem:[#allocation6 + $0x20] sm:$0xff]
    %v156 = vld [vmem:[#allocation6 + $0x28] sm:$0xff]
    %v157 = vld [vmem:[#allocation6 + $0x30] sm:$0xff]
    %v158 = vld [vmem:[#allocation6 + $0x38] sm:$0xff]
    %v159 = vld [vmem:[#allocation8] sm:$0xff]
    %v160 = vld [vmem:[#allocation8 + $0x8] sm:$0xff]
    %v161 = vld [vmem:[#allocation8 + $0x10] sm:$0xff]
    %v162 = vld [vmem:[#allocation8 + $0x18] sm:$0xff]
    %v163 = vld [vmem:[#allocation8 + $0x20] sm:$0xff]
    %v164 = vld [vmem:[#allocation8 + $0x28] sm:$0xff]
    %v165 = vld [vmem:[#allocation8 + $0x30] sm:$0xff]
    %v166 = vld [vmem:[#allocation8 + $0x38] sm:$0xff]
    %v167 = vld [vmem:[#allocation8 + $0x40] sm:$0xff]
    %v168 = vld [vmem:[#allocation8 + $0x48] sm:$0xff]
    %v169 = vld [vmem:[#allocation8 + $0x50] sm:$0xff]
    %v170 = vld [vmem:[#allocation8 + $0x58] sm:$0xff]
    %v171 = vld [vmem:[#allocation8 + $0x60] sm:$0xff]
    %v172 = vld [vmem:[#allocation8 + $0x68] sm:$0xff]
    %v173 = vld [vmem:[#allocation8 + $0x70] sm:$0xff]
    %v174 = vld [vmem:[#allocation8 + $0x78] sm:$0xff]
    %v175 = vld [vmem:[%s3] sm:$0x3]
    %v177 = vlaneseq
    %v178 = vshrl.u32 %v177, 7
    %v179 = vsub.s32 0, %v178
    %v180 = vrot.slane %v175, %v179
    %v181 = vlaneseq
    %v182 = vshrl.u32 %v181, 7
    %v183 = vsub.s32 1, %v182
    %v184 = vrot.slane %v175, %v183
    %vm187 = vcmask 523264
    %v189 = vsel %vm187, %v151, 0
    %v192 = vsel %vm187, %v152, 0
    %v195 = vsel %vm187, %v153, 0
    %v198 = vsel %vm187, %v154, 0
    %v201 = vsel %vm187, %v155, 0
    %v204 = vsel %vm187, %v156, 0
    %v207 = vsel %vm187, %v157, 0
    %v210 = vsel %vm187, %v158, 0
    %212 = vmatprep.subr.mxu0 %v160
    %213 = vmatpush1.msra.mxu0 %v159
    %214 = vmatprep.subr.mxu0 %v162
    %215 = vmatpush1.msra.mxu0 %v161
    %216 = vmatprep.subr.mxu0 %v164
    %217 = vmatpush1.msra.mxu0 %v163
    %218 = vmatprep.subr.mxu0 %v166
    %219 = vmatpush1.msra.mxu0 %v165
    %220 = vmatprep.subr.mxu0 %v168
    %221 = vmatpush1.msra.mxu0 %v167
    %222 = vmatprep.subr.mxu0 %v170
    %223 = vmatpush1.msra.mxu0 %v169
    %224 = vmatprep.subr.mxu0 %v172
    %225 = vmatpush1.msra.mxu0 %v171
    %226 = vmatprep.subr.mxu0 %v174
    %227 = vmatpush1.msra.mxu0 %v173
    %228 = vmatprep.subr.mxu0 0.0
    %229 = vmatpush1.msra.mxu0 0.0
    %230 = vmatprep.subr.mxu0 0.0
    %231 = vmatpush1.msra.mxu0 0.0
    %232 = vmatprep.subr.mxu0 0.0
    %233 = vmatpush1.msra.mxu0 0.0
    %234 = vmatprep.subr.mxu0 0.0
    %235 = vmatpush1.msra.mxu0 0.0
    %236 = vmatprep.subr.mxu0 0.0
    %237 = vmatpush1.msra.mxu0 0.0
    %238 = vmatprep.subr.mxu0 0.0
    %239 = vmatpush1.msra.mxu0 0.0
    %240 = vmatprep.subr.mxu0 0.0
    %241 = vmatpush1.msra.mxu0 0.0
    %242 = vmatprep.subr.mxu0 0.0
    %243 = vmatpush1.msra.mxu0 0.0
    %244 = vmatprep.subr.mxu0 0.0
    %245 = vmatpush1.msra.mxu0 0.0
    %246 = vmatprep.subr.mxu0 0.0
    %247 = vmatpush1.msra.mxu0 0.0
    %248 = vmatprep.subr.mxu0 0.0
    %249 = vmatpush1.msra.mxu0 0.0
    %250 = vmatprep.subr.mxu0 0.0
    %251 = vmatpush1.msra.mxu0 0.0
    %252 = vmatprep.subr.mxu0 0.0
    %253 = vmatpush1.msra.mxu0 0.0
    %254 = vmatprep.subr.mxu0 0.0
    %255 = vmatpush1.msra.mxu0 0.0
    %256 = vmatprep.subr.mxu0 0.0
    %257 = vmatpush1.msra.mxu0 0.0
    %258 = vmatprep.subr.mxu0 0.0
    %259 = vmatpush1.msra.mxu0 0.0
    %260 = vmatprep.subr.mxu0 0.0
    %261 = vmatpush1.msra.mxu0 0.0
    %262 = vmatprep.subr.mxu0 0.0
    %263 = vmatpush1.msra.mxu0 0.0
    %264 = vmatprep.subr.mxu0 0.0
    %265 = vmatpush1.msra.mxu0 0.0
    %266 = vmatprep.subr.mxu0 0.0
    %267 = vmatpush1.msra.mxu0 0.0
    %268 = vmatprep.subr.mxu0 0.0
    %269 = vmatpush1.msra.mxu0 0.0
    %270 = vmatprep.subr.mxu0 0.0
    %271 = vmatpush1.msra.mxu0 0.0
    %272 = vmatprep.subr.mxu0 0.0
    %273 = vmatpush1.msra.mxu0 0.0
    %274 = vmatprep.subr.mxu0 0.0
    %275 = vmatpush1.msra.mxu0 0.0
    %276 = vmatprep.mubr.f32.mxu0 0.0
    %277 = vmatmul.mubr.f32.gmra.mrb[0].mxu0 %v189
    %v278 = vpop.f32.mrb[0].mxu0
    %v279 = vadd.f32 %v180, %v278
    %v280 = vpop.f32.mrb[0].mxu0
    %v281 = vadd.f32 %v184, %v280
    %282 = vmatprep.mubr.f32.mxu0 0.0
    %283 = vmatmul.mubr.f32.gmra.mrb[0].mxu0 %v192
    %v284 = vpop.f32.mrb[0].mxu0
    %v285 = vadd.f32 %v180, %v284
    %v286 = vpop.f32.mrb[0].mxu0
    %v287 = vadd.f32 %v184, %v286
    %288 = vmatprep.mubr.f32.mxu0 0.0
    %289 = vmatmul.mubr.f32.gmra.mrb[0].mxu0 %v195
    %v290 = vpop.f32.mrb[0].mxu0
    %v291 = vadd.f32 %v180, %v290
    %v292 = vpop.f32.mrb[0].mxu0
    %v293 = vadd.f32 %v184, %v292
    %294 = vmatprep.mubr.f32.mxu0 0.0
    %295 = vmatmul.mubr.f32.gmra.mrb[0].mxu0 %v198
    %v296 = vpop.f32.mrb[0].mxu0
    %v297 = vadd.f32 %v180, %v296
    %v298 = vpop.f32.mrb[0].mxu0
    %v299 = vadd.f32 %v184, %v298
    %300 = vmatprep.mubr.f32.mxu0 0.0
    %301 = vmatmul.mubr.f32.gmra.mrb[0].mxu0 %v201
    %v302 = vpop.f32.mrb[0].mxu0
    %v303 = vadd.f32 %v180, %v302
    %v304 = vpop.f32.mrb[0].mxu0
    %v305 = vadd.f32 %v184, %v304
    %306 = vmatprep.mubr.f32.mxu0 0.0
    %307 = vmatmul.mubr.f32.gmra.mrb[0].mxu0 %v204
    %v308 = vpop.f32.mrb[0].mxu0
    %v309 = vadd.f32 %v180, %v308
    %v310 = vpop.f32.mrb[0].mxu0
    %v311 = vadd.f32 %v184, %v310
    %312 = vmatprep.mubr.f32.mxu0 0.0
    %313 = vmatmul.mubr.f32.gmra.mrb[0].mxu0 %v207
    %v314 = vpop.f32.mrb[0].mxu0
    %v315 = vadd.f32 %v180, %v314
    %v316 = vpop.f32.mrb[0].mxu0
    %v317 = vadd.f32 %v184, %v316
    %318 = vmatprep.mubr.f32.mxu0 0.0
    %319 = vmatmul.mubr.f32.gmra.mrb[0].mxu0 %v210
    %v320 = vpop.f32.mrb[0].mxu0
    %v321 = vadd.f32 %v180, %v320
    %v322 = vpop.f32.mrb[0].mxu0
    %v323 = vadd.f32 %v184, %v322
    %324 = vdwg.mxu0
    %325 = vst [vmem:[#allocation2] sm:$0xff] %v279
    %326 = vst [vmem:[#allocation2 + $0x8] sm:$0xff] %v281
    %327 = vst [vmem:[#allocation2 + $0x10] sm:$0xff] %v285
    %328 = vst [vmem:[#allocation2 + $0x18] sm:$0xff] %v287
    %329 = vst [vmem:[#allocation2 + $0x20] sm:$0xff] %v291
    %330 = vst [vmem:[#allocation2 + $0x28] sm:$0xff] %v293
    %331 = vst [vmem:[#allocation2 + $0x30] sm:$0xff] %v297
    %332 = vst [vmem:[#allocation2 + $0x38] sm:$0xff] %v299
    %333 = vst [vmem:[#allocation2 + $0x40] sm:$0xff] %v303
    %334 = vst [vmem:[#allocation2 + $0x48] sm:$0xff] %v305
    %335 = vst [vmem:[#allocation2 + $0x50] sm:$0xff] %v309
    %336 = vst [vmem:[#allocation2 + $0x58] sm:$0xff] %v311
    %337 = vst [vmem:[#allocation2 + $0x60] sm:$0xff] %v315
    %338 = vst [vmem:[#allocation2 + $0x68] sm:$0xff] %v317
    %339 = vst [vmem:[#allocation2 + $0x70] sm:$0xff] %v321
    %340 = vst [vmem:[#allocation2 + $0x78] sm:$0xff] %v323
    %v341 = vld [vmem:[#allocation10] sm:$0xff]
    %v342 = vld [vmem:[#allocation10 + $0x8] sm:$0xff]
    %v343 = vld [vmem:[#allocation10 + $0x10] sm:$0xff]
    %v344 = vld [vmem:[#allocation10 + $0x18] sm:$0xff]
    %v345 = vld [vmem:[#allocation10 + $0x20] sm:$0xff]
    %v346 = vld [vmem:[#allocation10 + $0x28] sm:$0xff]
    %v347 = vld [vmem:[#allocation10 + $0x30] sm:$0xff]
    %v348 = vld [vmem:[#allocation10 + $0x38] sm:$0xff]
    %v349 = vld [vmem:[#allocation10 + $0x40] sm:$0xff]
    %v350 = vld [vmem:[#allocation10 + $0x48] sm:$0xff]
    %v351 = vld [vmem:[#allocation10 + $0x50] sm:$0xff]
    %v352 = vld [vmem:[#allocation10 + $0x58] sm:$0xff]
    %v353 = vld [vmem:[#allocation10 + $0x60] sm:$0xff]
    %v354 = vld [vmem:[#allocation10 + $0x68] sm:$0xff]
    %v355 = vld [vmem:[#allocation10 + $0x70] sm:$0xff]
    %v356 = vld [vmem:[#allocation10 + $0x78] sm:$0xff]
    %s357 = smul.u32 0, 2
    %s358 = smul.addr %s357, 8
    %s359 = scalar_lea.vmem [#allocation2], %s358
    %v360 = vld [vmem:[%s359] sm:$0xff]
    %v361 = vld [vmem:[%s359 + $0x8] sm:$0xff]
    %s362 = smul.u32 7, 2
    %s363 = smul.addr %s362, 8
    %s364 = scalar_lea.vmem [#allocation2], %s363
    %v365 = vld [vmem:[%s364] sm:$0xff]
    %v366 = vld [vmem:[%s364 + $0x8] sm:$0xff]
    %v367 = vsel %vm149, %v360, %v365
    %v368 = vsel %vm150, %v361, %v366
    %v370 = vsel %vm187, 0.0, 0
    %372 = vmatprep.subr.mxu0 %v342
    %373 = vmatpush1.msra.mxu0 %v341
    %374 = vmatprep.subr.mxu0 %v344
    %375 = vmatpush1.msra.mxu0 %v343
    %376 = vmatprep.subr.mxu0 %v346
    %377 = vmatpush1.msra.mxu0 %v345
    %378 = vmatprep.subr.mxu0 %v348
    %379 = vmatpush1.msra.mxu0 %v347
    %380 = vmatprep.subr.mxu0 %v350
    %381 = vmatpush1.msra.mxu0 %v349
    %382 = vmatprep.subr.mxu0 %v352
    %383 = vmatpush1.msra.mxu0 %v351
    %384 = vmatprep.subr.mxu0 %v354
    %385 = vmatpush1.msra.mxu0 %v353
    %386 = vmatprep.subr.mxu0 %v356
    %387 = vmatpush1.msra.mxu0 %v355
    %388 = vmatprep.subr.mxu0 0.0
    %389 = vmatpush1.msra.mxu0 0.0
    %390 = vmatprep.subr.mxu0 0.0
    %391 = vmatpush1.msra.mxu0 0.0
    %392 = vmatprep.subr.mxu0 0.0
    %393 = vmatpush1.msra.mxu0 0.0
    %394 = vmatprep.subr.mxu0 0.0
    %395 = vmatpush1.msra.mxu0 0.0
    %396 = vmatprep.subr.mxu0 0.0
    %397 = vmatpush1.msra.mxu0 0.0
    %398 = vmatprep.subr.mxu0 0.0
    %399 = vmatpush1.msra.mxu0 0.0
    %400 = vmatprep.subr.mxu0 0.0
    %401 = vmatpush1.msra.mxu0 0.0
    %402 = vmatprep.subr.mxu0 0.0
    %403 = vmatpush1.msra.mxu0 0.0
    %404 = vmatprep.subr.mxu0 0.0
    %405 = vmatpush1.msra.mxu0 0.0
    %406 = vmatprep.subr.mxu0 0.0
    %407 = vmatpush1.msra.mxu0 0.0
    %408 = vmatprep.subr.mxu0 0.0
    %409 = vmatpush1.msra.mxu0 0.0
    %410 = vmatprep.subr.mxu0 0.0
    %411 = vmatpush1.msra.mxu0 0.0
    %412 = vmatprep.subr.mxu0 0.0
    %413 = vmatpush1.msra.mxu0 0.0
    %414 = vmatprep.subr.mxu0 0.0
    %415 = vmatpush1.msra.mxu0 0.0
    %416 = vmatprep.subr.mxu0 0.0
    %417 = vmatpush1.msra.mxu0 0.0
    %418 = vmatprep.subr.mxu0 0.0
    %419 = vmatpush1.msra.mxu0 0.0
    %420 = vmatprep.subr.mxu0 0.0
    %421 = vmatpush1.msra.mxu0 0.0
    %422 = vmatprep.subr.mxu0 0.0
    %423 = vmatpush1.msra.mxu0 0.0
    %424 = vmatprep.subr.mxu0 0.0
    %425 = vmatpush1.msra.mxu0 0.0
    %426 = vmatprep.subr.mxu0 0.0
    %427 = vmatpush1.msra.mxu0 0.0
    %428 = vmatprep.subr.mxu0 0.0
    %429 = vmatpush1.msra.mxu0 0.0
    %430 = vmatprep.subr.mxu0 0.0
    %431 = vmatpush1.msra.mxu0 0.0
    %432 = vmatprep.subr.mxu0 0.0
    %433 = vmatpush1.msra.mxu0 0.0
    %434 = vmatprep.subr.mxu0 0.0
    %435 = vmatpush1.msra.mxu0 0.0
    %436 = vmatprep.mubr.f32.mxu0 0.0
    %437 = vmatmul.mubr.f32.gmra.mrb[0].mxu0 %v370
    %v438 = vpop.f32.mrb[0].mxu0
    %v439 = vadd.f32 0.0, %v438
    %v440 = vpop.f32.mrb[0].mxu0
    %v441 = vadd.f32 0.0, %v440
    %442 = vdwg.mxu0
    %v443 = vadd.f32 %v367, %v439
    %v444 = vadd.f32 %v368, %v441
    %v445 = vxor.u32 %v443, 2147483648
    %v446 = vxor.u32 %v444, 2147483648
    %v447 = vmul.f32 %v445, 1.442695
    %v448 = vpow.pop %v447
    %v449 = vmul.f32 %v446, 1.442695
    %v450 = vpow.pop %v449
    %v451 = vadd.f32 %v448, 1.0
    %v452 = vadd.f32 %v450, 1.0
    %v453 = vrcp.pop %v451
    %v454 = vmul.f32 1.0, %v453
    %v455 = vrcp.pop %v452
    %v456 = vmul.f32 1.0, %v455
    %v457 = vtanh.pop %v444
    %v458 = vmul.f32 %v454, 0.0
    %v459 = vmul.f32 %v454, %v457
    %461 = vrot.lane.b32.xlu0 %v459, 64
    %v462 = vpop.permute.xlu0 %461
    %v464 = vadd.f32 %v458, %v462
    %v465 = vtanh.pop %v464
    %v466 = vmul.f32 %v456, %v465
    %468 = vrot.lane.b32.xlu0 %v466, 64
    %v469 = vpop.permute.xlu0 %468
    %vm471 = vcmask 261120
    %472 = vst.msk [vmem:[#allocation3] sm:$0xff] %vm471, %v469
    %473 = vrot.lane.b32.xlu0 %v466, 32
    %v474 = vpop.permute.xlu0 %473
    %s476 = scalar_lea.vmem [#allocation4], 56
    %477 = vst.msk [vmem:[%s476] sm:$0xff] %vm471, %v474
    %s478 = smul.u32 1, 2
    %s479 = smul.addr %s478, 8
    %s480 = scalar_lea.vmem [#allocation2], %s479
    %v481 = vld [vmem:[%s480] sm:$0xff]
    %v482 = vld [vmem:[%s480 + $0x8] sm:$0xff]
    %s483 = smul.u32 6, 2
    %s484 = smul.addr %s483, 8
    %s485 = scalar_lea.vmem [#allocation2], %s484
    %v486 = vld [vmem:[%s485] sm:$0xff]
    %v487 = vld [vmem:[%s485 + $0x8] sm:$0xff]
    %v488 = vsel %vm149, %v481, %v486
    %v489 = vsel %vm150, %v482, %v487
    %v490 = vsel %vm187, %v469, 0
    %492 = vmatprep.subr.mxu0 %v342
    %493 = vmatpush1.msra.mxu0 %v341
    %494 = vmatprep.subr.mxu0 %v344
    %495 = vmatpush1.msra.mxu0 %v343
    %496 = vmatprep.subr.mxu0 %v346
    %497 = vmatpush1.msra.mxu0 %v345
    %498 = vmatprep.subr.mxu0 %v348
    %499 = vmatpush1.msra.mxu0 %v347
    %500 = vmatprep.subr.mxu0 %v350
    %501 = vmatpush1.msra.mxu0 %v349
    %502 = vmatprep.subr.mxu0 %v352
    %503 = vmatpush1.msra.mxu0 %v351
    %504 = vmatprep.subr.mxu0 %v354
    %505 = vmatpush1.msra.mxu0 %v353
    %506 = vmatprep.subr.mxu0 %v356
    %507 = vmatpush1.msra.mxu0 %v355
    %508 = vmatprep.subr.mxu0 0.0
    %509 = vmatpush1.msra.mxu0 0.0
    %510 = vmatprep.subr.mxu0 0.0
    %511 = vmatpush1.msra.mxu0 0.0
    %512 = vmatprep.subr.mxu0 0.0
    %513 = vmatpush1.msra.mxu0 0.0
    %514 = vmatprep.subr.mxu0 0.0
    %515 = vmatpush1.msra.mxu0 0.0
    %516 = vmatprep.subr.mxu0 0.0
    %517 = vmatpush1.msra.mxu0 0.0
    %518 = vmatprep.subr.mxu0 0.0
    %519 = vmatpush1.msra.mxu0 0.0
    %520 = vmatprep.subr.mxu0 0.0
    %521 = vmatpush1.msra.mxu0 0.0
    %522 = vmatprep.subr.mxu0 0.0
    %523 = vmatpush1.msra.mxu0 0.0
    %524 = vmatprep.subr.mxu0 0.0
    %525 = vmatpush1.msra.mxu0 0.0
    %526 = vmatprep.subr.mxu0 0.0
    %527 = vmatpush1.msra.mxu0 0.0
    %528 = vmatprep.subr.mxu0 0.0
    %529 = vmatpush1.msra.mxu0 0.0
    %530 = vmatprep.subr.mxu0 0.0
    %531 = vmatpush1.msra.mxu0 0.0
    %532 = vmatprep.subr.mxu0 0.0
    %533 = vmatpush1.msra.mxu0 0.0
    %534 = vmatprep.subr.mxu0 0.0
    %535 = vmatpush1.msra.mxu0 0.0
    %536 = vmatprep.subr.mxu0 0.0
    %537 = vmatpush1.msra.mxu0 0.0
    %538 = vmatprep.subr.mxu0 0.0
    %539 = vmatpush1.msra.mxu0 0.0
    %540 = vmatprep.subr.mxu0 0.0
    %541 = vmatpush1.msra.mxu0 0.0
    %542 = vmatprep.subr.mxu0 0.0
    %543 = vmatpush1.msra.mxu0 0.0
    %544 = vmatprep.subr.mxu0 0.0
    %545 = vmatpush1.msra.mxu0 0.0
    %546 = vmatprep.subr.mxu0 0.0
    %547 = vmatpush1.msra.mxu0 0.0
    %548 = vmatprep.subr.mxu0 0.0
    %549 = vmatpush1.msra.mxu0 0.0
    %550 = vmatprep.subr.mxu0 0.0
    %551 = vmatpush1.msra.mxu0 0.0
    %552 = vmatprep.subr.mxu0 0.0
    %553 = vmatpush1.msra.mxu0 0.0
    %554 = vmatprep.subr.mxu0 0.0
    %555 = vmatpush1.msra.mxu0 0.0
    %556 = vmatprep.mubr.f32.mxu0 0.0
    %557 = vmatmul.mubr.f32.gmra.mrb[0].mxu0 %v490
    %v558 = vpop.f32.mrb[0].mxu0
    %v559 = vadd.f32 0.0, %v558
    %v560 = vpop.f32.mrb[0].mxu0
    %v561 = vadd.f32 0.0, %v560
    %562 = vdwg.mxu0
    %v563 = vadd.f32 %v488, %v559
    %v564 = vadd.f32 %v489, %v561
    %v565 = vxor.u32 %v563, 2147483648
    %v566 = vxor.u32 %v564, 2147483648
    %v567 = vmul.f32 %v565, 1.442695
    %v568 = vpow.pop %v567
    %v569 = vmul.f32 %v566, 1.442695
    %v570 = vpow.pop %v569
    %v571 = vadd.f32 %v568, 1.0
    %v572 = vadd.f32 %v570, 1.0
    %v573 = vrcp.pop %v571
    %v574 = vmul.f32 1.0, %v573
    %v575 = vrcp.pop %v572
    %v576 = vmul.f32 1.0, %v575
    %v577 = vtanh.pop %v564
    %v578 = vmul.f32 %v574, %v464
    %v579 = vmul.f32 %v574, %v577
    %581 = vrot.lane.b32.xlu0 %v579, 64
    %v582 = vpop.permute.xlu0 %581
    %v584 = vadd.f32 %v578, %v582
    %v585 = vtanh.pop %v584
    %v586 = vmul.f32 %v576, %v585
    %588 = vrot.lane.b32.xlu0 %v586, 64
    %v589 = vpop.permute.xlu0 %588
    %s591 = scalar_lea.vmem [#allocation3], 8
    %592 = vst.msk [vmem:[%s591] sm:$0xff] %vm471, %v589
    %593 = vrot.lane.b32.xlu0 %v586, 32
    %v594 = vpop.permute.xlu0 %593
    %s596 = scalar_lea.vmem [#allocation4], 48
    %597 = vst.msk [vmem:[%s596] sm:$0xff] %vm471, %v594
    %s598 = smul.u32 2, 2
    %s599 = smul.addr %s598, 8
    %s600 = scalar_lea.vmem [#allocation2], %s599
    %v601 = vld [vmem:[%s600] sm:$0xff]
    %v602 = vld [vmem:[%s600 + $0x8] sm:$0xff]
    %s603 = smul.u32 5, 2
    %s604 = smul.addr %s603, 8
    %s605 = scalar_lea.vmem [#allocation2], %s604
    %v606 = vld [vmem:[%s605] sm:$0xff]
    %v607 = vld [vmem:[%s605 + $0x8] sm:$0xff]
    %v608 = vsel %vm149, %v601, %v606
    %v609 = vsel %vm150, %v602, %v607
    %v610 = vsel %vm187, %v589, 0
    %612 = vmatprep.subr.mxu0 %v342
    %613 = vmatpush1.msra.mxu0 %v341
    %614 = vmatprep.subr.mxu0 %v344
    %615 = vmatpush1.msra.mxu0 %v343
    %616 = vmatprep.subr.mxu0 %v346
    %617 = vmatpush1.msra.mxu0 %v345
    %618 = vmatprep.subr.mxu0 %v348
    %619 = vmatpush1.msra.mxu0 %v347
    %620 = vmatprep.subr.mxu0 %v350
    %621 = vmatpush1.msra.mxu0 %v349
    %622 = vmatprep.subr.mxu0 %v352
    %623 = vmatpush1.msra.mxu0 %v351
    %624 = vmatprep.subr.mxu0 %v354
    %625 = vmatpush1.msra.mxu0 %v353
    %626 = vmatprep.subr.mxu0 %v356
    %627 = vmatpush1.msra.mxu0 %v355
    %628 = vmatprep.subr.mxu0 0.0
    %629 = vmatpush1.msra.mxu0 0.0
    %630 = vmatprep.subr.mxu0 0.0
    %631 = vmatpush1.msra.mxu0 0.0
    %632 = vmatprep.subr.mxu0 0.0
    %633 = vmatpush1.msra.mxu0 0.0
    %634 = vmatprep.subr.mxu0 0.0
    %635 = vmatpush1.msra.mxu0 0.0
    %636 = vmatprep.subr.mxu0 0.0
    %637 = vmatpush1.msra.mxu0 0.0
    %638 = vmatprep.subr.mxu0 0.0
    %639 = vmatpush1.msra.mxu0 0.0
    %640 = vmatprep.subr.mxu0 0.0
    %641 = vmatpush1.msra.mxu0 0.0
    %642 = vmatprep.subr.mxu0 0.0
    %643 = vmatpush1.msra.mxu0 0.0
    %644 = vmatprep.subr.mxu0 0.0
    %645 = vmatpush1.msra.mxu0 0.0
    %646 = vmatprep.subr.mxu0 0.0
    %647 = vmatpush1.msra.mxu0 0.0
    %648 = vmatprep.subr.mxu0 0.0
    %649 = vmatpush1.msra.mxu0 0.0
    %650 = vmatprep.subr.mxu0 0.0
    %651 = vmatpush1.msra.mxu0 0.0
    %652 = vmatprep.subr.mxu0 0.0
    %653 = vmatpush1.msra.mxu0 0.0
    %654 = vmatprep.subr.mxu0 0.0
    %655 = vmatpush1.msra.mxu0 0.0
    %656 = vmatprep.subr.mxu0 0.0
    %657 = vmatpush1.msra.mxu0 0.0
    %658 = vmatprep.subr.mxu0 0.0
    %659 = vmatpush1.msra.mxu0 0.0
    %660 = vmatprep.subr.mxu0 0.0
    %661 = vmatpush1.msra.mxu0 0.0
    %662 = vmatprep.subr.mxu0 0.0
    %663 = vmatpush1.msra.mxu0 0.0
    %664 = vmatprep.subr.mxu0 0.0
    %665 = vmatpush1.msra.mxu0 0.0
    %666 = vmatprep.subr.mxu0 0.0
    %667 = vmatpush1.msra.mxu0 0.0
    %668 = vmatprep.subr.mxu0 0.0
    %669 = vmatpush1.msra.mxu0 0.0
    %670 = vmatprep.subr.mxu0 0.0
    %671 = vmatpush1.msra.mxu0 0.0
    %672 = vmatprep.subr.mxu0 0.0
    %673 = vmatpush1.msra.mxu0 0.0
    %674 = vmatprep.subr.mxu0 0.0
    %675 = vmatpush1.msra.mxu0 0.0
    %676 = vmatprep.mubr.f32.mxu0 0.0
    %677 = vmatmul.mubr.f32.gmra.mrb[0].mxu0 %v610
    %v678 = vpop.f32.mrb[0].mxu0
    %v679 = vadd.f32 0.0, %v678
    %v680 = vpop.f32.mrb[0].mxu0
    %v681 = vadd.f32 0.0, %v680
    %682 = vdwg.mxu0
    %v683 = vadd.f32 %v608, %v679
    %v684 = vadd.f32 %v609, %v681
    %v685 = vxor.u32 %v683, 2147483648
    %v686 = vxor.u32 %v684, 2147483648
    %v687 = vmul.f32 %v685, 1.442695
    %v688 = vpow.pop %v687
    %v689 = vmul.f32 %v686, 1.442695
    %v690 = vpow.pop %v689
    %v691 = vadd.f32 %v688, 1.0
    %v692 = vadd.f32 %v690, 1.0
    %v693 = vrcp.pop %v691
    %v694 = vmul.f32 1.0, %v693
    %v695 = vrcp.pop %v692
    %v696 = vmul.f32 1.0, %v695
    %v697 = vtanh.pop %v684
    %v698 = vmul.f32 %v694, %v584
    %v699 = vmul.f32 %v694, %v697
    %701 = vrot.lane.b32.xlu0 %v699, 64
    %v702 = vpop.permute.xlu0 %701
    %v704 = vadd.f32 %v698, %v702
    %v705 = vtanh.pop %v704
    %v706 = vmul.f32 %v696, %v705
    %708 = vrot.lane.b32.xlu0 %v706, 64
    %v709 = vpop.permute.xlu0 %708
    %s711 = scalar_lea.vmem [#allocation3], 16
    %712 = vst.msk [vmem:[%s711] sm:$0xff] %vm471, %v709
    %713 = vrot.lane.b32.xlu0 %v706, 32
    %v714 = vpop.permute.xlu0 %713
    %s716 = scalar_lea.vmem [#allocation4], 40
    %717 = vst.msk [vmem:[%s716] sm:$0xff] %vm471, %v714
    %s718 = smul.u32 3, 2
    %s719 = smul.addr %s718, 8
    %s720 = scalar_lea.vmem [#allocation2], %s719
    %v721 = vld [vmem:[%s720] sm:$0xff]
    %v722 = vld [vmem:[%s720 + $0x8] sm:$0xff]
    %s723 = smul.u32 4, 2
    %s724 = smul.addr %s723, 8
    %s725 = scalar_lea.vmem [#allocation2], %s724
    %v726 = vld [vmem:[%s725] sm:$0xff]
    %v727 = vld [vmem:[%s725 + $0x8] sm:$0xff]
    %v728 = vsel %vm149, %v721, %v726
    %v729 = vsel %vm150, %v722, %v727
    %v730 = vsel %vm187, %v709, 0
    %732 = vmatprep.subr.mxu0 %v342
    %733 = vmatpush1.msra.mxu0 %v341
    %734 = vmatprep.subr.mxu0 %v344
    %735 = vmatpush1.msra.mxu0 %v343
    %736 = vmatprep.subr.mxu0 %v346
    %737 = vmatpush1.msra.mxu0 %v345
    %738 = vmatprep.subr.mxu0 %v348
    %739 = vmatpush1.msra.mxu0 %v347
    %740 = vmatprep.subr.mxu0 %v350
    %741 = vmatpush1.msra.mxu0 %v349
    %742 = vmatprep.subr.mxu0 %v352
    %743 = vmatpush1.msra.mxu0 %v351
    %744 = vmatprep.subr.mxu0 %v354
    %745 = vmatpush1.msra.mxu0 %v353
    %746 = vmatprep.subr.mxu0 %v356
    %747 = vmatpush1.msra.mxu0 %v355
    %748 = vmatprep.subr.mxu0 0.0
    %749 = vmatpush1.msra.mxu0 0.0
    %750 = vmatprep.subr.mxu0 0.0
    %751 = vmatpush1.msra.mxu0 0.0
    %752 = vmatprep.subr.mxu0 0.0
    %753 = vmatpush1.msra.mxu0 0.0
    %754 = vmatprep.subr.mxu0 0.0
    %755 = vmatpush1.msra.mxu0 0.0
    %756 = vmatprep.subr.mxu0 0.0
    %757 = vmatpush1.msra.mxu0 0.0
    %758 = vmatprep.subr.mxu0 0.0
    %759 = vmatpush1.msra.mxu0 0.0
    %760 = vmatprep.subr.mxu0 0.0
    %761 = vmatpush1.msra.mxu0 0.0
    %762 = vmatprep.subr.mxu0 0.0
    %763 = vmatpush1.msra.mxu0 0.0
    %764 = vmatprep.subr.mxu0 0.0
    %765 = vmatpush1.msra.mxu0 0.0
    %766 = vmatprep.subr.mxu0 0.0
    %767 = vmatpush1.msra.mxu0 0.0
    %768 = vmatprep.subr.mxu0 0.0
    %769 = vmatpush1.msra.mxu0 0.0
    %770 = vmatprep.subr.mxu0 0.0
    %771 = vmatpush1.msra.mxu0 0.0
    %772 = vmatprep.subr.mxu0 0.0
    %773 = vmatpush1.msra.mxu0 0.0
    %774 = vmatprep.subr.mxu0 0.0
    %775 = vmatpush1.msra.mxu0 0.0
    %776 = vmatprep.subr.mxu0 0.0
    %777 = vmatpush1.msra.mxu0 0.0
    %778 = vmatprep.subr.mxu0 0.0
    %779 = vmatpush1.msra.mxu0 0.0
    %780 = vmatprep.subr.mxu0 0.0
    %781 = vmatpush1.msra.mxu0 0.0
    %782 = vmatprep.subr.mxu0 0.0
    %783 = vmatpush1.msra.mxu0 0.0
    %784 = vmatprep.subr.mxu0 0.0
    %785 = vmatpush1.msra.mxu0 0.0
    %786 = vmatprep.subr.mxu0 0.0
    %787 = vmatpush1.msra.mxu0 0.0
    %788 = vmatprep.subr.mxu0 0.0
    %789 = vmatpush1.msra.mxu0 0.0
    %790 = vmatprep.subr.mxu0 0.0
    %791 = vmatpush1.msra.mxu0 0.0
    %792 = vmatprep.subr.mxu0 0.0
    %793 = vmatpush1.msra.mxu0 0.0
    %794 = vmatprep.subr.mxu0 0.0
    %795 = vmatpush1.msra.mxu0 0.0
    %796 = vmatprep.mubr.f32.mxu0 0.0
    %797 = vmatmul.mubr.f32.gmra.mrb[0].mxu0 %v730
    %v798 = vpop.f32.mrb[0].mxu0
    %v799 = vadd.f32 0.0, %v798
    %v800 = vpop.f32.mrb[0].mxu0
    %v801 = vadd.f32 0.0, %v800
    %802 = vdwg.mxu0
    %v803 = vadd.f32 %v728, %v799
    %v804 = vadd.f32 %v729, %v801
    %v805 = vxor.u32 %v803, 2147483648
    %v806 = vxor.u32 %v804, 2147483648
    %v807 = vmul.f32 %v805, 1.442695
    %v808 = vpow.pop %v807
    %v809 = vmul.f32 %v806, 1.442695
    %v810 = vpow.pop %v809
    %v811 = vadd.f32 %v808, 1.0
    %v812 = vadd.f32 %v810, 1.0
    %v813 = vrcp.pop %v811
    %v814 = vmul.f32 1.0, %v813
    %v815 = vrcp.pop %v812
    %v816 = vmul.f32 1.0, %v815
    %v817 = vtanh.pop %v804
    %v818 = vmul.f32 %v814, %v704
    %v819 = vmul.f32 %v814, %v817
    %821 = vrot.lane.b32.xlu0 %v819, 64
    %v822 = vpop.permute.xlu0 %821
    %v824 = vadd.f32 %v818, %v822
    %v825 = vtanh.pop %v824
    %v826 = vmul.f32 %v816, %v825
    %828 = vrot.lane.b32.xlu0 %v826, 64
    %v829 = vpop.permute.xlu0 %828
    %s831 = scalar_lea.vmem [#allocation3], 24
    %832 = vst.msk [vmem:[%s831] sm:$0xff] %vm471, %v829
    %833 = vrot.lane.b32.xlu0 %v826, 32
    %v834 = vpop.permute.xlu0 %833
    %s836 = scalar_lea.vmem [#allocation4], 32
    %837 = vst.msk [vmem:[%s836] sm:$0xff] %vm471, %v834
    %v838 = vld [vmem:[%s725] sm:$0xff]
    %v839 = vld [vmem:[%s725 + $0x8] sm:$0xff]
    %v840 = vld [vmem:[%s720] sm:$0xff]
    %v841 = vld [vmem:[%s720 + $0x8] sm:$0xff]
    %v842 = vsel %vm149, %v838, %v840
    %v843 = vsel %vm150, %v839, %v841
    %v844 = vsel %vm187, %v829, 0
    %846 = vmatprep.subr.mxu0 %v342
    %847 = vmatpush1.msra.mxu0 %v341
    %848 = vmatprep.subr.mxu0 %v344
    %849 = vmatpush1.msra.mxu0 %v343
    %850 = vmatprep.subr.mxu0 %v346
    %851 = vmatpush1.msra.mxu0 %v345
    %852 = vmatprep.subr.mxu0 %v348
    %853 = vmatpush1.msra.mxu0 %v347
    %854 = vmatprep.subr.mxu0 %v350
    %855 = vmatpush1.msra.mxu0 %v349
    %856 = vmatprep.subr.mxu0 %v352
    %857 = vmatpush1.msra.mxu0 %v351
    %858 = vmatprep.subr.mxu0 %v354
    %859 = vmatpush1.msra.mxu0 %v353
    %860 = vmatprep.subr.mxu0 %v356
    %861 = vmatpush1.msra.mxu0 %v355
    %862 = vmatprep.subr.mxu0 0.0
    %863 = vmatpush1.msra.mxu0 0.0
    %864 = vmatprep.subr.mxu0 0.0
    %865 = vmatpush1.msra.mxu0 0.0
    %866 = vmatprep.subr.mxu0 0.0
    %867 = vmatpush1.msra.mxu0 0.0
    %868 = vmatprep.subr.mxu0 0.0
    %869 = vmatpush1.msra.mxu0 0.0
    %870 = vmatprep.subr.mxu0 0.0
    %871 = vmatpush1.msra.mxu0 0.0
    %872 = vmatprep.subr.mxu0 0.0
    %873 = vmatpush1.msra.mxu0 0.0
    %874 = vmatprep.subr.mxu0 0.0
    %875 = vmatpush1.msra.mxu0 0.0
    %876 = vmatprep.subr.mxu0 0.0
    %877 = vmatpush1.msra.mxu0 0.0
    %878 = vmatprep.subr.mxu0 0.0
    %879 = vmatpush1.msra.mxu0 0.0
    %880 = vmatprep.subr.mxu0 0.0
    %881 = vmatpush1.msra.mxu0 0.0
    %882 = vmatprep.subr.mxu0 0.0
    %883 = vmatpush1.msra.mxu0 0.0
    %884 = vmatprep.subr.mxu0 0.0
    %885 = vmatpush1.msra.mxu0 0.0
    %886 = vmatprep.subr.mxu0 0.0
    %887 = vmatpush1.msra.mxu0 0.0
    %888 = vmatprep.subr.mxu0 0.0
    %889 = vmatpush1.msra.mxu0 0.0
    %890 = vmatprep.subr.mxu0 0.0
    %891 = vmatpush1.msra.mxu0 0.0
    %892 = vmatprep.subr.mxu0 0.0
    %893 = vmatpush1.msra.mxu0 0.0
    %894 = vmatprep.subr.mxu0 0.0
    %895 = vmatpush1.msra.mxu0 0.0
    %896 = vmatprep.subr.mxu0 0.0
    %897 = vmatpush1.msra.mxu0 0.0
    %898 = vmatprep.subr.mxu0 0.0
    %899 = vmatpush1.msra.mxu0 0.0
    %900 = vmatprep.subr.mxu0 0.0
    %901 = vmatpush1.msra.mxu0 0.0
    %902 = vmatprep.subr.mxu0 0.0
    %903 = vmatpush1.msra.mxu0 0.0
    %904 = vmatprep.subr.mxu0 0.0
    %905 = vmatpush1.msra.mxu0 0.0
    %906 = vmatprep.subr.mxu0 0.0
    %907 = vmatpush1.msra.mxu0 0.0
    %908 = vmatprep.subr.mxu0 0.0
    %909 = vmatpush1.msra.mxu0 0.0
    %910 = vmatprep.mubr.f32.mxu0 0.0
    %911 = vmatmul.mubr.f32.gmra.mrb[0].mxu0 %v844
    %v912 = vpop.f32.mrb[0].mxu0
    %v913 = vadd.f32 0.0, %v912
    %v914 = vpop.f32.mrb[0].mxu0
    %v915 = vadd.f32 0.0, %v914
    %916 = vdwg.mxu0
    %v917 = vadd.f32 %v842, %v913
    %v918 = vadd.f32 %v843, %v915
    %v919 = vxor.u32 %v917, 2147483648
    %v920 = vxor.u32 %v918, 2147483648
    %v921 = vmul.f32 %v919, 1.442695
    %v922 = vpow.pop %v921
    %v923 = vmul.f32 %v920, 1.442695
    %v924 = vpow.pop %v923
    %v925 = vadd.f32 %v922, 1.0
    %v926 = vadd.f32 %v924, 1.0
    %v927 = vrcp.pop %v925
    %v928 = vmul.f32 1.0, %v927
    %v929 = vrcp.pop %v926
    %v930 = vmul.f32 1.0, %v929
    %v931 = vtanh.pop %v918
    %v932 = vmul.f32 %v928, %v824
    %v933 = vmul.f32 %v928, %v931
    %935 = vrot.lane.b32.xlu0 %v933, 64
    %v936 = vpop.permute.xlu0 %935
    %v938 = vadd.f32 %v932, %v936
    %v939 = vtanh.pop %v938
    %v940 = vmul.f32 %v930, %v939
    %942 = vrot.lane.b32.xlu0 %v940, 64
    %v943 = vpop.permute.xlu0 %942
    %s945 = scalar_lea.vmem [#allocation3], 32
    %946 = vst.msk [vmem:[%s945] sm:$0xff] %vm471, %v943
    %947 = vrot.lane.b32.xlu0 %v940, 32
    %v948 = vpop.permute.xlu0 %947
    %s950 = scalar_lea.vmem [#allocation4], 24
    %951 = vst.msk [vmem:[%s950] sm:$0xff] %vm471, %v948
    %v952 = vld [vmem:[%s605] sm:$0xff]
    %v953 = vld [vmem:[%s605 + $0x8] sm:$0xff]
    %v954 = vld [vmem:[%s600] sm:$0xff]
    %v955 = vld [vmem:[%s600 + $0x8] sm:$0xff]
    %v956 = vsel %vm149, %v952, %v954
    %v957 = vsel %vm150, %v953, %v955
    %v958 = vsel %vm187, %v943, 0
    %960 = vmatprep.subr.mxu0 %v342
    %961 = vmatpush1.msra.mxu0 %v341
    %962 = vmatprep.subr.mxu0 %v344
    %963 = vmatpush1.msra.mxu0 %v343
    %964 = vmatprep.subr.mxu0 %v346
    %965 = vmatpush1.msra.mxu0 %v345
    %966 = vmatprep.subr.mxu0 %v348
    %967 = vmatpush1.msra.mxu0 %v347
    %968 = vmatprep.subr.mxu0 %v350
    %969 = vmatpush1.msra.mxu0 %v349
    %970 = vmatprep.subr.mxu0 %v352
    %971 = vmatpush1.msra.mxu0 %v351
    %972 = vmatprep.subr.mxu0 %v354
    %973 = vmatpush1.msra.mxu0 %v353
    %974 = vmatprep.subr.mxu0 %v356
    %975 = vmatpush1.msra.mxu0 %v355
    %976 = vmatprep.subr.mxu0 0.0
    %977 = vmatpush1.msra.mxu0 0.0
    %978 = vmatprep.subr.mxu0 0.0
    %979 = vmatpush1.msra.mxu0 0.0
    %980 = vmatprep.subr.mxu0 0.0
    %981 = vmatpush1.msra.mxu0 0.0
    %982 = vmatprep.subr.mxu0 0.0
    %983 = vmatpush1.msra.mxu0 0.0
    %984 = vmatprep.subr.mxu0 0.0
    %985 = vmatpush1.msra.mxu0 0.0
    %986 = vmatprep.subr.mxu0 0.0
    %987 = vmatpush1.msra.mxu0 0.0
    %988 = vmatprep.subr.mxu0 0.0
    %989 = vmatpush1.msra.mxu0 0.0
    %990 = vmatprep.subr.mxu0 0.0
    %991 = vmatpush1.msra.mxu0 0.0
    %992 = vmatprep.subr.mxu0 0.0
    %993 = vmatpush1.msra.mxu0 0.0
    %994 = vmatprep.subr.mxu0 0.0
    %995 = vmatpush1.msra.mxu0 0.0
    %996 = vmatprep.subr.mxu0 0.0
    %997 = vmatpush1.msra.mxu0 0.0
    %998 = vmatprep.subr.mxu0 0.0
    %999 = vmatpush1.msra.mxu0 0.0
    %1000 = vmatprep.subr.mxu0 0.0
    %1001 = vmatpush1.msra.mxu0 0.0
    %1002 = vmatprep.subr.mxu0 0.0
    %1003 = vmatpush1.msra.mxu0 0.0
    %1004 = vmatprep.subr.mxu0 0.0
    %1005 = vmatpush1.msra.mxu0 0.0
    %1006 = vmatprep.subr.mxu0 0.0
    %1007 = vmatpush1.msra.mxu0 0.0
    %1008 = vmatprep.subr.mxu0 0.0
    %1009 = vmatpush1.msra.mxu0 0.0
    %1010 = vmatprep.subr.mxu0 0.0
    %1011 = vmatpush1.msra.mxu0 0.0
    %1012 = vmatprep.subr.mxu0 0.0
    %1013 = vmatpush1.msra.mxu0 0.0
    %1014 = vmatprep.subr.mxu0 0.0
    %1015 = vmatpush1.msra.mxu0 0.0
    %1016 = vmatprep.subr.mxu0 0.0
    %1017 = vmatpush1.msra.mxu0 0.0
    %1018 = vmatprep.subr.mxu0 0.0
    %1019 = vmatpush1.msra.mxu0 0.0
    %1020 = vmatprep.subr.mxu0 0.0
    %1021 = vmatpush1.msra.mxu0 0.0
    %1022 = vmatprep.subr.mxu0 0.0
    %1023 = vmatpush1.msra.mxu0 0.0
    %1024 = vmatprep.mubr.f32.mxu0 0.0
    %1025 = vmatmul.mubr.f32.gmra.mrb[0].mxu0 %v958
    %v1026 = vpop.f32.mrb[0].mxu0
    %v1027 = vadd.f32 0.0, %v1026
    %v1028 = vpop.f32.mrb[0].mxu0
    %v1029 = vadd.f32 0.0, %v1028
    %1030 = vdwg.mxu0
    %v1031 = vadd.f32 %v956, %v1027
    %v1032 = vadd.f32 %v957, %v1029
    %v1033 = vxor.u32 %v1031, 2147483648
    %v1034 = vxor.u32 %v1032, 2147483648
    %v1035 = vmul.f32 %v1033, 1.442695
    %v1036 = vpow.pop %v1035
    %v1037 = vmul.f32 %v1034, 1.442695
    %v1038 = vpow.pop %v1037
    %v1039 = vadd.f32 %v1036, 1.0
    %v1040 = vadd.f32 %v1038, 1.0
    %v1041 = vrcp.pop %v1039
    %v1042 = vmul.f32 1.0, %v1041
    %v1043 = vrcp.pop %v1040
    %v1044 = vmul.f32 1.0, %v1043
    %v1045 = vtanh.pop %v1032
    %v1046 = vmul.f32 %v1042, %v938
    %v1047 = vmul.f32 %v1042, %v1045
    %1049 = vrot.lane.b32.xlu0 %v1047, 64
    %v1050 = vpop.permute.xlu0 %1049
    %v1052 = vadd.f32 %v1046, %v1050
    %v1053 = vtanh.pop %v1052
    %v1054 = vmul.f32 %v1044, %v1053
    %1056 = vrot.lane.b32.xlu0 %v1054, 64
    %v1057 = vpop.permute.xlu0 %1056
    %s1059 = scalar_lea.vmem [#allocation3], 40
    %1060 = vst.msk [vmem:[%s1059] sm:$0xff] %vm471, %v1057
    %1061 = vrot.lane.b32.xlu0 %v1054, 32
    %v1062 = vpop.permute.xlu0 %1061
    %s1064 = scalar_lea.vmem [#allocation4], 16
    %1065 = vst.msk [vmem:[%s1064] sm:$0xff] %vm471, %v1062
    %v1066 = vld [vmem:[%s485] sm:$0xff]
    %v1067 = vld [vmem:[%s485 + $0x8] sm:$0xff]
    %v1068 = vld [vmem:[%s480] sm:$0xff]
    %v1069 = vld [vmem:[%s480 + $0x8] sm:$0xff]
    %v1070 = vsel %vm149, %v1066, %v1068
    %v1071 = vsel %vm150, %v1067, %v1069
    %v1072 = vsel %vm187, %v1057, 0
    %1074 = vmatprep.subr.mxu0 %v342
    %1075 = vmatpush1.msra.mxu0 %v341
    %1076 = vmatprep.subr.mxu0 %v344
    %1077 = vmatpush1.msra.mxu0 %v343
    %1078 = vmatprep.subr.mxu0 %v346
    %1079 = vmatpush1.msra.mxu0 %v345
    %1080 = vmatprep.subr.mxu0 %v348
    %1081 = vmatpush1.msra.mxu0 %v347
    %1082 = vmatprep.subr.mxu0 %v350
    %1083 = vmatpush1.msra.mxu0 %v349
    %1084 = vmatprep.subr.mxu0 %v352
    %1085 = vmatpush1.msra.mxu0 %v351
    %1086 = vmatprep.subr.mxu0 %v354
    %1087 = vmatpush1.msra.mxu0 %v353
    %1088 = vmatprep.subr.mxu0 %v356
    %1089 = vmatpush1.msra.mxu0 %v355
    %1090 = vmatprep.subr.mxu0 0.0
    %1091 = vmatpush1.msra.mxu0 0.0
    %1092 = vmatprep.subr.mxu0 0.0
    %1093 = vmatpush1.msra.mxu0 0.0
    %1094 = vmatprep.subr.mxu0 0.0
    %1095 = vmatpush1.msra.mxu0 0.0
    %1096 = vmatprep.subr.mxu0 0.0
    %1097 = vmatpush1.msra.mxu0 0.0
    %1098 = vmatprep.subr.mxu0 0.0
    %1099 = vmatpush1.msra.mxu0 0.0
    %1100 = vmatprep.subr.mxu0 0.0
    %1101 = vmatpush1.msra.mxu0 0.0
    %1102 = vmatprep.subr.mxu0 0.0
    %1103 = vmatpush1.msra.mxu0 0.0
    %1104 = vmatprep.subr.mxu0 0.0
    %1105 = vmatpush1.msra.mxu0 0.0
    %1106 = vmatprep.subr.mxu0 0.0
    %1107 = vmatpush1.msra.mxu0 0.0
    %1108 = vmatprep.subr.mxu0 0.0
    %1109 = vmatpush1.msra.mxu0 0.0
    %1110 = vmatprep.subr.mxu0 0.0
    %1111 = vmatpush1.msra.mxu0 0.0
    %1112 = vmatprep.subr.mxu0 0.0
    %1113 = vmatpush1.msra.mxu0 0.0
    %1114 = vmatprep.subr.mxu0 0.0
    %1115 = vmatpush1.msra.mxu0 0.0
    %1116 = vmatprep.subr.mxu0 0.0
    %1117 = vmatpush1.msra.mxu0 0.0
    %1118 = vmatprep.subr.mxu0 0.0
    %1119 = vmatpush1.msra.mxu0 0.0
    %1120 = vmatprep.subr.mxu0 0.0
    %1121 = vmatpush1.msra.mxu0 0.0
    %1122 = vmatprep.subr.mxu0 0.0
    %1123 = vmatpush1.msra.mxu0 0.0
    %1124 = vmatprep.subr.mxu0 0.0
    %1125 = vmatpush1.msra.mxu0 0.0
    %1126 = vmatprep.subr.mxu0 0.0
    %1127 = vmatpush1.msra.mxu0 0.0
    %1128 = vmatprep.subr.mxu0 0.0
    %1129 = vmatpush1.msra.mxu0 0.0
    %1130 = vmatprep.subr.mxu0 0.0
    %1131 = vmatpush1.msra.mxu0 0.0
    %1132 = vmatprep.subr.mxu0 0.0
    %1133 = vmatpush1.msra.mxu0 0.0
    %1134 = vmatprep.subr.mxu0 0.0
    %1135 = vmatpush1.msra.mxu0 0.0
    %1136 = vmatprep.subr.mxu0 0.0
    %1137 = vmatpush1.msra.mxu0 0.0
    %1138 = vmatprep.mubr.f32.mxu0 0.0
    %1139 = vmatmul.mubr.f32.gmra.mrb[0].mxu0 %v1072
    %v1140 = vpop.f32.mrb[0].mxu0
    %v1141 = vadd.f32 0.0, %v1140
    %v1142 = vpop.f32.mrb[0].mxu0
    %v1143 = vadd.f32 0.0, %v1142
    %1144 = vdwg.mxu0
    %v1145 = vadd.f32 %v1070, %v1141
    %v1146 = vadd.f32 %v1071, %v1143
    %v1147 = vxor.u32 %v1145, 2147483648
    %v1148 = vxor.u32 %v1146, 2147483648
    %v1149 = vmul.f32 %v1147, 1.442695
    %v1150 = vpow.pop %v1149
    %v1151 = vmul.f32 %v1148, 1.442695
    %v1152 = vpow.pop %v1151
    %v1153 = vadd.f32 %v1150, 1.0
    %v1154 = vadd.f32 %v1152, 1.0
    %v1155 = vrcp.pop %v1153
    %v1156 = vmul.f32 1.0, %v1155
    %v1157 = vrcp.pop %v1154
    %v1158 = vmul.f32 1.0, %v1157
    %v1159 = vtanh.pop %v1146
    %v1160 = vmul.f32 %v1156, %v1052
    %v1161 = vmul.f32 %v1156, %v1159
    %1163 = vrot.lane.b32.xlu0 %v1161, 64
    %v1164 = vpop.permute.xlu0 %1163
    %v1166 = vadd.f32 %v1160, %v1164
    %v1167 = vtanh.pop %v1166
    %v1168 = vmul.f32 %v1158, %v1167
    %1170 = vrot.lane.b32.xlu0 %v1168, 64
    %v1171 = vpop.permute.xlu0 %1170
    %s1173 = scalar_lea.vmem [#allocation3], 48
    %1174 = vst.msk [vmem:[%s1173] sm:$0xff] %vm471, %v1171
    %1175 = vrot.lane.b32.xlu0 %v1168, 32
    %v1176 = vpop.permute.xlu0 %1175
    %s1178 = scalar_lea.vmem [#allocation4], 8
    %1179 = vst.msk [vmem:[%s1178] sm:$0xff] %vm471, %v1176
    %v1180 = vld [vmem:[%s364] sm:$0xff]
    %v1181 = vld [vmem:[%s364 + $0x8] sm:$0xff]
    %v1182 = vld [vmem:[%s359] sm:$0xff]
    %v1183 = vld [vmem:[%s359 + $0x8] sm:$0xff]
    %v1184 = vsel %vm149, %v1180, %v1182
    %v1185 = vsel %vm150, %v1181, %v1183
    %v1186 = vsel %vm187, %v1171, 0
    %1188 = vmatprep.subr.mxu0 %v342
    %1189 = vmatpush1.msra.mxu0 %v341
    %1190 = vmatprep.subr.mxu0 %v344
    %1191 = vmatpush1.msra.mxu0 %v343
    %1192 = vmatprep.subr.mxu0 %v346
    %1193 = vmatpush1.msra.mxu0 %v345
    %1194 = vmatprep.subr.mxu0 %v348
    %1195 = vmatpush1.msra.mxu0 %v347
    %1196 = vmatprep.subr.mxu0 %v350
    %1197 = vmatpush1.msra.mxu0 %v349
    %1198 = vmatprep.subr.mxu0 %v352
    %1199 = vmatpush1.msra.mxu0 %v351
    %1200 = vmatprep.subr.mxu0 %v354
    %1201 = vmatpush1.msra.mxu0 %v353
    %1202 = vmatprep.subr.mxu0 %v356
    %1203 = vmatpush1.msra.mxu0 %v355
    %1204 = vmatprep.subr.mxu0 0.0
    %1205 = vmatpush1.msra.mxu0 0.0
    %1206 = vmatprep.subr.mxu0 0.0
    %1207 = vmatpush1.msra.mxu0 0.0
    %1208 = vmatprep.subr.mxu0 0.0
    %1209 = vmatpush1.msra.mxu0 0.0
    %1210 = vmatprep.subr.mxu0 0.0
    %1211 = vmatpush1.msra.mxu0 0.0
    %1212 = vmatprep.subr.mxu0 0.0
    %1213 = vmatpush1.msra.mxu0 0.0
    %1214 = vmatprep.subr.mxu0 0.0
    %1215 = vmatpush1.msra.mxu0 0.0
    %1216 = vmatprep.subr.mxu0 0.0
    %1217 = vmatpush1.msra.mxu0 0.0
    %1218 = vmatprep.subr.mxu0 0.0
    %1219 = vmatpush1.msra.mxu0 0.0
    %1220 = vmatprep.subr.mxu0 0.0
    %1221 = vmatpush1.msra.mxu0 0.0
    %1222 = vmatprep.subr.mxu0 0.0
    %1223 = vmatpush1.msra.mxu0 0.0
    %1224 = vmatprep.subr.mxu0 0.0
    %1225 = vmatpush1.msra.mxu0 0.0
    %1226 = vmatprep.subr.mxu0 0.0
    %1227 = vmatpush1.msra.mxu0 0.0
    %1228 = vmatprep.subr.mxu0 0.0
    %1229 = vmatpush1.msra.mxu0 0.0
    %1230 = vmatprep.subr.mxu0 0.0
    %1231 = vmatpush1.msra.mxu0 0.0
    %1232 = vmatprep.subr.mxu0 0.0
    %1233 = vmatpush1.msra.mxu0 0.0
    %1234 = vmatprep.subr.mxu0 0.0
    %1235 = vmatpush1.msra.mxu0 0.0
    %1236 = vmatprep.subr.mxu0 0.0
    %1237 = vmatpush1.msra.mxu0 0.0
    %1238 = vmatprep.subr.mxu0 0.0
    %1239 = vmatpush1.msra.mxu0 0.0
    %1240 = vmatprep.subr.mxu0 0.0
    %1241 = vmatpush1.msra.mxu0 0.0
    %1242 = vmatprep.subr.mxu0 0.0
    %1243 = vmatpush1.msra.mxu0 0.0
    %1244 = vmatprep.subr.mxu0 0.0
    %1245 = vmatpush1.msra.mxu0 0.0
    %1246 = vmatprep.subr.mxu0 0.0
    %1247 = vmatpush1.msra.mxu0 0.0
    %1248 = vmatprep.subr.mxu0 0.0
    %1249 = vmatpush1.msra.mxu0 0.0
    %1250 = vmatprep.subr.mxu0 0.0
    %1251 = vmatpush1.msra.mxu0 0.0
    %1252 = vmatprep.mubr.f32.mxu0 0.0
    %1253 = vmatmul.mubr.f32.gmra.mrb[0].mxu0 %v1186
    %v1254 = vpop.f32.mrb[0].mxu0
    %v1255 = vadd.f32 0.0, %v1254
    %v1256 = vpop.f32.mrb[0].mxu0
    %v1257 = vadd.f32 0.0, %v1256
    %1258 = vdwg.mxu0
    %v1259 = vadd.f32 %v1184, %v1255
    %v1260 = vadd.f32 %v1185, %v1257
    %v1261 = vxor.u32 %v1259, 2147483648
    %v1262 = vxor.u32 %v1260, 2147483648
    %v1263 = vmul.f32 %v1261, 1.442695
    %v1264 = vpow.pop %v1263
    %v1265 = vmul.f32 %v1262, 1.442695
    %v1266 = vpow.pop %v1265
    %v1267 = vadd.f32 %v1264, 1.0
    %v1268 = vadd.f32 %v1266, 1.0
    %v1269 = vrcp.pop %v1267
    %v1270 = vmul.f32 1.0, %v1269
    %v1271 = vrcp.pop %v1268
    %v1272 = vmul.f32 1.0, %v1271
    %v1273 = vtanh.pop %v1260
    %v1274 = vmul.f32 %v1270, %v1166
    %v1275 = vmul.f32 %v1270, %v1273
    %1277 = vrot.lane.b32.xlu0 %v1275, 64
    %v1278 = vpop.permute.xlu0 %1277
    %v1280 = vadd.f32 %v1274, %v1278
    %v1281 = vtanh.pop %v1280
    %v1282 = vmul.f32 %v1272, %v1281
    %1284 = vrot.lane.b32.xlu0 %v1282, 64
    %v1285 = vpop.permute.xlu0 %1284
    %s1287 = scalar_lea.vmem [#allocation3], 56
    %1288 = vst.msk [vmem:[%s1287] sm:$0xff] %vm471, %v1285
    %1289 = vrot.lane.b32.xlu0 %v1282, 32
    %v1290 = vpop.permute.xlu0 %1289
    %1292 = vst.msk [vmem:[#allocation4] sm:$0xff] %vm471, %v1290
    %v1293 = vld [vmem:[#allocation3] sm:$0xff]
    %v1294 = vld [vmem:[#allocation3 + $0x8] sm:$0xff]
    %v1295 = vld [vmem:[#allocation3 + $0x10] sm:$0xff]
    %v1296 = vld [vmem:[#allocation3 + $0x18] sm:$0xff]
    %v1297 = vld [vmem:[#allocation3 + $0x20] sm:$0xff]
    %v1298 = vld [vmem:[#allocation3 + $0x28] sm:$0xff]
    %v1299 = vld [vmem:[#allocation3 + $0x30] sm:$0xff]
    %v1300 = vld [vmem:[#allocation3 + $0x38] sm:$0xff]
    %v1301 = vld [vmem:[#allocation11] sm:$0xff]
    %v1302 = vld [vmem:[#allocation11 + $0x8] sm:$0xff]
    %v1303 = vld [vmem:[#allocation11 + $0x10] sm:$0xff]
    %v1304 = vld [vmem:[#allocation11 + $0x18] sm:$0xff]
    %v1305 = vld [vmem:[#allocation11 + $0x20] sm:$0xff]
    %v1306 = vld [vmem:[#allocation11 + $0x28] sm:$0xff]
    %v1307 = vld [vmem:[#allocation11 + $0x30] sm:$0xff]
    %v1308 = vld [vmem:[#allocation11 + $0x38] sm:$0xff]
    %v1309 = vld [vmem:[#allocation4] sm:$0xff]
    %v1310 = vld [vmem:[#allocation4 + $0x8] sm:$0xff]
    %v1311 = vld [vmem:[#allocation4 + $0x10] sm:$0xff]
    %v1312 = vld [vmem:[#allocation4 + $0x18] sm:$0xff]
    %v1313 = vld [vmem:[#allocation4 + $0x20] sm:$0xff]
    %v1314 = vld [vmem:[#allocation4 + $0x28] sm:$0xff]
    %v1315 = vld [vmem:[#allocation4 + $0x30] sm:$0xff]
    %v1316 = vld [vmem:[#allocation4 + $0x38] sm:$0xff]
    %s1317 = scalar_lea.vmem [#allocation11], 64
    %v1318 = vld [vmem:[%s1317] sm:$0xff]
    %v1319 = vld [vmem:[%s1317 + $0x8] sm:$0xff]
    %v1320 = vld [vmem:[%s1317 + $0x10] sm:$0xff]
    %v1321 = vld [vmem:[%s1317 + $0x18] sm:$0xff]
    %v1322 = vld [vmem:[%s1317 + $0x20] sm:$0xff]
    %v1323 = vld [vmem:[%s1317 + $0x28] sm:$0xff]
    %v1324 = vld [vmem:[%s1317 + $0x30] sm:$0xff]
    %v1325 = vld [vmem:[%s1317 + $0x38] sm:$0xff]
    %v1327 = vsel %vm471, %v1309, 0
    %v1330 = vsel %vm471, %v1310, 0
    %v1333 = vsel %vm471, %v1311, 0
    %v1336 = vsel %vm471, %v1312, 0
    %v1339 = vsel %vm471, %v1313, 0
    %v1342 = vsel %vm471, %v1314, 0
    %v1345 = vsel %vm471, %v1315, 0
    %v1348 = vsel %vm471, %v1316, 0
    %1350 = vmatprep.subr.mxu0 %v1319
    %1351 = vmatpush1.msra.mxu0 %v1318
    %1352 = vmatprep.subr.mxu0 %v1321
    %1353 = vmatpush1.msra.mxu0 %v1320
    %1354 = vmatprep.subr.mxu0 %v1323
    %1355 = vmatpush1.msra.mxu0 %v1322
    %1356 = vmatprep.subr.mxu0 %v1325
    %1357 = vmatpush1.msra.mxu0 %v1324
    %1358 = vmatprep.subr.mxu0 0.0
    %1359 = vmatpush1.msra.mxu0 0.0
    %1360 = vmatprep.subr.mxu0 0.0
    %1361 = vmatpush1.msra.mxu0 0.0
    %1362 = vmatprep.subr.mxu0 0.0
    %1363 = vmatpush1.msra.mxu0 0.0
    %1364 = vmatprep.subr.mxu0 0.0
    %1365 = vmatpush1.msra.mxu0 0.0
    %1366 = vmatprep.subr.mxu0 0.0
    %1367 = vmatpush1.msra.mxu0 0.0
    %1368 = vmatprep.subr.mxu0 0.0
    %1369 = vmatpush1.msra.mxu0 0.0
    %1370 = vmatprep.subr.mxu0 0.0
    %1371 = vmatpush1.msra.mxu0 0.0
    %1372 = vmatprep.subr.mxu0 0.0
    %1373 = vmatpush1.msra.mxu0 0.0
    %1374 = vmatprep.subr.mxu0 0.0
    %1375 = vmatpush1.msra.mxu0 0.0
    %1376 = vmatprep.subr.mxu0 0.0
    %1377 = vmatpush1.msra.mxu0 0.0
    %1378 = vmatprep.subr.mxu0 0.0
    %1379 = vmatpush1.msra.mxu0 0.0
    %1380 = vmatprep.subr.mxu0 0.0
    %1381 = vmatpush1.msra.mxu0 0.0
    %1382 = vmatprep.subr.mxu0 0.0
    %1383 = vmatpush1.msra.mxu0 0.0
    %1384 = vmatprep.subr.mxu0 0.0
    %1385 = vmatpush1.msra.mxu0 0.0
    %1386 = vmatprep.subr.mxu0 0.0
    %1387 = vmatpush1.msra.mxu0 0.0
    %1388 = vmatprep.subr.mxu0 0.0
    %1389 = vmatpush1.msra.mxu0 0.0
    %1390 = vmatprep.subr.mxu0 0.0
    %1391 = vmatpush1.msra.mxu0 0.0
    %1392 = vmatprep.subr.mxu0 0.0
    %1393 = vmatpush1.msra.mxu0 0.0
    %1394 = vmatprep.subr.mxu0 0.0
    %1395 = vmatpush1.msra.mxu0 0.0
    %1396 = vmatprep.subr.mxu0 0.0
    %1397 = vmatpush1.msra.mxu0 0.0
    %1398 = vmatprep.subr.mxu0 0.0
    %1399 = vmatpush1.msra.mxu0 0.0
    %1400 = vmatprep.subr.mxu0 0.0
    %1401 = vmatpush1.msra.mxu0 0.0
    %1402 = vmatprep.subr.mxu0 0.0
    %1403 = vmatpush1.msra.mxu0 0.0
    %1404 = vmatprep.subr.mxu0 0.0
    %1405 = vmatpush1.msra.mxu0 0.0
    %1406 = vmatprep.subr.mxu0 0.0
    %1407 = vmatpush1.msra.mxu0 0.0
    %1408 = vmatprep.subr.mxu0 0.0
    %1409 = vmatpush1.msra.mxu0 0.0
    %1410 = vmatprep.subr.mxu0 0.0
    %1411 = vmatpush1.msra.mxu0 0.0
    %1412 = vmatprep.subr.mxu0 0.0
    %1413 = vmatpush1.msra.mxu0 0.0
    %1414 = vmatprep.mubr.f32.mxu0 0.0
    %1415 = vmatmul.mubr.f32.gmra.mrb[0].mxu0 %v1327
    %v1416 = vpop.f32.mrb[0].mxu0
    %v1417 = vadd.f32 0.0, %v1416
    %v1418 = vpop.f32.mrb[0].mxu0
    %v1419 = vadd.f32 0.0, %v1418
    %1420 = vmatprep.mubr.f32.mxu0 0.0
    %1421 = vmatmul.mubr.f32.gmra.mrb[0].mxu0 %v1330
    %v1422 = vpop.f32.mrb[0].mxu0
    %v1423 = vadd.f32 0.0, %v1422
    %v1424 = vpop.f32.mrb[0].mxu0
    %v1425 = vadd.f32 0.0, %v1424
    %1426 = vmatprep.mubr.f32.mxu0 0.0
    %1427 = vmatmul.mubr.f32.gmra.mrb[0].mxu0 %v1333
    %v1428 = vpop.f32.mrb[0].mxu0
    %v1429 = vadd.f32 0.0, %v1428
    %v1430 = vpop.f32.mrb[0].mxu0
    %v1431 = vadd.f32 0.0, %v1430
    %1432 = vmatprep.mubr.f32.mxu0 0.0
    %1433 = vmatmul.mubr.f32.gmra.mrb[0].mxu0 %v1336
    %v1434 = vpop.f32.mrb[0].mxu0
    %v1435 = vadd.f32 0.0, %v1434
    %v1436 = vpop.f32.mrb[0].mxu0
    %v1437 = vadd.f32 0.0, %v1436
    %1438 = vmatprep.mubr.f32.mxu0 0.0
    %1439 = vmatmul.mubr.f32.gmra.mrb[0].mxu0 %v1339
    %v1440 = vpop.f32.mrb[0].mxu0
    %v1441 = vadd.f32 0.0, %v1440
    %v1442 = vpop.f32.mrb[0].mxu0
    %v1443 = vadd.f32 0.0, %v1442
    %1444 = vmatprep.mubr.f32.mxu0 0.0
    %1445 = vmatmul.mubr.f32.gmra.mrb[0].mxu0 %v1342
    %v1446 = vpop.f32.mrb[0].mxu0
    %v1447 = vadd.f32 0.0, %v1446
    %v1448 = vpop.f32.mrb[0].mxu0
    %v1449 = vadd.f32 0.0, %v1448
    %1450 = vmatprep.mubr.f32.mxu0 0.0
    %1451 = vmatmul.mubr.f32.gmra.mrb[0].mxu0 %v1345
    %v1452 = vpop.f32.mrb[0].mxu0
    %v1453 = vadd.f32 0.0, %v1452
    %v1454 = vpop.f32.mrb[0].mxu0
    %v1455 = vadd.f32 0.0, %v1454
    %1456 = vmatprep.mubr.f32.mxu0 0.0
    %1457 = vmatmul.mubr.f32.gmra.mrb[0].mxu0 %v1348
    %v1458 = vpop.f32.mrb[0].mxu0
    %v1459 = vadd.f32 0.0, %v1458
    %v1460 = vpop.f32.mrb[0].mxu0
    %v1461 = vadd.f32 0.0, %v1460
    %1462 = vdwg.mxu0
    %v1464 = vsel %vm471, %v1293, 0
    %v1467 = vsel %vm471, %v1294, 0
    %v1470 = vsel %vm471, %v1295, 0
    %v1473 = vsel %vm471, %v1296, 0
    %v1476 = vsel %vm471, %v1297, 0
    %v1479 = vsel %vm471, %v1298, 0
    %v1482 = vsel %vm471, %v1299, 0
    %v1485 = vsel %vm471, %v1300, 0
    %1487 = vmatprep.subr.mxu0 %v1302
    %1488 = vmatpush1.msra.mxu0 %v1301
    %1489 = vmatprep.subr.mxu0 %v1304
    %1490 = vmatpush1.msra.mxu0 %v1303
    %1491 = vmatprep.subr.mxu0 %v1306
    %1492 = vmatpush1.msra.mxu0 %v1305
    %1493 = vmatprep.subr.mxu0 %v1308
    %1494 = vmatpush1.msra.mxu0 %v1307
    %1495 = vmatprep.subr.mxu0 0.0
    %1496 = vmatpush1.msra.mxu0 0.0
    %1497 = vmatprep.subr.mxu0 0.0
    %1498 = vmatpush1.msra.mxu0 0.0
    %1499 = vmatprep.subr.mxu0 0.0
    %1500 = vmatpush1.msra.mxu0 0.0
    %1501 = vmatprep.subr.mxu0 0.0
    %1502 = vmatpush1.msra.mxu0 0.0
    %1503 = vmatprep.subr.mxu0 0.0
    %1504 = vmatpush1.msra.mxu0 0.0
    %1505 = vmatprep.subr.mxu0 0.0
    %1506 = vmatpush1.msra.mxu0 0.0
    %1507 = vmatprep.subr.mxu0 0.0
    %1508 = vmatpush1.msra.mxu0 0.0
    %1509 = vmatprep.subr.mxu0 0.0
    %1510 = vmatpush1.msra.mxu0 0.0
    %1511 = vmatprep.subr.mxu0 0.0
    %1512 = vmatpush1.msra.mxu0 0.0
    %1513 = vmatprep.subr.mxu0 0.0
    %1514 = vmatpush1.msra.mxu0 0.0
    %1515 = vmatprep.subr.mxu0 0.0
    %1516 = vmatpush1.msra.mxu0 0.0
    %1517 = vmatprep.subr.mxu0 0.0
    %1518 = vmatpush1.msra.mxu0 0.0
    %1519 = vmatprep.subr.mxu0 0.0
    %1520 = vmatpush1.msra.mxu0 0.0
    %1521 = vmatprep.subr.mxu0 0.0
    %1522 = vmatpush1.msra.mxu0 0.0
    %1523 = vmatprep.subr.mxu0 0.0
    %1524 = vmatpush1.msra.mxu0 0.0
    %1525 = vmatprep.subr.mxu0 0.0
    %1526 = vmatpush1.msra.mxu0 0.0
    %1527 = vmatprep.subr.mxu0 0.0
    %1528 = vmatpush1.msra.mxu0 0.0
    %1529 = vmatprep.subr.mxu0 0.0
    %1530 = vmatpush1.msra.mxu0 0.0
    %1531 = vmatprep.subr.mxu0 0.0
    %1532 = vmatpush1.msra.mxu0 0.0
    %1533 = vmatprep.subr.mxu0 0.0
    %1534 = vmatpush1.msra.mxu0 0.0
    %1535 = vmatprep.subr.mxu0 0.0
    %1536 = vmatpush1.msra.mxu0 0.0
    %1537 = vmatprep.subr.mxu0 0.0
    %1538 = vmatpush1.msra.mxu0 0.0
    %1539 = vmatprep.subr.mxu0 0.0
    %1540 = vmatpush1.msra.mxu0 0.0
    %1541 = vmatprep.subr.mxu0 0.0
    %1542 = vmatpush1.msra.mxu0 0.0
    %1543 = vmatprep.subr.mxu0 0.0
    %1544 = vmatpush1.msra.mxu0 0.0
    %1545 = vmatprep.subr.mxu0 0.0
    %1546 = vmatpush1.msra.mxu0 0.0
    %1547 = vmatprep.subr.mxu0 0.0
    %1548 = vmatpush1.msra.mxu0 0.0
    %1549 = vmatprep.subr.mxu0 0.0
    %1550 = vmatpush1.msra.mxu0 0.0
    %1551 = vmatprep.mubr.f32.mxu0 0.0
    %1552 = vmatmul.mubr.f32.gmra.mrb[0].mxu0 %v1464
    %v1553 = vpop.f32.mrb[0].mxu0
    %v1554 = vadd.f32 %v1417, %v1553
    %v1555 = vpop.f32.mrb[0].mxu0
    %v1556 = vadd.f32 %v1419, %v1555
    %1557 = vmatprep.mubr.f32.mxu0 0.0
    %1558 = vmatmul.mubr.f32.gmra.mrb[0].mxu0 %v1467
    %v1559 = vpop.f32.mrb[0].mxu0
    %v1560 = vadd.f32 %v1423, %v1559
    %v1561 = vpop.f32.mrb[0].mxu0
    %v1562 = vadd.f32 %v1425, %v1561
    %1563 = vmatprep.mubr.f32.mxu0 0.0
    %1564 = vmatmul.mubr.f32.gmra.mrb[0].mxu0 %v1470
    %v1565 = vpop.f32.mrb[0].mxu0
    %v1566 = vadd.f32 %v1429, %v1565
    %v1567 = vpop.f32.mrb[0].mxu0
    %v1568 = vadd.f32 %v1431, %v1567
    %1569 = vmatprep.mubr.f32.mxu0 0.0
    %1570 = vmatmul.mubr.f32.gmra.mrb[0].mxu0 %v1473
    %v1571 = vpop.f32.mrb[0].mxu0
    %v1572 = vadd.f32 %v1435, %v1571
    %v1573 = vpop.f32.mrb[0].mxu0
    %v1574 = vadd.f32 %v1437, %v1573
    %1575 = vmatprep.mubr.f32.mxu0 0.0
    %1576 = vmatmul.mubr.f32.gmra.mrb[0].mxu0 %v1476
    %v1577 = vpop.f32.mrb[0].mxu0
    %v1578 = vadd.f32 %v1441, %v1577
    %v1579 = vpop.f32.mrb[0].mxu0
    %v1580 = vadd.f32 %v1443, %v1579
    %1581 = vmatprep.mubr.f32.mxu0 0.0
    %1582 = vmatmul.mubr.f32.gmra.mrb[0].mxu0 %v1479
    %v1583 = vpop.f32.mrb[0].mxu0
    %v1584 = vadd.f32 %v1447, %v1583
    %v1585 = vpop.f32.mrb[0].mxu0
    %v1586 = vadd.f32 %v1449, %v1585
    %1587 = vmatprep.mubr.f32.mxu0 0.0
    %1588 = vmatmul.mubr.f32.gmra.mrb[0].mxu0 %v1482
    %v1589 = vpop.f32.mrb[0].mxu0
    %v1590 = vadd.f32 %v1453, %v1589
    %v1591 = vpop.f32.mrb[0].mxu0
    %v1592 = vadd.f32 %v1455, %v1591
    %1593 = vmatprep.mubr.f32.mxu0 0.0
    %1594 = vmatmul.mubr.f32.gmra.mrb[0].mxu0 %v1485
    %v1595 = vpop.f32.mrb[0].mxu0
    %v1596 = vadd.f32 %v1459, %v1595
    %v1597 = vpop.f32.mrb[0].mxu0
    %v1598 = vadd.f32 %v1461, %v1597
    %1599 = vdwg.mxu0
    %v1600 = vld [vmem:[%s6] sm:$0x3]
    %v1602 = vlaneseq
    %v1603 = vshrl.u32 %v1602, 7
    %v1604 = vsub.s32 0, %v1603
    %v1605 = vrot.slane %v1600, %v1604
    %v1606 = vlaneseq
    %v1607 = vshrl.u32 %v1606, 7
    %v1608 = vsub.s32 1, %v1607
    %v1609 = vrot.slane %v1600, %v1608
    %v1612 = vadd.f32 %v1554, %v1605
    %v1613 = vadd.f32 %v1556, %v1609
    %v1614 = vadd.f32 %v1560, %v1605
    %v1615 = vadd.f32 %v1562, %v1609
    %v1616 = vadd.f32 %v1566, %v1605
    %v1617 = vadd.f32 %v1568, %v1609
    %v1618 = vadd.f32 %v1572, %v1605
    %v1619 = vadd.f32 %v1574, %v1609
    %v1620 = vadd.f32 %v1578, %v1605
    %v1621 = vadd.f32 %v1580, %v1609
    %v1622 = vadd.f32 %v1584, %v1605
    %v1623 = vadd.f32 %v1586, %v1609
    %v1624 = vadd.f32 %v1590, %v1605
    %v1625 = vadd.f32 %v1592, %v1609
    %v1626 = vadd.f32 %v1596, %v1605
    %v1627 = vadd.f32 %v1598, %v1609
    %1628 = vst [vmem:[#allocation2] sm:$0xff] %v1612
    %1629 = vst [vmem:[#allocation2 + $0x8] sm:$0xff] %v1613
    %1630 = vst [vmem:[#allocation2 + $0x10] sm:$0xff] %v1614
    %1631 = vst [vmem:[#allocation2 + $0x18] sm:$0xff] %v1615
    %1632 = vst [vmem:[#allocation2 + $0x20] sm:$0xff] %v1616
    %1633 = vst [vmem:[#allocation2 + $0x28] sm:$0xff] %v1617
    %1634 = vst [vmem:[#allocation2 + $0x30] sm:$0xff] %v1618
    %1635 = vst [vmem:[#allocation2 + $0x38] sm:$0xff] %v1619
    %1636 = vst [vmem:[#allocation2 + $0x40] sm:$0xff] %v1620
    %1637 = vst [vmem:[#allocation2 + $0x48] sm:$0xff] %v1621
    %1638 = vst [vmem:[#allocation2 + $0x50] sm:$0xff] %v1622
    %1639 = vst [vmem:[#allocation2 + $0x58] sm:$0xff] %v1623
    %1640 = vst [vmem:[#allocation2 + $0x60] sm:$0xff] %v1624
    %1641 = vst [vmem:[#allocation2 + $0x68] sm:$0xff] %v1625
    %1642 = vst [vmem:[#allocation2 + $0x70] sm:$0xff] %v1626
    %1643 = vst [vmem:[#allocation2 + $0x78] sm:$0xff] %v1627
    %v1644 = vld [vmem:[#allocation13] sm:$0xff]
    %v1645 = vld [vmem:[#allocation13 + $0x8] sm:$0xff]
    %v1646 = vld [vmem:[#allocation13 + $0x10] sm:$0xff]
    %v1647 = vld [vmem:[#allocation13 + $0x18] sm:$0xff]
    %v1648 = vld [vmem:[#allocation13 + $0x20] sm:$0xff]
    %v1649 = vld [vmem:[#allocation13 + $0x28] sm:$0xff]
    %v1650 = vld [vmem:[#allocation13 + $0x30] sm:$0xff]
    %v1651 = vld [vmem:[#allocation13 + $0x38] sm:$0xff]
    %v1652 = vld [vmem:[#allocation13 + $0x40] sm:$0xff]
    %v1653 = vld [vmem:[#allocation13 + $0x48] sm:$0xff]
    %v1654 = vld [vmem:[#allocation13 + $0x50] sm:$0xff]
    %v1655 = vld [vmem:[#allocation13 + $0x58] sm:$0xff]
    %v1656 = vld [vmem:[#allocation13 + $0x60] sm:$0xff]
    %v1657 = vld [vmem:[#allocation13 + $0x68] sm:$0xff]
    %v1658 = vld [vmem:[#allocation13 + $0x70] sm:$0xff]
    %v1659 = vld [vmem:[#allocation13 + $0x78] sm:$0xff]
    %v1660 = vld [vmem:[%s359] sm:$0xff]
    %v1661 = vld [vmem:[%s359 + $0x8] sm:$0xff]
    %v1662 = vld [vmem:[%s364] sm:$0xff]
    %v1663 = vld [vmem:[%s364 + $0x8] sm:$0xff]
    %v1664 = vsel %vm149, %v1660, %v1662
    %v1665 = vsel %vm150, %v1661, %v1663
    %1666 = vmatprep.subr.mxu0 %v1645
    %1667 = vmatpush1.msra.mxu0 %v1644
    %1668 = vmatprep.subr.mxu0 %v1647
    %1669 = vmatpush1.msra.mxu0 %v1646
    %1670 = vmatprep.subr.mxu0 %v1649
    %1671 = vmatpush1.msra.mxu0 %v1648
    %1672 = vmatprep.subr.mxu0 %v1651
    %1673 = vmatpush1.msra.mxu0 %v1650
    %1674 = vmatprep.subr.mxu0 %v1653
    %1675 = vmatpush1.msra.mxu0 %v1652
    %1676 = vmatprep.subr.mxu0 %v1655
    %1677 = vmatpush1.msra.mxu0 %v1654
    %1678 = vmatprep.subr.mxu0 %v1657
    %1679 = vmatpush1.msra.mxu0 %v1656
    %1680 = vmatprep.subr.mxu0 %v1659
    %1681 = vmatpush1.msra.mxu0 %v1658
    %1682 = vmatprep.subr.mxu0 0.0
    %1683 = vmatpush1.msra.mxu0 0.0
    %1684 = vmatprep.subr.mxu0 0.0
    %1685 = vmatpush1.msra.mxu0 0.0
    %1686 = vmatprep.subr.mxu0 0.0
    %1687 = vmatpush1.msra.mxu0 0.0
    %1688 = vmatprep.subr.mxu0 0.0
    %1689 = vmatpush1.msra.mxu0 0.0
    %1690 = vmatprep.subr.mxu0 0.0
    %1691 = vmatpush1.msra.mxu0 0.0
    %1692 = vmatprep.subr.mxu0 0.0
    %1693 = vmatpush1.msra.mxu0 0.0
    %1694 = vmatprep.subr.mxu0 0.0
    %1695 = vmatpush1.msra.mxu0 0.0
    %1696 = vmatprep.subr.mxu0 0.0
    %1697 = vmatpush1.msra.mxu0 0.0
    %1698 = vmatprep.subr.mxu0 0.0
    %1699 = vmatpush1.msra.mxu0 0.0
    %1700 = vmatprep.subr.mxu0 0.0
    %1701 = vmatpush1.msra.mxu0 0.0
    %1702 = vmatprep.subr.mxu0 0.0
    %1703 = vmatpush1.msra.mxu0 0.0
    %1704 = vmatprep.subr.mxu0 0.0
    %1705 = vmatpush1.msra.mxu0 0.0
    %1706 = vmatprep.subr.mxu0 0.0
    %1707 = vmatpush1.msra.mxu0 0.0
    %1708 = vmatprep.subr.mxu0 0.0
    %1709 = vmatpush1.msra.mxu0 0.0
    %1710 = vmatprep.subr.mxu0 0.0
    %1711 = vmatpush1.msra.mxu0 0.0
    %1712 = vmatprep.subr.mxu0 0.0
    %1713 = vmatpush1.msra.mxu0 0.0
    %1714 = vmatprep.subr.mxu0 0.0
    %1715 = vmatpush1.msra.mxu0 0.0
    %1716 = vmatprep.subr.mxu0 0.0
    %1717 = vmatpush1.msra.mxu0 0.0
    %1718 = vmatprep.subr.mxu0 0.0
    %1719 = vmatpush1.msra.mxu0 0.0
    %1720 = vmatprep.subr.mxu0 0.0
    %1721 = vmatpush1.msra.mxu0 0.0
    %1722 = vmatprep.subr.mxu0 0.0
    %1723 = vmatpush1.msra.mxu0 0.0
    %1724 = vmatprep.subr.mxu0 0.0
    %1725 = vmatpush1.msra.mxu0 0.0
    %1726 = vmatprep.subr.mxu0 0.0
    %1727 = vmatpush1.msra.mxu0 0.0
    %1728 = vmatprep.subr.mxu0 0.0
    %1729 = vmatpush1.msra.mxu0 0.0
    %1730 = vmatprep.mubr.f32.mxu0 0.0
    %1731 = vmatmul.mubr.f32.gmra.mrb[0].mxu0 %v370
    %v1732 = vpop.f32.mrb[0].mxu0
    %v1733 = vadd.f32 0.0, %v1732
    %v1734 = vpop.f32.mrb[0].mxu0
    %v1735 = vadd.f32 0.0, %v1734
    %1736 = vdwg.mxu0
    %v1737 = vadd.f32 %v1664, %v1733
    %v1738 = vadd.f32 %v1665, %v1735
    %v1739 = vxor.u32 %v1737, 2147483648
    %v1740 = vxor.u32 %v1738, 2147483648
    %v1741 = vmul.f32 %v1739, 1.442695
    %v1742 = vpow.pop %v1741
    %v1743 = vmul.f32 %v1740, 1.442695
    %v1744 = vpow.pop %v1743
    %v1745 = vadd.f32 %v1742, 1.0
    %v1746 = vadd.f32 %v1744, 1.0
    %v1747 = vrcp.pop %v1745
    %v1748 = vmul.f32 1.0, %v1747
    %v1749 = vrcp.pop %v1746
    %v1750 = vmul.f32 1.0, %v1749
    %v1751 = vtanh.pop %v1738
    %v1752 = vmul.f32 %v1748, 0.0
    %v1753 = vmul.f32 %v1748, %v1751
    %1755 = vrot.lane.b32.xlu0 %v1753, 64
    %v1756 = vpop.permute.xlu0 %1755
    %v1758 = vadd.f32 %v1752, %v1756
    %v1759 = vtanh.pop %v1758
    %v1760 = vmul.f32 %v1750, %v1759
    %1762 = vrot.lane.b32.xlu0 %v1760, 64
    %v1763 = vpop.permute.xlu0 %1762
    %1765 = vst.msk [vmem:[#allocation3] sm:$0xff] %vm471, %v1763
    %1766 = vrot.lane.b32.xlu0 %v1760, 32
    %v1767 = vpop.permute.xlu0 %1766
    %1769 = vst.msk [vmem:[%s476] sm:$0xff] %vm471, %v1767
    %v1770 = vld [vmem:[%s480] sm:$0xff]
    %v1771 = vld [vmem:[%s480 + $0x8] sm:$0xff]
    %v1772 = vld [vmem:[%s485] sm:$0xff]
    %v1773 = vld [vmem:[%s485 + $0x8] sm:$0xff]
    %v1774 = vsel %vm149, %v1770, %v1772
    %v1775 = vsel %vm150, %v1771, %v1773
    %v1776 = vsel %vm187, %v1763, 0
    %1778 = vmatprep.subr.mxu0 %v1645
    %1779 = vmatpush1.msra.mxu0 %v1644
    %1780 = vmatprep.subr.mxu0 %v1647
    %1781 = vmatpush1.msra.mxu0 %v1646
    %1782 = vmatprep.subr.mxu0 %v1649
    %1783 = vmatpush1.msra.mxu0 %v1648
    %1784 = vmatprep.subr.mxu0 %v1651
    %1785 = vmatpush1.msra.mxu0 %v1650
    %1786 = vmatprep.subr.mxu0 %v1653
    %1787 = vmatpush1.msra.mxu0 %v1652
    %1788 = vmatprep.subr.mxu0 %v1655
    %1789 = vmatpush1.msra.mxu0 %v1654
    %1790 = vmatprep.subr.mxu0 %v1657
    %1791 = vmatpush1.msra.mxu0 %v1656
    %1792 = vmatprep.subr.mxu0 %v1659
    %1793 = vmatpush1.msra.mxu0 %v1658
    %1794 = vmatprep.subr.mxu0 0.0
    %1795 = vmatpush1.msra.mxu0 0.0
    %1796 = vmatprep.subr.mxu0 0.0
    %1797 = vmatpush1.msra.mxu0 0.0
    %1798 = vmatprep.subr.mxu0 0.0
    %1799 = vmatpush1.msra.mxu0 0.0
    %1800 = vmatprep.subr.mxu0 0.0
    %1801 = vmatpush1.msra.mxu0 0.0
    %1802 = vmatprep.subr.mxu0 0.0
    %1803 = vmatpush1.msra.mxu0 0.0
    %1804 = vmatprep.subr.mxu0 0.0
    %1805 = vmatpush1.msra.mxu0 0.0
    %1806 = vmatprep.subr.mxu0 0.0
    %1807 = vmatpush1.msra.mxu0 0.0
    %1808 = vmatprep.subr.mxu0 0.0
    %1809 = vmatpush1.msra.mxu0 0.0
    %1810 = vmatprep.subr.mxu0 0.0
    %1811 = vmatpush1.msra.mxu0 0.0
    %1812 = vmatprep.subr.mxu0 0.0
    %1813 = vmatpush1.msra.mxu0 0.0
    %1814 = vmatprep.subr.mxu0 0.0
    %1815 = vmatpush1.msra.mxu0 0.0
    %1816 = vmatprep.subr.mxu0 0.0
    %1817 = vmatpush1.msra.mxu0 0.0
    %1818 = vmatprep.subr.mxu0 0.0
    %1819 = vmatpush1.msra.mxu0 0.0
    %1820 = vmatprep.subr.mxu0 0.0
    %1821 = vmatpush1.msra.mxu0 0.0
    %1822 = vmatprep.subr.mxu0 0.0
    %1823 = vmatpush1.msra.mxu0 0.0
    %1824 = vmatprep.subr.mxu0 0.0
    %1825 = vmatpush1.msra.mxu0 0.0
    %1826 = vmatprep.subr.mxu0 0.0
    %1827 = vmatpush1.msra.mxu0 0.0
    %1828 = vmatprep.subr.mxu0 0.0
    %1829 = vmatpush1.msra.mxu0 0.0
    %1830 = vmatprep.subr.mxu0 0.0
    %1831 = vmatpush1.msra.mxu0 0.0
    %1832 = vmatprep.subr.mxu0 0.0
    %1833 = vmatpush1.msra.mxu0 0.0
    %1834 = vmatprep.subr.mxu0 0.0
    %1835 = vmatpush1.msra.mxu0 0.0
    %1836 = vmatprep.subr.mxu0 0.0
    %1837 = vmatpush1.msra.mxu0 0.0
    %1838 = vmatprep.subr.mxu0 0.0
    %1839 = vmatpush1.msra.mxu0 0.0
    %1840 = vmatprep.subr.mxu0 0.0
    %1841 = vmatpush1.msra.mxu0 0.0
    %1842 = vmatprep.mubr.f32.mxu0 0.0
    %1843 = vmatmul.mubr.f32.gmra.mrb[0].mxu0 %v1776
    %v1844 = vpop.f32.mrb[0].mxu0
    %v1845 = vadd.f32 0.0, %v1844
    %v1846 = vpop.f32.mrb[0].mxu0
    %v1847 = vadd.f32 0.0, %v1846
    %1848 = vdwg.mxu0
    %v1849 = vadd.f32 %v1774, %v1845
    %v1850 = vadd.f32 %v1775, %v1847
    %v1851 = vxor.u32 %v1849, 2147483648
    %v1852 = vxor.u32 %v1850, 2147483648
    %v1853 = vmul.f32 %v1851, 1.442695
    %v1854 = vpow.pop %v1853
    %v1855 = vmul.f32 %v1852, 1.442695
    %v1856 = vpow.pop %v1855
    %v1857 = vadd.f32 %v1854, 1.0
    %v1858 = vadd.f32 %v1856, 1.0
    %v1859 = vrcp.pop %v1857
    %v1860 = vmul.f32 1.0, %v1859
    %v1861 = vrcp.pop %v1858
    %v1862 = vmul.f32 1.0, %v1861
    %v1863 = vtanh.pop %v1850
    %v1864 = vmul.f32 %v1860, %v1758
    %v1865 = vmul.f32 %v1860, %v1863
    %1867 = vrot.lane.b32.xlu0 %v1865, 64
    %v1868 = vpop.permute.xlu0 %1867
    %v1870 = vadd.f32 %v1864, %v1868
    %v1871 = vtanh.pop %v1870
    %v1872 = vmul.f32 %v1862, %v1871
    %1874 = vrot.lane.b32.xlu0 %v1872, 64
    %v1875 = vpop.permute.xlu0 %1874
    %1877 = vst.msk [vmem:[%s591] sm:$0xff] %vm471, %v1875
    %1878 = vrot.lane.b32.xlu0 %v1872, 32
    %v1879 = vpop.permute.xlu0 %1878
    %1881 = vst.msk [vmem:[%s596] sm:$0xff] %vm471, %v1879
    %v1882 = vld [vmem:[%s600] sm:$0xff]
    %v1883 = vld [vmem:[%s600 + $0x8] sm:$0xff]
    %v1884 = vld [vmem:[%s605] sm:$0xff]
    %v1885 = vld [vmem:[%s605 + $0x8] sm:$0xff]
    %v1886 = vsel %vm149, %v1882, %v1884
    %v1887 = vsel %vm150, %v1883, %v1885
    %v1888 = vsel %vm187, %v1875, 0
    %1890 = vmatprep.subr.mxu0 %v1645
    %1891 = vmatpush1.msra.mxu0 %v1644
    %1892 = vmatprep.subr.mxu0 %v1647
    %1893 = vmatpush1.msra.mxu0 %v1646
    %1894 = vmatprep.subr.mxu0 %v1649
    %1895 = vmatpush1.msra.mxu0 %v1648
    %1896 = vmatprep.subr.mxu0 %v1651
    %1897 = vmatpush1.msra.mxu0 %v1650
    %1898 = vmatprep.subr.mxu0 %v1653
    %1899 = vmatpush1.msra.mxu0 %v1652
    %1900 = vmatprep.subr.mxu0 %v1655
    %1901 = vmatpush1.msra.mxu0 %v1654
    %1902 = vmatprep.subr.mxu0 %v1657
    %1903 = vmatpush1.msra.mxu0 %v1656
    %1904 = vmatprep.subr.mxu0 %v1659
    %1905 = vmatpush1.msra.mxu0 %v1658
    %1906 = vmatprep.subr.mxu0 0.0
    %1907 = vmatpush1.msra.mxu0 0.0
    %1908 = vmatprep.subr.mxu0 0.0
    %1909 = vmatpush1.msra.mxu0 0.0
    %1910 = vmatprep.subr.mxu0 0.0
    %1911 = vmatpush1.msra.mxu0 0.0
    %1912 = vmatprep.subr.mxu0 0.0
    %1913 = vmatpush1.msra.mxu0 0.0
    %1914 = vmatprep.subr.mxu0 0.0
    %1915 = vmatpush1.msra.mxu0 0.0
    %1916 = vmatprep.subr.mxu0 0.0
    %1917 = vmatpush1.msra.mxu0 0.0
    %1918 = vmatprep.subr.mxu0 0.0
    %1919 = vmatpush1.msra.mxu0 0.0
    %1920 = vmatprep.subr.mxu0 0.0
    %1921 = vmatpush1.msra.mxu0 0.0
    %1922 = vmatprep.subr.mxu0 0.0
    %1923 = vmatpush1.msra.mxu0 0.0
    %1924 = vmatprep.subr.mxu0 0.0
    %1925 = vmatpush1.msra.mxu0 0.0
    %1926 = vmatprep.subr.mxu0 0.0
    %1927 = vmatpush1.msra.mxu0 0.0
    %1928 = vmatprep.subr.mxu0 0.0
    %1929 = vmatpush1.msra.mxu0 0.0
    %1930 = vmatprep.subr.mxu0 0.0
    %1931 = vmatpush1.msra.mxu0 0.0
    %1932 = vmatprep.subr.mxu0 0.0
    %1933 = vmatpush1.msra.mxu0 0.0
    %1934 = vmatprep.subr.mxu0 0.0
    %1935 = vmatpush1.msra.mxu0 0.0
    %1936 = vmatprep.subr.mxu0 0.0
    %1937 = vmatpush1.msra.mxu0 0.0
    %1938 = vmatprep.subr.mxu0 0.0
    %1939 = vmatpush1.msra.mxu0 0.0
    %1940 = vmatprep.subr.mxu0 0.0
    %1941 = vmatpush1.msra.mxu0 0.0
    %1942 = vmatprep.subr.mxu0 0.0
    %1943 = vmatpush1.msra.mxu0 0.0
    %1944 = vmatprep.subr.mxu0 0.0
    %1945 = vmatpush1.msra.mxu0 0.0
    %1946 = vmatprep.subr.mxu0 0.0
    %1947 = vmatpush1.msra.mxu0 0.0
    %1948 = vmatprep.subr.mxu0 0.0
    %1949 = vmatpush1.msra.mxu0 0.0
    %1950 = vmatprep.subr.mxu0 0.0
    %1951 = vmatpush1.msra.mxu0 0.0
    %1952 = vmatprep.subr.mxu0 0.0
    %1953 = vmatpush1.msra.mxu0 0.0
    %1954 = vmatprep.mubr.f32.mxu0 0.0
    %1955 = vmatmul.mubr.f32.gmra.mrb[0].mxu0 %v1888
    %v1956 = vpop.f32.mrb[0].mxu0
    %v1957 = vadd.f32 0.0, %v1956
    %v1958 = vpop.f32.mrb[0].mxu0
    %v1959 = vadd.f32 0.0, %v1958
    %1960 = vdwg.mxu0
    %v1961 = vadd.f32 %v1886, %v1957
    %v1962 = vadd.f32 %v1887, %v1959
    %v1963 = vxor.u32 %v1961, 2147483648
    %v1964 = vxor.u32 %v1962, 2147483648
    %v1965 = vmul.f32 %v1963, 1.442695
    %v1966 = vpow.pop %v1965
    %v1967 = vmul.f32 %v1964, 1.442695
    %v1968 = vpow.pop %v1967
    %v1969 = vadd.f32 %v1966, 1.0
    %v1970 = vadd.f32 %v1968, 1.0
    %v1971 = vrcp.pop %v1969
    %v1972 = vmul.f32 1.0, %v1971
    %v1973 = vrcp.pop %v1970
    %v1974 = vmul.f32 1.0, %v1973
    %v1975 = vtanh.pop %v1962
    %v1976 = vmul.f32 %v1972, %v1870
    %v1977 = vmul.f32 %v1972, %v1975
    %1979 = vrot.lane.b32.xlu0 %v1977, 64
    %v1980 = vpop.permute.xlu0 %1979
    %v1982 = vadd.f32 %v1976, %v1980
    %v1983 = vtanh.pop %v1982
    %v1984 = vmul.f32 %v1974, %v1983
    %1986 = vrot.lane.b32.xlu0 %v1984, 64
    %v1987 = vpop.permute.xlu0 %1986
    %1989 = vst.msk [vmem:[%s711] sm:$0xff] %vm471, %v1987
    %1990 = vrot.lane.b32.xlu0 %v1984, 32
    %v1991 = vpop.permute.xlu0 %1990
    %1993 = vst.msk [vmem:[%s716] sm:$0xff] %vm471, %v1991
    %v1994 = vld [vmem:[%s720] sm:$0xff]
    %v1995 = vld [vmem:[%s720 + $0x8] sm:$0xff]
    %v1996 = vld [vmem:[%s725] sm:$0xff]
    %v1997 = vld [vmem:[%s725 + $0x8] sm:$0xff]
    %v1998 = vsel %vm149, %v1994, %v1996
    %v1999 = vsel %vm150, %v1995, %v1997
    %v2000 = vsel %vm187, %v1987, 0
    %2002 = vmatprep.subr.mxu0 %v1645
    %2003 = vmatpush1.msra.mxu0 %v1644
    %2004 = vmatprep.subr.mxu0 %v1647
    %2005 = vmatpush1.msra.mxu0 %v1646
    %2006 = vmatprep.subr.mxu0 %v1649
    %2007 = vmatpush1.msra.mxu0 %v1648
    %2008 = vmatprep.subr.mxu0 %v1651
    %2009 = vmatpush1.msra.mxu0 %v1650
    %2010 = vmatprep.subr.mxu0 %v1653
    %2011 = vmatpush1.msra.mxu0 %v1652
    %2012 = vmatprep.subr.mxu0 %v1655
    %2013 = vmatpush1.msra.mxu0 %v1654
    %2014 = vmatprep.subr.mxu0 %v1657
    %2015 = vmatpush1.msra.mxu0 %v1656
    %2016 = vmatprep.subr.mxu0 %v1659
    %2017 = vmatpush1.msra.mxu0 %v1658
    %2018 = vmatprep.subr.mxu0 0.0
    %2019 = vmatpush1.msra.mxu0 0.0
    %2020 = vmatprep.subr.mxu0 0.0
    %2021 = vmatpush1.msra.mxu0 0.0
    %2022 = vmatprep.subr.mxu0 0.0
    %2023 = vmatpush1.msra.mxu0 0.0
    %2024 = vmatprep.subr.mxu0 0.0
    %2025 = vmatpush1.msra.mxu0 0.0
    %2026 = vmatprep.subr.mxu0 0.0
    %2027 = vmatpush1.msra.mxu0 0.0
    %2028 = vmatprep.subr.mxu0 0.0
    %2029 = vmatpush1.msra.mxu0 0.0
    %2030 = vmatprep.subr.mxu0 0.0
    %2031 = vmatpush1.msra.mxu0 0.0
    %2032 = vmatprep.subr.mxu0 0.0
    %2033 = vmatpush1.msra.mxu0 0.0
    %2034 = vmatprep.subr.mxu0 0.0
    %2035 = vmatpush1.msra.mxu0 0.0
    %2036 = vmatprep.subr.mxu0 0.0
    %2037 = vmatpush1.msra.mxu0 0.0
    %2038 = vmatprep.subr.mxu0 0.0
    %2039 = vmatpush1.msra.mxu0 0.0
    %2040 = vmatprep.subr.mxu0 0.0
    %2041 = vmatpush1.msra.mxu0 0.0
    %2042 = vmatprep.subr.mxu0 0.0
    %2043 = vmatpush1.msra.mxu0 0.0
    %2044 = vmatprep.subr.mxu0 0.0
    %2045 = vmatpush1.msra.mxu0 0.0
    %2046 = vmatprep.subr.mxu0 0.0
    %2047 = vmatpush1.msra.mxu0 0.0
    %2048 = vmatprep.subr.mxu0 0.0
    %2049 = vmatpush1.msra.mxu0 0.0
    %2050 = vmatprep.subr.mxu0 0.0
    %2051 = vmatpush1.msra.mxu0 0.0
    %2052 = vmatprep.subr.mxu0 0.0
    %2053 = vmatpush1.msra.mxu0 0.0
    %2054 = vmatprep.subr.mxu0 0.0
    %2055 = vmatpush1.msra.mxu0 0.0
    %2056 = vmatprep.subr.mxu0 0.0
    %2057 = vmatpush1.msra.mxu0 0.0
    %2058 = vmatprep.subr.mxu0 0.0
    %2059 = vmatpush1.msra.mxu0 0.0
    %2060 = vmatprep.subr.mxu0 0.0
    %2061 = vmatpush1.msra.mxu0 0.0
    %2062 = vmatprep.subr.mxu0 0.0
    %2063 = vmatpush1.msra.mxu0 0.0
    %2064 = vmatprep.subr.mxu0 0.0
    %2065 = vmatpush1.msra.mxu0 0.0
    %2066 = vmatprep.mubr.f32.mxu0 0.0
    %2067 = vmatmul.mubr.f32.gmra.mrb[0].mxu0 %v2000
    %v2068 = vpop.f32.mrb[0].mxu0
    %v2069 = vadd.f32 0.0, %v2068
    %v2070 = vpop.f32.mrb[0].mxu0
    %v2071 = vadd.f32 0.0, %v2070
    %2072 = vdwg.mxu0
    %v2073 = vadd.f32 %v1998, %v2069
    %v2074 = vadd.f32 %v1999, %v2071
    %v2075 = vxor.u32 %v2073, 2147483648
    %v2076 = vxor.u32 %v2074, 2147483648
    %v2077 = vmul.f32 %v2075, 1.442695
    %v2078 = vpow.pop %v2077
    %v2079 = vmul.f32 %v2076, 1.442695
    %v2080 = vpow.pop %v2079
    %v2081 = vadd.f32 %v2078, 1.0
    %v2082 = vadd.f32 %v2080, 1.0
    %v2083 = vrcp.pop %v2081
    %v2084 = vmul.f32 1.0, %v2083
    %v2085 = vrcp.pop %v2082
    %v2086 = vmul.f32 1.0, %v2085
    %v2087 = vtanh.pop %v2074
    %v2088 = vmul.f32 %v2084, %v1982
    %v2089 = vmul.f32 %v2084, %v2087
    %2091 = vrot.lane.b32.xlu0 %v2089, 64
    %v2092 = vpop.permute.xlu0 %2091
    %v2094 = vadd.f32 %v2088, %v2092
    %v2095 = vtanh.pop %v2094
    %v2096 = vmul.f32 %v2086, %v2095
    %2098 = vrot.lane.b32.xlu0 %v2096, 64
    %v2099 = vpop.permute.xlu0 %2098
    %2101 = vst.msk [vmem:[%s831] sm:$0xff] %vm471, %v2099
    %2102 = vrot.lane.b32.xlu0 %v2096, 32
    %v2103 = vpop.permute.xlu0 %2102
    %2105 = vst.msk [vmem:[%s836] sm:$0xff] %vm471, %v2103
    %v2106 = vld [vmem:[%s725] sm:$0xff]
    %v2107 = vld [vmem:[%s725 + $0x8] sm:$0xff]
    %v2108 = vld [vmem:[%s720] sm:$0xff]
    %v2109 = vld [vmem:[%s720 + $0x8] sm:$0xff]
    %v2110 = vsel %vm149, %v2106, %v2108
    %v2111 = vsel %vm150, %v2107, %v2109
    %v2112 = vsel %vm187, %v2099, 0
    %2114 = vmatprep.subr.mxu0 %v1645
    %2115 = vmatpush1.msra.mxu0 %v1644
    %2116 = vmatprep.subr.mxu0 %v1647
    %2117 = vmatpush1.msra.mxu0 %v1646
    %2118 = vmatprep.subr.mxu0 %v1649
    %2119 = vmatpush1.msra.mxu0 %v1648
    %2120 = vmatprep.subr.mxu0 %v1651
    %2121 = vmatpush1.msra.mxu0 %v1650
    %2122 = vmatprep.subr.mxu0 %v1653
    %2123 = vmatpush1.msra.mxu0 %v1652
    %2124 = vmatprep.subr.mxu0 %v1655
    %2125 = vmatpush1.msra.mxu0 %v1654
    %2126 = vmatprep.subr.mxu0 %v1657
    %2127 = vmatpush1.msra.mxu0 %v1656
    %2128 = vmatprep.subr.mxu0 %v1659
    %2129 = vmatpush1.msra.mxu0 %v1658
    %2130 = vmatprep.subr.mxu0 0.0
    %2131 = vmatpush1.msra.mxu0 0.0
    %2132 = vmatprep.subr.mxu0 0.0
    %2133 = vmatpush1.msra.mxu0 0.0
    %2134 = vmatprep.subr.mxu0 0.0
    %2135 = vmatpush1.msra.mxu0 0.0
    %2136 = vmatprep.subr.mxu0 0.0
    %2137 = vmatpush1.msra.mxu0 0.0
    %2138 = vmatprep.subr.mxu0 0.0
    %2139 = vmatpush1.msra.mxu0 0.0
    %2140 = vmatprep.subr.mxu0 0.0
    %2141 = vmatpush1.msra.mxu0 0.0
    %2142 = vmatprep.subr.mxu0 0.0
    %2143 = vmatpush1.msra.mxu0 0.0
    %2144 = vmatprep.subr.mxu0 0.0
    %2145 = vmatpush1.msra.mxu0 0.0
    %2146 = vmatprep.subr.mxu0 0.0
    %2147 = vmatpush1.msra.mxu0 0.0
    %2148 = vmatprep.subr.mxu0 0.0
    %2149 = vmatpush1.msra.mxu0 0.0
    %2150 = vmatprep.subr.mxu0 0.0
    %2151 = vmatpush1.msra.mxu0 0.0
    %2152 = vmatprep.subr.mxu0 0.0
    %2153 = vmatpush1.msra.mxu0 0.0
    %2154 = vmatprep.subr.mxu0 0.0
    %2155 = vmatpush1.msra.mxu0 0.0
    %2156 = vmatprep.subr.mxu0 0.0
    %2157 = vmatpush1.msra.mxu0 0.0
    %2158 = vmatprep.subr.mxu0 0.0
    %2159 = vmatpush1.msra.mxu0 0.0
    %2160 = vmatprep.subr.mxu0 0.0
    %2161 = vmatpush1.msra.mxu0 0.0
    %2162 = vmatprep.subr.mxu0 0.0
    %2163 = vmatpush1.msra.mxu0 0.0
    %2164 = vmatprep.subr.mxu0 0.0
    %2165 = vmatpush1.msra.mxu0 0.0
    %2166 = vmatprep.subr.mxu0 0.0
    %2167 = vmatpush1.msra.mxu0 0.0
    %2168 = vmatprep.subr.mxu0 0.0
    %2169 = vmatpush1.msra.mxu0 0.0
    %2170 = vmatprep.subr.mxu0 0.0
    %2171 = vmatpush1.msra.mxu0 0.0
    %2172 = vmatprep.subr.mxu0 0.0
    %2173 = vmatpush1.msra.mxu0 0.0
    %2174 = vmatprep.subr.mxu0 0.0
    %2175 = vmatpush1.msra.mxu0 0.0
    %2176 = vmatprep.subr.mxu0 0.0
    %2177 = vmatpush1.msra.mxu0 0.0
    %2178 = vmatprep.mubr.f32.mxu0 0.0
    %2179 = vmatmul.mubr.f32.gmra.mrb[0].mxu0 %v2112
    %v2180 = vpop.f32.mrb[0].mxu0
    %v2181 = vadd.f32 0.0, %v2180
    %v2182 = vpop.f32.mrb[0].mxu0
    %v2183 = vadd.f32 0.0, %v2182
    %2184 = vdwg.mxu0
    %v2185 = vadd.f32 %v2110, %v2181
    %v2186 = vadd.f32 %v2111, %v2183
    %v2187 = vxor.u32 %v2185, 2147483648
    %v2188 = vxor.u32 %v2186, 2147483648
    %v2189 = vmul.f32 %v2187, 1.442695
    %v2190 = vpow.pop %v2189
    %v2191 = vmul.f32 %v2188, 1.442695
    %v2192 = vpow.pop %v2191
    %v2193 = vadd.f32 %v2190, 1.0
    %v2194 = vadd.f32 %v2192, 1.0
    %v2195 = vrcp.pop %v2193
    %v2196 = vmul.f32 1.0, %v2195
    %v2197 = vrcp.pop %v2194
    %v2198 = vmul.f32 1.0, %v2197
    %v2199 = vtanh.pop %v2186
    %v2200 = vmul.f32 %v2196, %v2094
    %v2201 = vmul.f32 %v2196, %v2199
    %2203 = vrot.lane.b32.xlu0 %v2201, 64
    %v2204 = vpop.permute.xlu0 %2203
    %v2206 = vadd.f32 %v2200, %v2204
    %v2207 = vtanh.pop %v2206
    %v2208 = vmul.f32 %v2198, %v2207
    %2210 = vrot.lane.b32.xlu0 %v2208, 64
    %v2211 = vpop.permute.xlu0 %2210
    %2213 = vst.msk [vmem:[%s945] sm:$0xff] %vm471, %v2211
    %2214 = vrot.lane.b32.xlu0 %v2208, 32
    %v2215 = vpop.permute.xlu0 %2214
    %2217 = vst.msk [vmem:[%s950] sm:$0xff] %vm471, %v2215
    %v2218 = vld [vmem:[%s605] sm:$0xff]
    %v2219 = vld [vmem:[%s605 + $0x8] sm:$0xff]
    %v2220 = vld [vmem:[%s600] sm:$0xff]
    %v2221 = vld [vmem:[%s600 + $0x8] sm:$0xff]
    %v2222 = vsel %vm149, %v2218, %v2220
    %v2223 = vsel %vm150, %v2219, %v2221
    %v2224 = vsel %vm187, %v2211, 0
    %2226 = vmatprep.subr.mxu0 %v1645
    %2227 = vmatpush1.msra.mxu0 %v1644
    %2228 = vmatprep.subr.mxu0 %v1647
    %2229 = vmatpush1.msra.mxu0 %v1646
    %2230 = vmatprep.subr.mxu0 %v1649
    %2231 = vmatpush1.msra.mxu0 %v1648
    %2232 = vmatprep.subr.mxu0 %v1651
    %2233 = vmatpush1.msra.mxu0 %v1650
    %2234 = vmatprep.subr.mxu0 %v1653
    %2235 = vmatpush1.msra.mxu0 %v1652
    %2236 = vmatprep.subr.mxu0 %v1655
    %2237 = vmatpush1.msra.mxu0 %v1654
    %2238 = vmatprep.subr.mxu0 %v1657
    %2239 = vmatpush1.msra.mxu0 %v1656
    %2240 = vmatprep.subr.mxu0 %v1659
    %2241 = vmatpush1.msra.mxu0 %v1658
    %2242 = vmatprep.subr.mxu0 0.0
    %2243 = vmatpush1.msra.mxu0 0.0
    %2244 = vmatprep.subr.mxu0 0.0
    %2245 = vmatpush1.msra.mxu0 0.0
    %2246 = vmatprep.subr.mxu0 0.0
    %2247 = vmatpush1.msra.mxu0 0.0
    %2248 = vmatprep.subr.mxu0 0.0
    %2249 = vmatpush1.msra.mxu0 0.0
    %2250 = vmatprep.subr.mxu0 0.0
    %2251 = vmatpush1.msra.mxu0 0.0
    %2252 = vmatprep.subr.mxu0 0.0
    %2253 = vmatpush1.msra.mxu0 0.0
    %2254 = vmatprep.subr.mxu0 0.0
    %2255 = vmatpush1.msra.mxu0 0.0
    %2256 = vmatprep.subr.mxu0 0.0
    %2257 = vmatpush1.msra.mxu0 0.0
    %2258 = vmatprep.subr.mxu0 0.0
    %2259 = vmatpush1.msra.mxu0 0.0
    %2260 = vmatprep.subr.mxu0 0.0
    %2261 = vmatpush1.msra.mxu0 0.0
    %2262 = vmatprep.subr.mxu0 0.0
    %2263 = vmatpush1.msra.mxu0 0.0
    %2264 = vmatprep.subr.mxu0 0.0
    %2265 = vmatpush1.msra.mxu0 0.0
    %2266 = vmatprep.subr.mxu0 0.0
    %2267 = vmatpush1.msra.mxu0 0.0
    %2268 = vmatprep.subr.mxu0 0.0
    %2269 = vmatpush1.msra.mxu0 0.0
    %2270 = vmatprep.subr.mxu0 0.0
    %2271 = vmatpush1.msra.mxu0 0.0
    %2272 = vmatprep.subr.mxu0 0.0
    %2273 = vmatpush1.msra.mxu0 0.0
    %2274 = vmatprep.subr.mxu0 0.0
    %2275 = vmatpush1.msra.mxu0 0.0
    %2276 = vmatprep.subr.mxu0 0.0
    %2277 = vmatpush1.msra.mxu0 0.0
    %2278 = vmatprep.subr.mxu0 0.0
    %2279 = vmatpush1.msra.mxu0 0.0
    %2280 = vmatprep.subr.mxu0 0.0
    %2281 = vmatpush1.msra.mxu0 0.0
    %2282 = vmatprep.subr.mxu0 0.0
    %2283 = vmatpush1.msra.mxu0 0.0
    %2284 = vmatprep.subr.mxu0 0.0
    %2285 = vmatpush1.msra.mxu0 0.0
    %2286 = vmatprep.subr.mxu0 0.0
    %2287 = vmatpush1.msra.mxu0 0.0
    %2288 = vmatprep.subr.mxu0 0.0
    %2289 = vmatpush1.msra.mxu0 0.0
    %2290 = vmatprep.mubr.f32.mxu0 0.0
    %2291 = vmatmul.mubr.f32.gmra.mrb[0].mxu0 %v2224
    %v2292 = vpop.f32.mrb[0].mxu0
    %v2293 = vadd.f32 0.0, %v2292
    %v2294 = vpop.f32.mrb[0].mxu0
    %v2295 = vadd.f32 0.0, %v2294
    %2296 = vdwg.mxu0
    %v2297 = vadd.f32 %v2222, %v2293
    %v2298 = vadd.f32 %v2223, %v2295
    %v2299 = vxor.u32 %v2297, 2147483648
    %v2300 = vxor.u32 %v2298, 2147483648
    %v2301 = vmul.f32 %v2299, 1.442695
    %v2302 = vpow.pop %v2301
    %v2303 = vmul.f32 %v2300, 1.442695
    %v2304 = vpow.pop %v2303
    %v2305 = vadd.f32 %v2302, 1.0
    %v2306 = vadd.f32 %v2304, 1.0
    %v2307 = vrcp.pop %v2305
    %v2308 = vmul.f32 1.0, %v2307
    %v2309 = vrcp.pop %v2306
    %v2310 = vmul.f32 1.0, %v2309
    %v2311 = vtanh.pop %v2298
    %v2312 = vmul.f32 %v2308, %v2206
    %v2313 = vmul.f32 %v2308, %v2311
    %2315 = vrot.lane.b32.xlu0 %v2313, 64
    %v2316 = vpop.permute.xlu0 %2315
    %v2318 = vadd.f32 %v2312, %v2316
    %v2319 = vtanh.pop %v2318
    %v2320 = vmul.f32 %v2310, %v2319
    %2322 = vrot.lane.b32.xlu0 %v2320, 64
    %v2323 = vpop.permute.xlu0 %2322
    %2325 = vst.msk [vmem:[%s1059] sm:$0xff] %vm471, %v2323
    %2326 = vrot.lane.b32.xlu0 %v2320, 32
    %v2327 = vpop.permute.xlu0 %2326
    %2329 = vst.msk [vmem:[%s1064] sm:$0xff] %vm471, %v2327
    %v2330 = vld [vmem:[%s485] sm:$0xff]
    %v2331 = vld [vmem:[%s485 + $0x8] sm:$0xff]
    %v2332 = vld [vmem:[%s480] sm:$0xff]
    %v2333 = vld [vmem:[%s480 + $0x8] sm:$0xff]
    %v2334 = vsel %vm149, %v2330, %v2332
    %v2335 = vsel %vm150, %v2331, %v2333
    %v2336 = vsel %vm187, %v2323, 0
    %2338 = vmatprep.subr.mxu0 %v1645
    %2339 = vmatpush1.msra.mxu0 %v1644
    %2340 = vmatprep.subr.mxu0 %v1647
    %2341 = vmatpush1.msra.mxu0 %v1646
    %2342 = vmatprep.subr.mxu0 %v1649
    %2343 = vmatpush1.msra.mxu0 %v1648
    %2344 = vmatprep.subr.mxu0 %v1651
    %2345 = vmatpush1.msra.mxu0 %v1650
    %2346 = vmatprep.subr.mxu0 %v1653
    %2347 = vmatpush1.msra.mxu0 %v1652
    %2348 = vmatprep.subr.mxu0 %v1655
    %2349 = vmatpush1.msra.mxu0 %v1654
    %2350 = vmatprep.subr.mxu0 %v1657
    %2351 = vmatpush1.msra.mxu0 %v1656
    %2352 = vmatprep.subr.mxu0 %v1659
    %2353 = vmatpush1.msra.mxu0 %v1658
    %2354 = vmatprep.subr.mxu0 0.0
    %2355 = vmatpush1.msra.mxu0 0.0
    %2356 = vmatprep.subr.mxu0 0.0
    %2357 = vmatpush1.msra.mxu0 0.0
    %2358 = vmatprep.subr.mxu0 0.0
    %2359 = vmatpush1.msra.mxu0 0.0
    %2360 = vmatprep.subr.mxu0 0.0
    %2361 = vmatpush1.msra.mxu0 0.0
    %2362 = vmatprep.subr.mxu0 0.0
    %2363 = vmatpush1.msra.mxu0 0.0
    %2364 = vmatprep.subr.mxu0 0.0
    %2365 = vmatpush1.msra.mxu0 0.0
    %2366 = vmatprep.subr.mxu0 0.0
    %2367 = vmatpush1.msra.mxu0 0.0
    %2368 = vmatprep.subr.mxu0 0.0
    %2369 = vmatpush1.msra.mxu0 0.0
    %2370 = vmatprep.subr.mxu0 0.0
    %2371 = vmatpush1.msra.mxu0 0.0
    %2372 = vmatprep.subr.mxu0 0.0
    %2373 = vmatpush1.msra.mxu0 0.0
    %2374 = vmatprep.subr.mxu0 0.0
    %2375 = vmatpush1.msra.mxu0 0.0
    %2376 = vmatprep.subr.mxu0 0.0
    %2377 = vmatpush1.msra.mxu0 0.0
    %2378 = vmatprep.subr.mxu0 0.0
    %2379 = vmatpush1.msra.mxu0 0.0
    %2380 = vmatprep.subr.mxu0 0.0
    %2381 = vmatpush1.msra.mxu0 0.0
    %2382 = vmatprep.subr.mxu0 0.0
    %2383 = vmatpush1.msra.mxu0 0.0
    %2384 = vmatprep.subr.mxu0 0.0
    %2385 = vmatpush1.msra.mxu0 0.0
    %2386 = vmatprep.subr.mxu0 0.0
    %2387 = vmatpush1.msra.mxu0 0.0
    %2388 = vmatprep.subr.mxu0 0.0
    %2389 = vmatpush1.msra.mxu0 0.0
    %2390 = vmatprep.subr.mxu0 0.0
    %2391 = vmatpush1.msra.mxu0 0.0
    %2392 = vmatprep.subr.mxu0 0.0
    %2393 = vmatpush1.msra.mxu0 0.0
    %2394 = vmatprep.subr.mxu0 0.0
    %2395 = vmatpush1.msra.mxu0 0.0
    %2396 = vmatprep.subr.mxu0 0.0
    %2397 = vmatpush1.msra.mxu0 0.0
    %2398 = vmatprep.subr.mxu0 0.0
    %2399 = vmatpush1.msra.mxu0 0.0
    %2400 = vmatprep.subr.mxu0 0.0
    %2401 = vmatpush1.msra.mxu0 0.0
    %2402 = vmatprep.mubr.f32.mxu0 0.0
    %2403 = vmatmul.mubr.f32.gmra.mrb[0].mxu0 %v2336
    %v2404 = vpop.f32.mrb[0].mxu0
    %v2405 = vadd.f32 0.0, %v2404
    %v2406 = vpop.f32.mrb[0].mxu0
    %v2407 = vadd.f32 0.0, %v2406
    %2408 = vdwg.mxu0
    %v2409 = vadd.f32 %v2334, %v2405
    %v2410 = vadd.f32 %v2335, %v2407
    %v2411 = vxor.u32 %v2409, 2147483648
    %v2412 = vxor.u32 %v2410, 2147483648
    %v2413 = vmul.f32 %v2411, 1.442695
    %v2414 = vpow.pop %v2413
    %v2415 = vmul.f32 %v2412, 1.442695
    %v2416 = vpow.pop %v2415
    %v2417 = vadd.f32 %v2414, 1.0
    %v2418 = vadd.f32 %v2416, 1.0
    %v2419 = vrcp.pop %v2417
    %v2420 = vmul.f32 1.0, %v2419
    %v2421 = vrcp.pop %v2418
    %v2422 = vmul.f32 1.0, %v2421
    %v2423 = vtanh.pop %v2410
    %v2424 = vmul.f32 %v2420, %v2318
    %v2425 = vmul.f32 %v2420, %v2423
    %2427 = vrot.lane.b32.xlu0 %v2425, 64
    %v2428 = vpop.permute.xlu0 %2427
    %v2430 = vadd.f32 %v2424, %v2428
    %v2431 = vtanh.pop %v2430
    %v2432 = vmul.f32 %v2422, %v2431
    %2434 = vrot.lane.b32.xlu0 %v2432, 64
    %v2435 = vpop.permute.xlu0 %2434
    %2437 = vst.msk [vmem:[%s1173] sm:$0xff] %vm471, %v2435
    %2438 = vrot.lane.b32.xlu0 %v2432, 32
    %v2439 = vpop.permute.xlu0 %2438
    %2441 = vst.msk [vmem:[%s1178] sm:$0xff] %vm471, %v2439
    %v2442 = vld [vmem:[%s364] sm:$0xff]
    %v2443 = vld [vmem:[%s364 + $0x8] sm:$0xff]
    %v2444 = vld [vmem:[%s359] sm:$0xff]
    %v2445 = vld [vmem:[%s359 + $0x8] sm:$0xff]
    %v2446 = vsel %vm149, %v2442, %v2444
    %v2447 = vsel %vm150, %v2443, %v2445
    %v2448 = vsel %vm187, %v2435, 0
    %2450 = vmatprep.subr.mxu0 %v1645
    %2451 = vmatpush1.msra.mxu0 %v1644
    %2452 = vmatprep.subr.mxu0 %v1647
    %2453 = vmatpush1.msra.mxu0 %v1646
    %2454 = vmatprep.subr.mxu0 %v1649
    %2455 = vmatpush1.msra.mxu0 %v1648
    %2456 = vmatprep.subr.mxu0 %v1651
    %2457 = vmatpush1.msra.mxu0 %v1650
    %2458 = vmatprep.subr.mxu0 %v1653
    %2459 = vmatpush1.msra.mxu0 %v1652
    %2460 = vmatprep.subr.mxu0 %v1655
    %2461 = vmatpush1.msra.mxu0 %v1654
    %2462 = vmatprep.subr.mxu0 %v1657
    %2463 = vmatpush1.msra.mxu0 %v1656
    %2464 = vmatprep.subr.mxu0 %v1659
    %2465 = vmatpush1.msra.mxu0 %v1658
    %2466 = vmatprep.subr.mxu0 0.0
    %2467 = vmatpush1.msra.mxu0 0.0
    %2468 = vmatprep.subr.mxu0 0.0
    %2469 = vmatpush1.msra.mxu0 0.0
    %2470 = vmatprep.subr.mxu0 0.0
    %2471 = vmatpush1.msra.mxu0 0.0
    %2472 = vmatprep.subr.mxu0 0.0
    %2473 = vmatpush1.msra.mxu0 0.0
    %2474 = vmatprep.subr.mxu0 0.0
    %2475 = vmatpush1.msra.mxu0 0.0
    %2476 = vmatprep.subr.mxu0 0.0
    %2477 = vmatpush1.msra.mxu0 0.0
    %2478 = vmatprep.subr.mxu0 0.0
    %2479 = vmatpush1.msra.mxu0 0.0
    %2480 = vmatprep.subr.mxu0 0.0
    %2481 = vmatpush1.msra.mxu0 0.0
    %2482 = vmatprep.subr.mxu0 0.0
    %2483 = vmatpush1.msra.mxu0 0.0
    %2484 = vmatprep.subr.mxu0 0.0
    %2485 = vmatpush1.msra.mxu0 0.0
    %2486 = vmatprep.subr.mxu0 0.0
    %2487 = vmatpush1.msra.mxu0 0.0
    %2488 = vmatprep.subr.mxu0 0.0
    %2489 = vmatpush1.msra.mxu0 0.0
    %2490 = vmatprep.subr.mxu0 0.0
    %2491 = vmatpush1.msra.mxu0 0.0
    %2492 = vmatprep.subr.mxu0 0.0
    %2493 = vmatpush1.msra.mxu0 0.0
    %2494 = vmatprep.subr.mxu0 0.0
    %2495 = vmatpush1.msra.mxu0 0.0
    %2496 = vmatprep.subr.mxu0 0.0
    %2497 = vmatpush1.msra.mxu0 0.0
    %2498 = vmatprep.subr.mxu0 0.0
    %2499 = vmatpush1.msra.mxu0 0.0
    %2500 = vmatprep.subr.mxu0 0.0
    %2501 = vmatpush1.msra.mxu0 0.0
    %2502 = vmatprep.subr.mxu0 0.0
    %2503 = vmatpush1.msra.mxu0 0.0
    %2504 = vmatprep.subr.mxu0 0.0
    %2505 = vmatpush1.msra.mxu0 0.0
    %2506 = vmatprep.subr.mxu0 0.0
    %2507 = vmatpush1.msra.mxu0 0.0
    %2508 = vmatprep.subr.mxu0 0.0
    %2509 = vmatpush1.msra.mxu0 0.0
    %2510 = vmatprep.subr.mxu0 0.0
    %2511 = vmatpush1.msra.mxu0 0.0
    %2512 = vmatprep.subr.mxu0 0.0
    %2513 = vmatpush1.msra.mxu0 0.0
    %2514 = vmatprep.mubr.f32.mxu0 0.0
    %2515 = vmatmul.mubr.f32.gmra.mrb[0].mxu0 %v2448
    %v2516 = vpop.f32.mrb[0].mxu0
    %v2517 = vadd.f32 0.0, %v2516
    %v2518 = vpop.f32.mrb[0].mxu0
    %v2519 = vadd.f32 0.0, %v2518
    %2520 = vdwg.mxu0
    %v2521 = vadd.f32 %v2446, %v2517
    %v2522 = vadd.f32 %v2447, %v2519
    %v2523 = vxor.u32 %v2521, 2147483648
    %v2524 = vxor.u32 %v2522, 2147483648
    %v2525 = vmul.f32 %v2523, 1.442695
    %v2526 = vpow.pop %v2525
    %v2527 = vmul.f32 %v2524, 1.442695
    %v2528 = vpow.pop %v2527
    %v2529 = vadd.f32 %v2526, 1.0
    %v2530 = vadd.f32 %v2528, 1.0
    %v2531 = vrcp.pop %v2529
    %v2532 = vmul.f32 1.0, %v2531
    %v2533 = vrcp.pop %v2530
    %v2534 = vmul.f32 1.0, %v2533
    %v2535 = vtanh.pop %v2522
    %v2536 = vmul.f32 %v2532, %v2430
    %v2537 = vmul.f32 %v2532, %v2535
    %2539 = vrot.lane.b32.xlu0 %v2537, 64
    %v2540 = vpop.permute.xlu0 %2539
    %v2542 = vadd.f32 %v2536, %v2540
    %v2543 = vtanh.pop %v2542
    %v2544 = vmul.f32 %v2534, %v2543
    %2546 = vrot.lane.b32.xlu0 %v2544, 64
    %v2547 = vpop.permute.xlu0 %2546
    %2549 = vst.msk [vmem:[%s1287] sm:$0xff] %vm471, %v2547
    %2550 = vrot.lane.b32.xlu0 %v2544, 32
    %v2551 = vpop.permute.xlu0 %2550
    %2553 = vst.msk [vmem:[#allocation4] sm:$0xff] %vm471, %v2551
    %v2554 = vld [vmem:[#allocation3] sm:$0xff]
    %v2555 = vld [vmem:[#allocation3 + $0x8] sm:$0xff]
    %v2556 = vld [vmem:[#allocation3 + $0x10] sm:$0xff]
    %v2557 = vld [vmem:[#allocation3 + $0x18] sm:$0xff]
    %v2558 = vld [vmem:[#allocation3 + $0x20] sm:$0xff]
    %v2559 = vld [vmem:[#allocation3 + $0x28] sm:$0xff]
    %v2560 = vld [vmem:[#allocation3 + $0x30] sm:$0xff]
    %v2561 = vld [vmem:[#allocation3 + $0x38] sm:$0xff]
    %v2562 = vld [vmem:[#allocation14] sm:$0xff]
    %v2563 = vld [vmem:[#allocation14 + $0x8] sm:$0xff]
    %v2564 = vld [vmem:[#allocation14 + $0x10] sm:$0xff]
    %v2565 = vld [vmem:[#allocation14 + $0x18] sm:$0xff]
    %v2566 = vld [vmem:[#allocation4] sm:$0xff]
    %v2567 = vld [vmem:[#allocation4 + $0x8] sm:$0xff]
    %v2568 = vld [vmem:[#allocation4 + $0x10] sm:$0xff]
    %v2569 = vld [vmem:[#allocation4 + $0x18] sm:$0xff]
    %v2570 = vld [vmem:[#allocation4 + $0x20] sm:$0xff]
    %v2571 = vld [vmem:[#allocation4 + $0x28] sm:$0xff]
    %v2572 = vld [vmem:[#allocation4 + $0x30] sm:$0xff]
    %v2573 = vld [vmem:[#allocation4 + $0x38] sm:$0xff]
    %s2574 = scalar_lea.vmem [#allocation14], 32
    %v2575 = vld [vmem:[%s2574] sm:$0xff]
    %v2576 = vld [vmem:[%s2574 + $0x8] sm:$0xff]
    %v2577 = vld [vmem:[%s2574 + $0x10] sm:$0xff]
    %v2578 = vld [vmem:[%s2574 + $0x18] sm:$0xff]
    %v2580 = vsel %vm471, %v2566, 0
    %v2583 = vsel %vm471, %v2567, 0
    %v2586 = vsel %vm471, %v2568, 0
    %v2589 = vsel %vm471, %v2569, 0
    %v2592 = vsel %vm471, %v2570, 0
    %v2595 = vsel %vm471, %v2571, 0
    %v2598 = vsel %vm471, %v2572, 0
    %v2601 = vsel %vm471, %v2573, 0
    %2603 = vmatprep.subr.mxu0 0.0
    %2604 = vmatpush1.msra.mxu0 %v2575
    %2605 = vmatprep.subr.mxu0 0.0
    %2606 = vmatpush1.msra.mxu0 %v2576
    %2607 = vmatprep.subr.mxu0 0.0
    %2608 = vmatpush1.msra.mxu0 %v2577
    %2609 = vmatprep.subr.mxu0 0.0
    %2610 = vmatpush1.msra.mxu0 %v2578
    %2611 = vmatprep.subr.mxu0 0.0
    %2612 = vmatpush1.msra.mxu0 0.0
    %2613 = vmatprep.subr.mxu0 0.0
    %2614 = vmatpush1.msra.mxu0 0.0
    %2615 = vmatprep.subr.mxu0 0.0
    %2616 = vmatpush1.msra.mxu0 0.0
    %2617 = vmatprep.subr.mxu0 0.0
    %2618 = vmatpush1.msra.mxu0 0.0
    %2619 = vmatprep.subr.mxu0 0.0
    %2620 = vmatpush1.msra.mxu0 0.0
    %2621 = vmatprep.subr.mxu0 0.0
    %2622 = vmatpush1.msra.mxu0 0.0
    %2623 = vmatprep.subr.mxu0 0.0
    %2624 = vmatpush1.msra.mxu0 0.0
    %2625 = vmatprep.subr.mxu0 0.0
    %2626 = vmatpush1.msra.mxu0 0.0
    %2627 = vmatprep.subr.mxu0 0.0
    %2628 = vmatpush1.msra.mxu0 0.0
    %2629 = vmatprep.subr.mxu0 0.0
    %2630 = vmatpush1.msra.mxu0 0.0
    %2631 = vmatprep.subr.mxu0 0.0
    %2632 = vmatpush1.msra.mxu0 0.0
    %2633 = vmatprep.subr.mxu0 0.0
    %2634 = vmatpush1.msra.mxu0 0.0
    %2635 = vmatprep.subr.mxu0 0.0
    %2636 = vmatpush1.msra.mxu0 0.0
    %2637 = vmatprep.subr.mxu0 0.0
    %2638 = vmatpush1.msra.mxu0 0.0
    %2639 = vmatprep.subr.mxu0 0.0
    %2640 = vmatpush1.msra.mxu0 0.0
    %2641 = vmatprep.subr.mxu0 0.0
    %2642 = vmatpush1.msra.mxu0 0.0
    %2643 = vmatprep.subr.mxu0 0.0
    %2644 = vmatpush1.msra.mxu0 0.0
    %2645 = vmatprep.subr.mxu0 0.0
    %2646 = vmatpush1.msra.mxu0 0.0
    %2647 = vmatprep.subr.mxu0 0.0
    %2648 = vmatpush1.msra.mxu0 0.0
    %2649 = vmatprep.subr.mxu0 0.0
    %2650 = vmatpush1.msra.mxu0 0.0
    %2651 = vmatprep.subr.mxu0 0.0
    %2652 = vmatpush1.msra.mxu0 0.0
    %2653 = vmatprep.subr.mxu0 0.0
    %2654 = vmatpush1.msra.mxu0 0.0
    %2655 = vmatprep.subr.mxu0 0.0
    %2656 = vmatpush1.msra.mxu0 0.0
    %2657 = vmatprep.subr.mxu0 0.0
    %2658 = vmatpush1.msra.mxu0 0.0
    %2659 = vmatprep.subr.mxu0 0.0
    %2660 = vmatpush1.msra.mxu0 0.0
    %2661 = vmatprep.subr.mxu0 0.0
    %2662 = vmatpush1.msra.mxu0 0.0
    %2663 = vmatprep.subr.mxu0 0.0
    %2664 = vmatpush1.msra.mxu0 0.0
    %2665 = vmatprep.subr.mxu0 0.0
    %2666 = vmatpush1.msra.mxu0 0.0
    %2667 = vmatprep.mubr.f32.mxu0 0.0
    %2668 = vmatmul.mubr.f32.gmra.mrb[0].mxu0 %v2580
    %v2669 = vpop.f32.mrb[0].mxu0
    %v2670 = vadd.f32 0.0, %v2669
    %v2671 = vpop.f32.mrb[0].mxu0
    %2672 = vmatprep.mubr.f32.mxu0 0.0
    %2673 = vmatmul.mubr.f32.gmra.mrb[0].mxu0 %v2583
    %v2674 = vpop.f32.mrb[0].mxu0
    %v2675 = vadd.f32 0.0, %v2674
    %v2676 = vpop.f32.mrb[0].mxu0
    %2677 = vmatprep.mubr.f32.mxu0 0.0
    %2678 = vmatmul.mubr.f32.gmra.mrb[0].mxu0 %v2586
    %v2679 = vpop.f32.mrb[0].mxu0
    %v2680 = vadd.f32 0.0, %v2679
    %v2681 = vpop.f32.mrb[0].mxu0
    %2682 = vmatprep.mubr.f32.mxu0 0.0
    %2683 = vmatmul.mubr.f32.gmra.mrb[0].mxu0 %v2589
    %v2684 = vpop.f32.mrb[0].mxu0
    %v2685 = vadd.f32 0.0, %v2684
    %v2686 = vpop.f32.mrb[0].mxu0
    %2687 = vmatprep.mubr.f32.mxu0 0.0
    %2688 = vmatmul.mubr.f32.gmra.mrb[0].mxu0 %v2592
    %v2689 = vpop.f32.mrb[0].mxu0
    %v2690 = vadd.f32 0.0, %v2689
    %v2691 = vpop.f32.mrb[0].mxu0
    %2692 = vmatprep.mubr.f32.mxu0 0.0
    %2693 = vmatmul.mubr.f32.gmra.mrb[0].mxu0 %v2595
    %v2694 = vpop.f32.mrb[0].mxu0
    %v2695 = vadd.f32 0.0, %v2694
    %v2696 = vpop.f32.mrb[0].mxu0
    %2697 = vmatprep.mubr.f32.mxu0 0.0
    %2698 = vmatmul.mubr.f32.gmra.mrb[0].mxu0 %v2598
    %v2699 = vpop.f32.mrb[0].mxu0
    %v2700 = vadd.f32 0.0, %v2699
    %v2701 = vpop.f32.mrb[0].mxu0
    %2702 = vmatprep.mubr.f32.mxu0 0.0
    %2703 = vmatmul.mubr.f32.gmra.mrb[0].mxu0 %v2601
    %v2704 = vpop.f32.mrb[0].mxu0
    %v2705 = vadd.f32 0.0, %v2704
    %v2706 = vpop.f32.mrb[0].mxu0
    %2707 = vdwg.mxu0
    %v2709 = vsel %vm471, %v2554, 0
    %v2712 = vsel %vm471, %v2555, 0
    %v2715 = vsel %vm471, %v2556, 0
    %v2718 = vsel %vm471, %v2557, 0
    %v2721 = vsel %vm471, %v2558, 0
    %v2724 = vsel %vm471, %v2559, 0
    %v2727 = vsel %vm471, %v2560, 0
    %v2730 = vsel %vm471, %v2561, 0
    %2732 = vmatprep.subr.mxu0 0.0
    %2733 = vmatpush1.msra.mxu0 %v2562
    %2734 = vmatprep.subr.mxu0 0.0
    %2735 = vmatpush1.msra.mxu0 %v2563
    %2736 = vmatprep.subr.mxu0 0.0
    %2737 = vmatpush1.msra.mxu0 %v2564
    %2738 = vmatprep.subr.mxu0 0.0
    %2739 = vmatpush1.msra.mxu0 %v2565
    %2740 = vmatprep.subr.mxu0 0.0
    %2741 = vmatpush1.msra.mxu0 0.0
    %2742 = vmatprep.subr.mxu0 0.0
    %2743 = vmatpush1.msra.mxu0 0.0
    %2744 = vmatprep.subr.mxu0 0.0
    %2745 = vmatpush1.msra.mxu0 0.0
    %2746 = vmatprep.subr.mxu0 0.0
    %2747 = vmatpush1.msra.mxu0 0.0
    %2748 = vmatprep.subr.mxu0 0.0
    %2749 = vmatpush1.msra.mxu0 0.0
    %2750 = vmatprep.subr.mxu0 0.0
    %2751 = vmatpush1.msra.mxu0 0.0
    %2752 = vmatprep.subr.mxu0 0.0
    %2753 = vmatpush1.msra.mxu0 0.0
    %2754 = vmatprep.subr.mxu0 0.0
    %2755 = vmatpush1.msra.mxu0 0.0
    %2756 = vmatprep.subr.mxu0 0.0
    %2757 = vmatpush1.msra.mxu0 0.0
    %2758 = vmatprep.subr.mxu0 0.0
    %2759 = vmatpush1.msra.mxu0 0.0
    %2760 = vmatprep.subr.mxu0 0.0
    %2761 = vmatpush1.msra.mxu0 0.0
    %2762 = vmatprep.subr.mxu0 0.0
    %2763 = vmatpush1.msra.mxu0 0.0
    %2764 = vmatprep.subr.mxu0 0.0
    %2765 = vmatpush1.msra.mxu0 0.0
    %2766 = vmatprep.subr.mxu0 0.0
    %2767 = vmatpush1.msra.mxu0 0.0
    %2768 = vmatprep.subr.mxu0 0.0
    %2769 = vmatpush1.msra.mxu0 0.0
    %2770 = vmatprep.subr.mxu0 0.0
    %2771 = vmatpush1.msra.mxu0 0.0
    %2772 = vmatprep.subr.mxu0 0.0
    %2773 = vmatpush1.msra.mxu0 0.0
    %2774 = vmatprep.subr.mxu0 0.0
    %2775 = vmatpush1.msra.mxu0 0.0
    %2776 = vmatprep.subr.mxu0 0.0
    %2777 = vmatpush1.msra.mxu0 0.0
    %2778 = vmatprep.subr.mxu0 0.0
    %2779 = vmatpush1.msra.mxu0 0.0
    %2780 = vmatprep.subr.mxu0 0.0
    %2781 = vmatpush1.msra.mxu0 0.0
    %2782 = vmatprep.subr.mxu0 0.0
    %2783 = vmatpush1.msra.mxu0 0.0
    %2784 = vmatprep.subr.mxu0 0.0
    %2785 = vmatpush1.msra.mxu0 0.0
    %2786 = vmatprep.subr.mxu0 0.0
    %2787 = vmatpush1.msra.mxu0 0.0
    %2788 = vmatprep.subr.mxu0 0.0
    %2789 = vmatpush1.msra.mxu0 0.0
    %2790 = vmatprep.subr.mxu0 0.0
    %2791 = vmatpush1.msra.mxu0 0.0
    %2792 = vmatprep.subr.mxu0 0.0
    %2793 = vmatpush1.msra.mxu0 0.0
    %2794 = vmatprep.subr.mxu0 0.0
    %2795 = vmatpush1.msra.mxu0 0.0
    %2796 = vmatprep.mubr.f32.mxu0 0.0
    %2797 = vmatmul.mubr.f32.gmra.mrb[0].mxu0 %v2709
    %v2798 = vpop.f32.mrb[0].mxu0
    %v2799 = vadd.f32 %v2670, %v2798
    %v2800 = vpop.f32.mrb[0].mxu0
    %2801 = vmatprep.mubr.f32.mxu0 0.0
    %2802 = vmatmul.mubr.f32.gmra.mrb[0].mxu0 %v2712
    %v2803 = vpop.f32.mrb[0].mxu0
    %v2804 = vadd.f32 %v2675, %v2803
    %v2805 = vpop.f32.mrb[0].mxu0
    %2806 = vmatprep.mubr.f32.mxu0 0.0
    %2807 = vmatmul.mubr.f32.gmra.mrb[0].mxu0 %v2715
    %v2808 = vpop.f32.mrb[0].mxu0
    %v2809 = vadd.f32 %v2680, %v2808
    %v2810 = vpop.f32.mrb[0].mxu0
    %2811 = vmatprep.mubr.f32.mxu0 0.0
    %2812 = vmatmul.mubr.f32.gmra.mrb[0].mxu0 %v2718
    %v2813 = vpop.f32.mrb[0].mxu0
    %v2814 = vadd.f32 %v2685, %v2813
    %v2815 = vpop.f32.mrb[0].mxu0
    %2816 = vmatprep.mubr.f32.mxu0 0.0
    %2817 = vmatmul.mubr.f32.gmra.mrb[0].mxu0 %v2721
    %v2818 = vpop.f32.mrb[0].mxu0
    %v2819 = vadd.f32 %v2690, %v2818
    %v2820 = vpop.f32.mrb[0].mxu0
    %2821 = vmatprep.mubr.f32.mxu0 0.0
    %2822 = vmatmul.mubr.f32.gmra.mrb[0].mxu0 %v2724
    %v2823 = vpop.f32.mrb[0].mxu0
    %v2824 = vadd.f32 %v2695, %v2823
    %v2825 = vpop.f32.mrb[0].mxu0
    %2826 = vmatprep.mubr.f32.mxu0 0.0
    %2827 = vmatmul.mubr.f32.gmra.mrb[0].mxu0 %v2727
    %v2828 = vpop.f32.mrb[0].mxu0
    %v2829 = vadd.f32 %v2700, %v2828
    %v2830 = vpop.f32.mrb[0].mxu0
    %2831 = vmatprep.mubr.f32.mxu0 0.0
    %2832 = vmatmul.mubr.f32.gmra.mrb[0].mxu0 %v2730
    %v2833 = vpop.f32.mrb[0].mxu0
    %v2834 = vadd.f32 %v2705, %v2833
    %v2835 = vpop.f32.mrb[0].mxu0
    %2836 = vdwg.mxu0
    %v2837 = vld [vmem:[%s8] sm:$0x1]
    %v2839 = vlaneseq
    %v2840 = vshrl.u32 %v2839, 7
    %v2841 = vsub.s32 0, %v2840
    %v2842 = vrot.slane %v2837, %v2841
    %v2844 = vadd.f32 %v2799, %v2842
    %v2845 = vadd.f32 %v2804, %v2842
    %v2846 = vadd.f32 %v2809, %v2842
    %v2847 = vadd.f32 %v2814, %v2842
    %v2848 = vadd.f32 %v2819, %v2842
    %v2849 = vadd.f32 %v2824, %v2842
    %v2850 = vadd.f32 %v2829, %v2842
    %v2851 = vadd.f32 %v2834, %v2842
    %v2852 = vmax.f32 %v2844, 0.0
    %v2853 = vmax.f32 %v2845, 0.0
    %v2854 = vmax.f32 %v2846, 0.0
    %v2855 = vmax.f32 %v2847, 0.0
    %v2856 = vmax.f32 %v2848, 0.0
    %v2857 = vmax.f32 %v2849, 0.0
    %v2858 = vmax.f32 %v2850, 0.0
    %v2859 = vmax.f32 %v2851, 0.0
    %v2860 = vld [vmem:[%s9] sm:$0x1]
    %v2862 = vlaneseq
    %v2863 = vshrl.u32 %v2862, 7
    %v2864 = vsub.s32 0, %v2863
    %v2865 = vrot.slane %v2860, %v2864
    %v2867 = vmul.f32 %v2852, %v2865
    %v2868 = vmul.f32 %v2853, %v2865
    %v2869 = vmul.f32 %v2854, %v2865
    %v2870 = vmul.f32 %v2855, %v2865
    %v2871 = vmul.f32 %v2856, %v2865
    %v2872 = vmul.f32 %v2857, %v2865
    %v2873 = vmul.f32 %v2858, %v2865
    %v2874 = vmul.f32 %v2859, %v2865
    %v2875 = vsel %vm471, %v2867, 0.0
    %2876 = vadd.xlane.f32.xlu0 %v2875
    %v2877 = vpop.xlane.xlu0 %2876
    %v2878 = vsel %vm471, %v2868, 0.0
    %2879 = vadd.xlane.f32.xlu0 %v2878
    %v2880 = vpop.xlane.xlu0 %2879
    %v2881 = vsel %vm471, %v2869, 0.0
    %2882 = vadd.xlane.f32.xlu0 %v2881
    %v2883 = vpop.xlane.xlu0 %2882
    %v2884 = vsel %vm471, %v2870, 0.0
    %2885 = vadd.xlane.f32.xlu0 %v2884
    %v2886 = vpop.xlane.xlu0 %2885
    %v2887 = vsel %vm471, %v2871, 0.0
    %2888 = vadd.xlane.f32.xlu0 %v2887
    %v2889 = vpop.xlane.xlu0 %2888
    %v2890 = vsel %vm471, %v2872, 0.0
    %2891 = vadd.xlane.f32.xlu0 %v2890
    %v2892 = vpop.xlane.xlu0 %2891
    %v2893 = vsel %vm471, %v2873, 0.0
    %2894 = vadd.xlane.f32.xlu0 %v2893
    %v2895 = vpop.xlane.xlu0 %2894
    %v2896 = vsel %vm471, %v2874, 0.0
    %2897 = vadd.xlane.f32.xlu0 %v2896
    %v2898 = vpop.xlane.xlu0 %2897
    %v2899 = vld [vmem:[#allocation5] sm:$0x1]
    %v2901 = vlaneseq
    %v2902 = vshrl.u32 %v2901, 7
    %v2903 = vsub.s32 0, %v2902
    %v2904 = vrot.slane %v2899, %v2903
    %v2906 = vadd.f32 %v2877, %v2904
    %v2907 = vadd.f32 %v2880, %v2904
    %v2908 = vadd.f32 %v2883, %v2904
    %v2909 = vadd.f32 %v2886, %v2904
    %v2910 = vadd.f32 %v2889, %v2904
    %v2911 = vadd.f32 %v2892, %v2904
    %v2912 = vadd.f32 %v2895, %v2904
    %v2913 = vadd.f32 %v2898, %v2904
    %v2914 = vxor.u32 %v2906, 2147483648
    %v2915 = vxor.u32 %v2907, 2147483648
    %v2916 = vxor.u32 %v2908, 2147483648
    %v2917 = vxor.u32 %v2909, 2147483648
    %v2918 = vxor.u32 %v2910, 2147483648
    %v2919 = vxor.u32 %v2911, 2147483648
    %v2920 = vxor.u32 %v2912, 2147483648
    %v2921 = vxor.u32 %v2913, 2147483648
    %v2922 = vmul.f32 %v2914, 1.442695
    %v2923 = vpow.pop %v2922
    %v2924 = vmul.f32 %v2915, 1.442695
    %v2925 = vpow.pop %v2924
    %v2926 = vmul.f32 %v2916, 1.442695
    %v2927 = vpow.pop %v2926
    %v2928 = vmul.f32 %v2917, 1.442695
    %v2929 = vpow.pop %v2928
    %v2930 = vmul.f32 %v2918, 1.442695
    %v2931 = vpow.pop %v2930
    %v2932 = vmul.f32 %v2919, 1.442695
    %v2933 = vpow.pop %v2932
    %v2934 = vmul.f32 %v2920, 1.442695
    %v2935 = vpow.pop %v2934
    %v2936 = vmul.f32 %v2921, 1.442695
    %v2937 = vpow.pop %v2936
    %v2938 = vadd.f32 %v2923, 1.0
    %v2939 = vadd.f32 %v2925, 1.0
    %v2940 = vadd.f32 %v2927, 1.0
    %v2941 = vadd.f32 %v2929, 1.0
    %v2942 = vadd.f32 %v2931, 1.0
    %v2943 = vadd.f32 %v2933, 1.0
    %v2944 = vadd.f32 %v2935, 1.0
    %v2945 = vadd.f32 %v2937, 1.0
    %v2946 = vrcp.pop %v2938
    %v2947 = vmul.f32 1.0, %v2946
    %v2948 = vrcp.pop %v2939
    %v2949 = vmul.f32 1.0, %v2948
    %v2950 = vrcp.pop %v2940
    %v2951 = vmul.f32 1.0, %v2950
    %v2952 = vrcp.pop %v2941
    %v2953 = vmul.f32 1.0, %v2952
    %v2954 = vrcp.pop %v2942
    %v2955 = vmul.f32 1.0, %v2954
    %v2956 = vrcp.pop %v2943
    %v2957 = vmul.f32 1.0, %v2956
    %v2958 = vrcp.pop %v2944
    %v2959 = vmul.f32 1.0, %v2958
    %v2960 = vrcp.pop %v2945
    %v2961 = vmul.f32 1.0, %v2960
    %vm2962 = vcmask 7168
    %2963 = vst.msk [vmem:[%s11] sm:$0xff] %vm2962, %v2947
    %2964 = vst.msk [vmem:[%s11 + $0x8] sm:$0xff] %vm2962, %v2949
    %2965 = vst.msk [vmem:[%s11 + $0x10] sm:$0xff] %vm2962, %v2951
    %2966 = vst.msk [vmem:[%s11 + $0x18] sm:$0xff] %vm2962, %v2953
    %2967 = vst.msk [vmem:[%s11 + $0x20] sm:$0xff] %vm2962, %v2955
    %2968 = vst.msk [vmem:[%s11 + $0x28] sm:$0xff] %vm2962, %v2957
    %2969 = vst.msk [vmem:[%s11 + $0x30] sm:$0xff] %vm2962, %v2959
    %2970 = vst.msk [vmem:[%s11 + $0x38] sm:$0xff] %vm2962, %v2961
    // Predicated region
    $region70: #{tpu_custom_call.1} parent=1 // pred_check
      _
    $region71: #{tpu_custom_call.1} parent=1 // pred_check_branch
      %2972 = sbr.rel (0) target = $region73
    $region72: #{tpu_custom_call.1} parent=1 // pred_region
      _
    $region73: #{tpu_custom_call.1} parent=1 // pred_fallthru
      _
    // Predicated region
    $region74: #{tpu_custom_call.1} parent=1 // pred_check
      _
    $region75: #{tpu_custom_call.1} parent=1 // pred_check_branch
      %2974 = sbr.rel (0) target = $region77
    $region76: #{tpu_custom_call.1} parent=1 // pred_region
      _
    $region77: #{tpu_custom_call.1} parent=1 // pred_fallthru
      _
    %2975 = vsyncpa [#allocation7], 1
    %2976 = vsyncpa [#allocation9], 1
    %2977 = vsyncpa [#allocation12], 1
    %2978 = vsyncpa [#allocation15], 1

</llo_original>
